<compile_context>
chip_gen: v6e
topology: v6e:2x2x1
jax: 0.10.0
libtpu: 0.0.40
codegen_flags: <defaults>
</compile_context>

<pallas_src>
import functools

import jax
import jax.numpy as jnp
from jax.experimental import pallas as pl
from jax.experimental.pallas import tpu as pltpu


# ---------------------------------------------------------------------------
# Architecture helpers (mirror the PyTorch reference helpers)
# ---------------------------------------------------------------------------
def compute_convTranspose2D_output_size(size, kernel_size, stride, padding):
    return tuple((d - 1) * stride - 2 * padding + kernel_size for d in size)


def compute_output_padding(expected, current, kernel_size, padding, stride):
    return tuple(e - c for e, c in zip(expected, current))


def _round_up(x, m):
    return ((x + m - 1) // m) * m


def _cdiv(a, b):
    return (a + b - 1) // b


_VMEM_LIMIT = 32 * 1024 * 1024  # explicit scoped-VMEM budget; fits v5e/v6e/v7x


# ---------------------------------------------------------------------------
# Pallas kernel 1: lane-dense GEMM + bias (the fc2 Linear layer)
# ---------------------------------------------------------------------------
def _mm_bias_kernel(x_ref, w_ref, b_ref, o_ref):
    acc = jnp.dot(x_ref[...], w_ref[...], preferred_element_type=jnp.float32)
    o_ref[...] = (acc + b_ref[...]).astype(o_ref.dtype)


def pallas_linear(x, w, b, *, block_m=256, block_f=512):
    """x:(M,K) @ w:(K,F) + b:(1,F) -> (M,F) f32.  F must be a multiple of 128."""
    M, K = x.shape
    F = w.shape[1]
    Mp = _round_up(max(M, 8), 8)
    bm = min(block_m, Mp)
    Mp = _round_up(Mp, bm)            # no bm=M fallback: pad rows instead
    bf = min(block_f, F)
    if F % bf:
        bf = F                        # F is already a 128-multiple
    if Mp != M:
        x = jnp.pad(x, ((0, Mp - M), (0, 0)))
    out = pl.pallas_call(
        _mm_bias_kernel,
        out_shape=jax.ShapeDtypeStruct((Mp, F), jnp.float32),
        grid=(Mp // bm, F // bf),
        in_specs=[
            pl.BlockSpec((bm, K), lambda i, j: (i, 0)),
            pl.BlockSpec((K, bf), lambda i, j: (0, j)),
            pl.BlockSpec((1, bf), lambda i, j: (0, j)),
        ],
        out_specs=pl.BlockSpec((bm, bf), lambda i, j: (i, j)),
        compiler_params=pltpu.CompilerParams(
            dimension_semantics=("parallel", "parallel"),
            vmem_limit_bytes=_VMEM_LIMIT),
    )(x, w, b)
    return out[:M] if Mp != M else out


# ---------------------------------------------------------------------------
# Pallas kernel 2: fused ConvTranspose2d(k=3,s=2,p=1) + ReLU (sub-pixel phases)
#
# For output pixel (2*by+py, 2*bx+px) only input pixels (by+dy, bx+dx), dy,dx in
# {0,1}, contribute.  The per-tap weights (Cin, 4*Cout) are prebuilt in
# _make_phase_weight; the kernel does 4 accumulating GEMMs per base row — no
# im2col / patch matrix ever touches HBM.
# ---------------------------------------------------------------------------
def _deconv_phase_kernel(xm_ref, xn_ref, w_ref, b_ref, o_ref, *, tile_h, wb, cin):
    wp = wb + 1
    bias = b_ref[...]                               # (1, Fpad)
    w00 = w_ref[0 * cin:1 * cin, :]                 # tap (dy=0, dx=0)
    w01 = w_ref[1 * cin:2 * cin, :]                 # tap (dy=0, dx=1)
    w10 = w_ref[2 * cin:3 * cin, :]                 # tap (dy=1, dx=0)
    w11 = w_ref[3 * cin:4 * cin, :]                 # tap (dy=1, dx=1)
    for h in range(tile_h):                         # static unroll over base rows
        r0 = xm_ref[0, h]                           # input row  by   : (wp, cin)
        r1 = xm_ref[0, h + 1] if h + 1 < tile_h else xn_ref[0, 0]   # row by + 1
        acc = jnp.dot(r0[0:wb, :], w00, preferred_element_type=jnp.float32)
        acc = acc + jnp.dot(r0[1:wp, :], w01, preferred_element_type=jnp.float32)
        acc = acc + jnp.dot(r1[0:wb, :], w10, preferred_element_type=jnp.float32)
        acc = acc + jnp.dot(r1[1:wp, :], w11, preferred_element_type=jnp.float32)
        o_ref[0, h] = jnp.maximum(acc + bias, 0.0)  # (wb, Fpad), lane-dense store


def pallas_deconv_phase(x_nhwc, wmat, bvec, ho, wo, cout, *, to_nchw):
    """Fused ConvTranspose2d(k=3,s=2,p=1,output_padding in {0,1}) + ReLU."""
    N, H, W, cin = x_nhwc.shape
    fpad = wmat.shape[1]
    tile_h = max(1, min(H, _cdiv(256, W), 16))      # ~256 GEMM rows per grid step
    T = _cdiv(H, tile_h)
    hpad = (T + 1) * tile_h                         # >= H + 1 and a tile_h multiple
    wp = W + 1
    xpad = jnp.pad(x_nhwc, ((0, 0), (0, hpad - H), (0, 1), (0, 0)))
    kernel = functools.partial(_deconv_phase_kernel, tile_h=tile_h, wb=W, cin=cin)
    out = pl.pallas_call(
        kernel,
        out_shape=jax.ShapeDtypeStruct((N, T * tile_h, W, fpad), jnp.float32),
        grid=(N, T),
        in_specs=[
            # main block: tile_h input rows starting at base row r*tile_h
            pl.BlockSpec((1, tile_h, wp, cin), lambda n, r: (n, r, 0, 0)),
            # one extra overlap row (r*tile_h + tile_h) from the SAME array
            pl.BlockSpec((1, 1, wp, cin),
                         lambda n, r: (n, r * tile_h + tile_h, 0, 0)),
            pl.BlockSpec((4 * cin, fpad), lambda n, r: (0, 0)),
            pl.BlockSpec((1, fpad), lambda n, r: (0, 0)),
        ],
        out_specs=pl.BlockSpec((1, tile_h, W, fpad), lambda n, r: (n, r, 0, 0)),
        compiler_params=pltpu.CompilerParams(
            dimension_semantics=("parallel", "parallel"),
            vmem_limit_bytes=_VMEM_LIMIT),
    )(xpad, xpad, wmat, bvec)

    # interleave the 2x2 phases (depth-to-space) and crop; glue only.
    y = out[:, :H, :, :4 * cout].reshape(N, H, W, 2, 2, cout)
    if to_nchw:
        # fold the final NHWC->NCHW conversion into the (unavoidable) interleave
        y = y.transpose(0, 5, 1, 3, 2, 4).reshape(N, cout, 2 * H, 2 * W)
        return y[:, :, :ho, :wo]
    y = y.transpose(0, 1, 3, 2, 4, 5).reshape(N, 2 * H, 2 * W, cout)
    return y[:, :ho, :wo, :]


# ---------------------------------------------------------------------------
# Parameter preparation (PyTorch layout -> kernel-friendly layout, done once)
# ---------------------------------------------------------------------------
def _make_phase_weight(w, b):
    """w: (Cin, Cout, 3, 3) ConvTranspose2d weight (s=2, p=1) -> (4*Cin, Fpad), (1, Fpad)."""
    cin, cout, k, _ = w.shape
    # KY[py][dy]: which kernel row feeds output phase py from window row dy (None = no tap)
    KY = ((1, None), (2, 0))
    weff = jnp.zeros((2, 2, cin, 4, cout), w.dtype)
    for dy in range(2):
        for dx in range(2):
            for py in range(2):
                for px in range(2):
                    ky, kx = KY[py][dy], KY[px][dx]
                    if ky is None or kx is None:
                        continue
                    weff = weff.at[dy, dx, :, py * 2 + px, :].set(w[:, :, ky, kx])
    f = 4 * cout
    fpad = _round_up(f, 128)                               # lane-dense output width
    wmat = weff.reshape(4, cin, f).reshape(4 * cin, f)
    wmat = jnp.pad(wmat, ((0, 0), (0, fpad - f)))
    bvec = jnp.pad(jnp.tile(b, 4), (0, fpad - f)).reshape(1, fpad)
    return wmat, bvec


def prepare_decoder_params(params):
    c0, h0, w0 = params["c0"], params["h0"], params["w0"]
    K = params["fc_w"].shape[1]
    F = c0 * h0 * w0
    # permute fc columns so the GEMM directly yields (N, H0, W0, C0) NHWC (no transpose)
    rhs = jnp.transpose(params["fc_w"].reshape(c0, h0, w0, K), (3, 1, 2, 0)).reshape(K, F)
    brow = params["fc_b"].reshape(c0, h0, w0).transpose(1, 2, 0).reshape(1, F)
    Fpad = _round_up(F, 128)
    if Fpad != F:
        rhs = jnp.pad(rhs, ((0, 0), (0, Fpad - F)))
        brow = jnp.pad(brow, ((0, 0), (0, Fpad - F)))

    layers = []
    H, W = h0, w0
    for layer in params["deconvs"]:
        s, p = layer["stride"], layer["padding"]
        oph, opw = layer["output_padding"]
        k = layer["w"].shape[2]
        assert (k, s, p) == (3, 2, 1), "phase decomposition assumes k=3, s=2, p=1"
        assert 0 <= oph < s and 0 <= opw < s, "output_padding must be in [0, stride)"
        ho = (H - 1) * s - 2 * p + k + oph
        wo = (W - 1) * s - 2 * p + k + opw
        wmat, bvec = _make_phase_weight(layer["w"], layer["b"])
        layers.append({"wmat": wmat, "bvec": bvec, "ho": ho, "wo": wo,
                       "cout": layer["w"].shape[1]})
        H, W = ho, wo

    return {"fc_w_rhs": rhs, "fc_b_row": brow, "fc_f": F,
            "c0": c0, "h0": h0, "w0": w0, "deconvs": layers}


# ---------------------------------------------------------------------------
# Parameter init (deterministic, synthetic; PyTorch layouts)
# ---------------------------------------------------------------------------
def init_decoder_params(key, sizes, latent_dim, channels, kernel_size=3, stride=2, padding=1):
    rev_channels = list(reversed(channels))
    rev_sizes = list(reversed(sizes))
    c0 = rev_channels[0]
    h0, w0 = rev_sizes[0]
    fc_out = c0 * h0 * w0

    n_deconv = len(rev_sizes) - 1
    keys = jax.random.split(key, 2 + 2 * n_deconv)

    fc_w = jax.random.normal(keys[0], (fc_out, latent_dim), jnp.float32) / jnp.sqrt(latent_dim)
    fc_b = 0.01 * jax.random.normal(keys[1], (fc_out,), jnp.float32)

    deconvs = []
    current = rev_sizes[0]
    for i in range(1, len(rev_sizes)):
        expected = rev_sizes[i]
        current = compute_convTranspose2D_output_size(current, kernel_size, stride, padding)
        op = compute_output_padding(expected, current, kernel_size, padding, stride)
        current = tuple(a + b_ for a, b_ in zip(current, op))
        cin, cout = rev_channels[i - 1], rev_channels[i]
        wk = jax.random.normal(keys[2 * i], (cin, cout, kernel_size, kernel_size),
                               jnp.float32) / jnp.sqrt(cin * kernel_size * kernel_size)
        bk = 0.01 * jax.random.normal(keys[2 * i + 1], (cout,), jnp.float32)
        deconvs.append({"w": wk, "b": bk, "stride": stride, "padding": padding,
                        "output_padding": op})

    return {"fc_w": fc_w, "fc_b": fc_b, "deconvs": deconvs,
            "c0": c0, "h0": h0, "w0": w0}


# ---------------------------------------------------------------------------
# Forward pass (Pallas)
# ---------------------------------------------------------------------------
def decoder_forward(x, prep):
    N = x.shape[0]
    y = pallas_linear(x, prep["fc_w_rhs"], prep["fc_b_row"])
    # columns are pre-permuted -> direct NHWC unflatten, no activation transpose
    y = y[:, :prep["fc_f"]].reshape(N, prep["h0"], prep["w0"], prep["c0"])
    layers = prep["deconvs"]
    if not layers:
        return y.transpose(0, 3, 1, 2)
    for li, layer in enumerate(layers):
        y = pallas_deconv_phase(y, layer["wmat"], layer["bvec"],
                                layer["ho"], layer["wo"], layer["cout"],
                                to_nchw=(li == len(layers) - 1))
    return y  # NCHW, matching the PyTorch module


# ---------------------------------------------------------------------------
# Pure-JAX reference (NCHW, lax.conv_general_dilated) for correctness check
# ---------------------------------------------------------------------------
def decoder_reference(x, params):
    N = x.shape[0]
    y = x @ params["fc_w"].T + params["fc_b"]
    y = y.reshape(N, params["c0"], params["h0"], params["w0"])
    for layer in params["deconvs"]:
        w, b = layer["w"], layer["b"]
        s, p = layer["stride"], layer["padding"]
        oph, opw = layer["output_padding"]
        k = w.shape[2]
        wf = jnp.transpose(w[:, :, ::-1, ::-1], (1, 0, 2, 3))  # OIHW
        y = jax.lax.conv_general_dilated(
            y, wf, window_strides=(1, 1),
            padding=[(k - 1 - p, k - 1 - p + oph), (k - 1 - p, k - 1 - p + opw)],
            lhs_dilation=(s, s), rhs_dilation=(1, 1),
            dimension_numbers=("NCHW", "OIHW", "NCHW"))
        y = jnp.maximum(y + b.reshape(1, -1, 1, 1), 0.0)
    return y


if __name__ == "__main__":
    # Small config: encoder went 16x16 -> 8x8 -> 4x4 with channels [4, 8, 16]
    sizes = [(16, 16), (8, 8), (4, 4)]
    channels = [4, 8, 16]
    latent_dim = 32
    batch = 2

    x = jax.random.normal(jax.random.PRNGKey(0), (batch, latent_dim), jnp.float32)
    params = init_decoder_params(jax.random.PRNGKey(1), sizes, latent_dim, channels)
    prep = prepare_decoder_params(params)

    fwd = jax.jit(lambda inp: decoder_forward(inp, prep))
    out = jax.block_until_ready(fwd(x))

    assert out.shape == (batch, channels[0], sizes[0][0], sizes[0][1]), out.shape

    ref = jax.block_until_ready(decoder_reference(x, params))
    max_err = float(jnp.max(jnp.abs(out - ref)))
    assert jnp.allclose(out, ref, atol=1e-4, rtol=1e-4), max_err

    print("KERNEL_OK")
</pallas_src>

<mosaic_0001>
module attributes {stable_mosaic.version = 11 : i64} {
  func.func @_deconv_phase_kernel(%arg0: i32, %arg1: i32, %arg2: memref<1x4x5x16xf32, #tpu.memory_space<vmem>>, %arg3: memref<1x1x5x16xf32, #tpu.memory_space<vmem>>, %arg4: memref<64x128xf32, #tpu.memory_space<vmem>>, %arg5: memref<1x128xf32, #tpu.memory_space<vmem>>, %arg6: memref<1x4x4x128xf32, #tpu.memory_space<vmem>>) attributes {dimension_semantics = [#tpu.dimension_semantics<parallel>, #tpu.dimension_semantics<parallel>], iteration_bounds = array<i64: 2, 1>, scalar_prefetch = 0 : i64, scratch_operands = 0 : i64, tpu.core_type = #tpu.core_type<tc>, window_params = [{transform_indices = @transform_0, window_bounds = array<i64: 1, 4, 5, 16>}, {transform_indices = @transform_1, window_bounds = array<i64: 1, 1, 5, 16>}, {pipeline_mode = #tpu.pipeline_mode<synchronous>, transform_indices = @transform_2, window_bounds = array<i64: 64, 128>}, {pipeline_mode = #tpu.pipeline_mode<synchronous>, transform_indices = @transform_3, window_bounds = array<i64: 1, 128>}, {transform_indices = @transform_4, window_bounds = array<i64: 1, 4, 4, 128>}]} {
    %c0 = arith.constant 0 : index
    %c0_0 = arith.constant 0 : index
    %0 = vector.load %arg5[%c0, %c0_0] : memref<1x128xf32, #tpu.memory_space<vmem>>, vector<1x128xf32>
    %c0_1 = arith.constant 0 : index
    %c0_2 = arith.constant 0 : index
    %1 = vector.load %arg4[%c0_1, %c0_2] : memref<64x128xf32, #tpu.memory_space<vmem>>, vector<16x128xf32>
    %c16 = arith.constant 16 : index
    %c0_3 = arith.constant 0 : index
    %2 = vector.load %arg4[%c16, %c0_3] : memref<64x128xf32, #tpu.memory_space<vmem>>, vector<16x128xf32>
    %c32 = arith.constant 32 : index
    %c0_4 = arith.constant 0 : index
    %3 = vector.load %arg4[%c32, %c0_4] : memref<64x128xf32, #tpu.memory_space<vmem>>, vector<16x128xf32>
    %c48 = arith.constant 48 : index
    %c0_5 = arith.constant 0 : index
    %4 = vector.load %arg4[%c48, %c0_5] : memref<64x128xf32, #tpu.memory_space<vmem>>, vector<16x128xf32>
    %c0_6 = arith.constant 0 : index
    %c0_7 = arith.constant 0 : index
    %c0_8 = arith.constant 0 : index
    %c0_9 = arith.constant 0 : index
    %5 = vector.load %arg2[%c0_6, %c0_7, %c0_8, %c0_9] : memref<1x4x5x16xf32, #tpu.memory_space<vmem>>, vector<1x1x5x16xf32>
    %6 = vector.shape_cast %5 : vector<1x1x5x16xf32> to vector<5x16xf32>
    %c0_10 = arith.constant 0 : index
    %c1 = arith.constant 1 : index
    %c0_11 = arith.constant 0 : index
    %c0_12 = arith.constant 0 : index
    %7 = vector.load %arg2[%c0_10, %c1, %c0_11, %c0_12] : memref<1x4x5x16xf32, #tpu.memory_space<vmem>>, vector<1x1x5x16xf32>
    %8 = vector.shape_cast %7 : vector<1x1x5x16xf32> to vector<5x16xf32>
    %9 = vector.extract_strided_slice %6 {offsets = [0, 0], sizes = [4, 16], strides = [1, 1]} : vector<5x16xf32> to vector<4x16xf32>
    %cst = arith.constant dense<0.000000e+00> : vector<4x128xf32>
    %10 = tpu.matmul %9, %1, %cst {dimension_numbers = #tpu.dot_dimension_numbers<[1], [0], [0], [1], [0, 0, 1, 1], [], []>} : vector<4x16xf32>, vector<16x128xf32>, vector<4x128xf32> -> vector<4x128xf32>
    %11 = vector.extract_strided_slice %6 {offsets = [1, 0], sizes = [4, 16], strides = [1, 1]} : vector<5x16xf32> to vector<4x16xf32>
    %cst_13 = arith.constant dense<0.000000e+00> : vector<4x128xf32>
    %12 = tpu.matmul %11, %2, %cst_13 {dimension_numbers = #tpu.dot_dimension_numbers<[1], [0], [0], [1], [0, 0, 1, 1], [], []>} : vector<4x16xf32>, vector<16x128xf32>, vector<4x128xf32> -> vector<4x128xf32>
    %13 = arith.addf %10, %12 : vector<4x128xf32>
    %14 = vector.extract_strided_slice %8 {offsets = [0, 0], sizes = [4, 16], strides = [1, 1]} : vector<5x16xf32> to vector<4x16xf32>
    %cst_14 = arith.constant dense<0.000000e+00> : vector<4x128xf32>
    %15 = tpu.matmul %14, %3, %cst_14 {dimension_numbers = #tpu.dot_dimension_numbers<[1], [0], [0], [1], [0, 0, 1, 1], [], []>} : vector<4x16xf32>, vector<16x128xf32>, vector<4x128xf32> -> vector<4x128xf32>
    %16 = arith.addf %13, %15 : vector<4x128xf32>
    %17 = vector.extract_strided_slice %8 {offsets = [1, 0], sizes = [4, 16], strides = [1, 1]} : vector<5x16xf32> to vector<4x16xf32>
    %cst_15 = arith.constant dense<0.000000e+00> : vector<4x128xf32>
    %18 = tpu.matmul %17, %4, %cst_15 {dimension_numbers = #tpu.dot_dimension_numbers<[1], [0], [0], [1], [0, 0, 1, 1], [], []>} : vector<4x16xf32>, vector<16x128xf32>, vector<4x128xf32> -> vector<4x128xf32>
    %19 = arith.addf %16, %18 : vector<4x128xf32>
    %20 = vector.broadcast %0 : vector<1x128xf32> to vector<4x128xf32>
    %21 = arith.addf %19, %20 : vector<4x128xf32>
    %cst_16 = arith.constant 0.000000e+00 : f32
    %22 = vector.broadcast %cst_16 : f32 to vector<4x128xf32>
    %23 = arith.maximumf %21, %22 : vector<4x128xf32>
    %c0_17 = arith.constant 0 : index
    %c0_18 = arith.constant 0 : index
    %c0_19 = arith.constant 0 : index
    %c0_20 = arith.constant 0 : index
    %24 = vector.load %arg6[%c0_17, %c0_18, %c0_19, %c0_20] : memref<1x4x4x128xf32, #tpu.memory_space<vmem>>, vector<1x1x4x128xf32>
    %25 = vector.shape_cast %24 : vector<1x1x4x128xf32> to vector<4x128xf32>
    %26 = vector.shape_cast %23 : vector<4x128xf32> to vector<1x1x4x128xf32>
    tpu.vector_store %arg6[%c0_17, %c0_18, %c0_19, %c0_20], %26 {strides = array<i32>} : memref<1x4x4x128xf32, #tpu.memory_space<vmem>>, vector<1x1x4x128xf32>,
    %c0_21 = arith.constant 0 : index
    %c1_22 = arith.constant 1 : index
    %c0_23 = arith.constant 0 : index
    %c0_24 = arith.constant 0 : index
    %27 = vector.load %arg2[%c0_21, %c1_22, %c0_23, %c0_24] : memref<1x4x5x16xf32, #tpu.memory_space<vmem>>, vector<1x1x5x16xf32>
    %28 = vector.shape_cast %27 : vector<1x1x5x16xf32> to vector<5x16xf32>
    %c0_25 = arith.constant 0 : index
    %c2 = arith.constant 2 : index
    %c0_26 = arith.constant 0 : index
    %c0_27 = arith.constant 0 : index
    %29 = vector.load %arg2[%c0_25, %c2, %c0_26, %c0_27] : memref<1x4x5x16xf32, #tpu.memory_space<vmem>>, vector<1x1x5x16xf32>
    %30 = vector.shape_cast %29 : vector<1x1x5x16xf32> to vector<5x16xf32>
    %31 = vector.extract_strided_slice %28 {offsets = [0, 0], sizes = [4, 16], strides = [1, 1]} : vector<5x16xf32> to vector<4x16xf32>
    %cst_28 = arith.constant dense<0.000000e+00> : vector<4x128xf32>
    %32 = tpu.matmul %31, %1, %cst_28 {dimension_numbers = #tpu.dot_dimension_numbers<[1], [0], [0], [1], [0, 0, 1, 1], [], []>} : vector<4x16xf32>, vector<16x128xf32>, vector<4x128xf32> -> vector<4x128xf32>
    %33 = vector.extract_strided_slice %28 {offsets = [1, 0], sizes = [4, 16], strides = [1, 1]} : vector<5x16xf32> to vector<4x16xf32>
    %cst_29 = arith.constant dense<0.000000e+00> : vector<4x128xf32>
    %34 = tpu.matmul %33, %2, %cst_29 {dimension_numbers = #tpu.dot_dimension_numbers<[1], [0], [0], [1], [0, 0, 1, 1], [], []>} : vector<4x16xf32>, vector<16x128xf32>, vector<4x128xf32> -> vector<4x128xf32>
    %35 = arith.addf %32, %34 : vector<4x128xf32>
    %36 = vector.extract_strided_slice %30 {offsets = [0, 0], sizes = [4, 16], strides = [1, 1]} : vector<5x16xf32> to vector<4x16xf32>
    %cst_30 = arith.constant dense<0.000000e+00> : vector<4x128xf32>
    %37 = tpu.matmul %36, %3, %cst_30 {dimension_numbers = #tpu.dot_dimension_numbers<[1], [0], [0], [1], [0, 0, 1, 1], [], []>} : vector<4x16xf32>, vector<16x128xf32>, vector<4x128xf32> -> vector<4x128xf32>
    %38 = arith.addf %35, %37 : vector<4x128xf32>
    %39 = vector.extract_strided_slice %30 {offsets = [1, 0], sizes = [4, 16], strides = [1, 1]} : vector<5x16xf32> to vector<4x16xf32>
    %cst_31 = arith.constant dense<0.000000e+00> : vector<4x128xf32>
    %40 = tpu.matmul %39, %4, %cst_31 {dimension_numbers = #tpu.dot_dimension_numbers<[1], [0], [0], [1], [0, 0, 1, 1], [], []>} : vector<4x16xf32>, vector<16x128xf32>, vector<4x128xf32> -> vector<4x128xf32>
    %41 = arith.addf %38, %40 : vector<4x128xf32>
    %42 = vector.broadcast %0 : vector<1x128xf32> to vector<4x128xf32>
    %43 = arith.addf %41, %42 : vector<4x128xf32>
    %cst_32 = arith.constant 0.000000e+00 : f32
    %44 = vector.broadcast %cst_32 : f32 to vector<4x128xf32>
    %45 = arith.maximumf %43, %44 : vector<4x128xf32>
    %c0_33 = arith.constant 0 : index
    %c1_34 = arith.constant 1 : index
    %c0_35 = arith.constant 0 : index
    %c0_36 = arith.constant 0 : index
    %46 = vector.load %arg6[%c0_33, %c1_34, %c0_35, %c0_36] : memref<1x4x4x128xf32, #tpu.memory_space<vmem>>, vector<1x1x4x128xf32>
    %47 = vector.shape_cast %46 : vector<1x1x4x128xf32> to vector<4x128xf32>
    %48 = vector.shape_cast %45 : vector<4x128xf32> to vector<1x1x4x128xf32>
    tpu.vector_store %arg6[%c0_33, %c1_34, %c0_35, %c0_36], %48 {strides = array<i32>} : memref<1x4x4x128xf32, #tpu.memory_space<vmem>>, vector<1x1x4x128xf32>,
    %c0_37 = arith.constant 0 : index
    %c2_38 = arith.constant 2 : index
    %c0_39 = arith.constant 0 : index
    %c0_40 = arith.constant 0 : index
    %49 = vector.load %arg2[%c0_37, %c2_38, %c0_39, %c0_40] : memref<1x4x5x16xf32, #tpu.memory_space<vmem>>, vector<1x1x5x16xf32>
    %50 = vector.shape_cast %49 : vector<1x1x5x16xf32> to vector<5x16xf32>
    %c0_41 = arith.constant 0 : index
    %c3 = arith.constant 3 : index
    %c0_42 = arith.constant 0 : index
    %c0_43 = arith.constant 0 : index
    %51 = vector.load %arg2[%c0_41, %c3, %c0_42, %c0_43] : memref<1x4x5x16xf32, #tpu.memory_space<vmem>>, vector<1x1x5x16xf32>
    %52 = vector.shape_cast %51 : vector<1x1x5x16xf32> to vector<5x16xf32>
    %53 = vector.extract_strided_slice %50 {offsets = [0, 0], sizes = [4, 16], strides = [1, 1]} : vector<5x16xf32> to vector<4x16xf32>
    %cst_44 = arith.constant dense<0.000000e+00> : vector<4x128xf32>
    %54 = tpu.matmul %53, %1, %cst_44 {dimension_numbers = #tpu.dot_dimension_numbers<[1], [0], [0], [1], [0, 0, 1, 1], [], []>} : vector<4x16xf32>, vector<16x128xf32>, vector<4x128xf32> -> vector<4x128xf32>
    %55 = vector.extract_strided_slice %50 {offsets = [1, 0], sizes = [4, 16], strides = [1, 1]} : vector<5x16xf32> to vector<4x16xf32>
    %cst_45 = arith.constant dense<0.000000e+00> : vector<4x128xf32>
    %56 = tpu.matmul %55, %2, %cst_45 {dimension_numbers = #tpu.dot_dimension_numbers<[1], [0], [0], [1], [0, 0, 1, 1], [], []>} : vector<4x16xf32>, vector<16x128xf32>, vector<4x128xf32> -> vector<4x128xf32>
    %57 = arith.addf %54, %56 : vector<4x128xf32>
    %58 = vector.extract_strided_slice %52 {offsets = [0, 0], sizes = [4, 16], strides = [1, 1]} : vector<5x16xf32> to vector<4x16xf32>
    %cst_46 = arith.constant dense<0.000000e+00> : vector<4x128xf32>
    %59 = tpu.matmul %58, %3, %cst_46 {dimension_numbers = #tpu.dot_dimension_numbers<[1], [0], [0], [1], [0, 0, 1, 1], [], []>} : vector<4x16xf32>, vector<16x128xf32>, vector<4x128xf32> -> vector<4x128xf32>
    %60 = arith.addf %57, %59 : vector<4x128xf32>
    %61 = vector.extract_strided_slice %52 {offsets = [1, 0], sizes = [4, 16], strides = [1, 1]} : vector<5x16xf32> to vector<4x16xf32>
    %cst_47 = arith.constant dense<0.000000e+00> : vector<4x128xf32>
    %62 = tpu.matmul %61, %4, %cst_47 {dimension_numbers = #tpu.dot_dimension_numbers<[1], [0], [0], [1], [0, 0, 1, 1], [], []>} : vector<4x16xf32>, vector<16x128xf32>, vector<4x128xf32> -> vector<4x128xf32>
    %63 = arith.addf %60, %62 : vector<4x128xf32>
    %64 = vector.broadcast %0 : vector<1x128xf32> to vector<4x128xf32>
    %65 = arith.addf %63, %64 : vector<4x128xf32>
    %cst_48 = arith.constant 0.000000e+00 : f32
    %66 = vector.broadcast %cst_48 : f32 to vector<4x128xf32>
    %67 = arith.maximumf %65, %66 : vector<4x128xf32>
    %c0_49 = arith.constant 0 : index
    %c2_50 = arith.constant 2 : index
    %c0_51 = arith.constant 0 : index
    %c0_52 = arith.constant 0 : index
    %68 = vector.load %arg6[%c0_49, %c2_50, %c0_51, %c0_52] : memref<1x4x4x128xf32, #tpu.memory_space<vmem>>, vector<1x1x4x128xf32>
    %69 = vector.shape_cast %68 : vector<1x1x4x128xf32> to vector<4x128xf32>
    %70 = vector.shape_cast %67 : vector<4x128xf32> to vector<1x1x4x128xf32>
    tpu.vector_store %arg6[%c0_49, %c2_50, %c0_51, %c0_52], %70 {strides = array<i32>} : memref<1x4x4x128xf32, #tpu.memory_space<vmem>>, vector<1x1x4x128xf32>,
    %c0_53 = arith.constant 0 : index
    %c3_54 = arith.constant 3 : index
    %c0_55 = arith.constant 0 : index
    %c0_56 = arith.constant 0 : index
    %71 = vector.load %arg2[%c0_53, %c3_54, %c0_55, %c0_56] : memref<1x4x5x16xf32, #tpu.memory_space<vmem>>, vector<1x1x5x16xf32>
    %72 = vector.shape_cast %71 : vector<1x1x5x16xf32> to vector<5x16xf32>
    %c0_57 = arith.constant 0 : index
    %c0_58 = arith.constant 0 : index
    %c0_59 = arith.constant 0 : index
    %c0_60 = arith.constant 0 : index
    %73 = vector.load %arg3[%c0_57, %c0_58, %c0_59, %c0_60] : memref<1x1x5x16xf32, #tpu.memory_space<vmem>>, vector<1x1x5x16xf32>
    %74 = vector.shape_cast %73 : vector<1x1x5x16xf32> to vector<5x16xf32>
    %75 = vector.extract_strided_slice %72 {offsets = [0, 0], sizes = [4, 16], strides = [1, 1]} : vector<5x16xf32> to vector<4x16xf32>
    %cst_61 = arith.constant dense<0.000000e+00> : vector<4x128xf32>
    %76 = tpu.matmul %75, %1, %cst_61 {dimension_numbers = #tpu.dot_dimension_numbers<[1], [0], [0], [1], [0, 0, 1, 1], [], []>} : vector<4x16xf32>, vector<16x128xf32>, vector<4x128xf32> -> vector<4x128xf32>
    %77 = vector.extract_strided_slice %72 {offsets = [1, 0], sizes = [4, 16], strides = [1, 1]} : vector<5x16xf32> to vector<4x16xf32>
    %cst_62 = arith.constant dense<0.000000e+00> : vector<4x128xf32>
    %78 = tpu.matmul %77, %2, %cst_62 {dimension_numbers = #tpu.dot_dimension_numbers<[1], [0], [0], [1], [0, 0, 1, 1], [], []>} : vector<4x16xf32>, vector<16x128xf32>, vector<4x128xf32> -> vector<4x128xf32>
    %79 = arith.addf %76, %78 : vector<4x128xf32>
    %80 = vector.extract_strided_slice %74 {offsets = [0, 0], sizes = [4, 16], strides = [1, 1]} : vector<5x16xf32> to vector<4x16xf32>
    %cst_63 = arith.constant dense<0.000000e+00> : vector<4x128xf32>
    %81 = tpu.matmul %80, %3, %cst_63 {dimension_numbers = #tpu.dot_dimension_numbers<[1], [0], [0], [1], [0, 0, 1, 1], [], []>} : vector<4x16xf32>, vector<16x128xf32>, vector<4x128xf32> -> vector<4x128xf32>
    %82 = arith.addf %79, %81 : vector<4x128xf32>
    %83 = vector.extract_strided_slice %74 {offsets = [1, 0], sizes = [4, 16], strides = [1, 1]} : vector<5x16xf32> to vector<4x16xf32>
    %cst_64 = arith.constant dense<0.000000e+00> : vector<4x128xf32>
    %84 = tpu.matmul %83, %4, %cst_64 {dimension_numbers = #tpu.dot_dimension_numbers<[1], [0], [0], [1], [0, 0, 1, 1], [], []>} : vector<4x16xf32>, vector<16x128xf32>, vector<4x128xf32> -> vector<4x128xf32>
    %85 = arith.addf %82, %84 : vector<4x128xf32>
    %86 = vector.broadcast %0 : vector<1x128xf32> to vector<4x128xf32>
    %87 = arith.addf %85, %86 : vector<4x128xf32>
    %cst_65 = arith.constant 0.000000e+00 : f32
    %88 = vector.broadcast %cst_65 : f32 to vector<4x128xf32>
    %89 = arith.maximumf %87, %88 : vector<4x128xf32>
    %c0_66 = arith.constant 0 : index
    %c3_67 = arith.constant 3 : index
    %c0_68 = arith.constant 0 : index
    %c0_69 = arith.constant 0 : index
    %90 = vector.load %arg6[%c0_66, %c3_67, %c0_68, %c0_69] : memref<1x4x4x128xf32, #tpu.memory_space<vmem>>, vector<1x1x4x128xf32>
    %91 = vector.shape_cast %90 : vector<1x1x4x128xf32> to vector<4x128xf32>
    %92 = vector.shape_cast %89 : vector<4x128xf32> to vector<1x1x4x128xf32>
    tpu.vector_store %arg6[%c0_66, %c3_67, %c0_68, %c0_69], %92 {strides = array<i32>} : memref<1x4x4x128xf32, #tpu.memory_space<vmem>>, vector<1x1x4x128xf32>,
    return
  }
  func.func @transform_0(%arg0: i32, %arg1: i32) -> (i32, i32, i32, i32) {
    %c0_i32 = arith.constant 0 : i32
    %c0_i32_0 = arith.constant 0 : i32
    %c0_i32_1 = arith.constant 0 : i32
    return %arg0, %arg1, %c0_i32, %c0_i32_0 : i32, i32, i32, i32
  }
  func.func @transform_1(%arg0: i32, %arg1: i32) -> (i32, i32, i32, i32) {
    %c4_i32 = arith.constant 4 : i32
    %0 = arith.muli %arg1, %c4_i32 : i32
    %c4_i32_0 = arith.constant 4 : i32
    %1 = arith.addi %0, %c4_i32_0 : i32
    %c0_i32 = arith.constant 0 : i32
    %c0_i32_1 = arith.constant 0 : i32
    %c0_i32_2 = arith.constant 0 : i32
    return %arg0, %1, %c0_i32, %c0_i32_1 : i32, i32, i32, i32
  }
  func.func @transform_2(%arg0: i32, %arg1: i32) -> (i32, i32) {
    %c0_i32 = arith.constant 0 : i32
    %c0_i32_0 = arith.constant 0 : i32
    %c0_i32_1 = arith.constant 0 : i32
    return %c0_i32, %c0_i32_0 : i32, i32
  }
  func.func @transform_3(%arg0: i32, %arg1: i32) -> (i32, i32) {
    %c0_i32 = arith.constant 0 : i32
    %c0_i32_0 = arith.constant 0 : i32
    %c0_i32_1 = arith.constant 0 : i32
    return %c0_i32, %c0_i32_0 : i32, i32
  }
  func.func @transform_4(%arg0: i32, %arg1: i32) -> (i32, i32, i32, i32) {
    %c0_i32 = arith.constant 0 : i32
    %c0_i32_0 = arith.constant 0 : i32
    %c0_i32_1 = arith.constant 0 : i32
    return %arg0, %arg1, %c0_i32, %c0_i32_0 : i32, i32, i32, i32
  }
}

module attributes {stable_mosaic.version = 11 : i64} {
  func.func @_mm_bias_kernel(%arg0: i32, %arg1: i32, %arg2: memref<8x32xf32, #tpu.memory_space<vmem>>, %arg3: memref<32x256xf32, #tpu.memory_space<vmem>>, %arg4: memref<1x256xf32, #tpu.memory_space<vmem>>, %arg5: memref<8x256xf32, #tpu.memory_space<vmem>>) attributes {dimension_semantics = [#tpu.dimension_semantics<parallel>, #tpu.dimension_semantics<parallel>], iteration_bounds = array<i64: 1, 1>, scalar_prefetch = 0 : i64, scratch_operands = 0 : i64, tpu.core_type = #tpu.core_type<tc>, window_params = [{transform_indices = @transform_0, window_bounds = array<i64: 8, 32>}, {transform_indices = @transform_1, window_bounds = array<i64: 32, 256>}, {transform_indices = @transform_2, window_bounds = array<i64: 1, 256>}, {transform_indices = @transform_3, window_bounds = array<i64: 8, 256>}]} {
    %c0 = arith.constant 0 : index
    %c0_0 = arith.constant 0 : index
    %0 = vector.load %arg2[%c0, %c0_0] : memref<8x32xf32, #tpu.memory_space<vmem>>, vector<8x32xf32>
    %c0_1 = arith.constant 0 : index
    %c0_2 = arith.constant 0 : index
    %1 = vector.load %arg3[%c0_1, %c0_2] : memref<32x256xf32, #tpu.memory_space<vmem>>, vector<32x256xf32>
    %cst = arith.constant dense<0.000000e+00> : vector<8x256xf32>
    %2 = tpu.matmul %0, %1, %cst {dimension_numbers = #tpu.dot_dimension_numbers<[1], [0], [0], [1], [0, 0, 1, 1], [], []>} : vector<8x32xf32>, vector<32x256xf32>, vector<8x256xf32> -> vector<8x256xf32>
    %c0_3 = arith.constant 0 : index
    %c0_4 = arith.constant 0 : index
    %3 = vector.load %arg4[%c0_3, %c0_4] : memref<1x256xf32, #tpu.memory_space<vmem>>, vector<1x256xf32>
    %4 = vector.broadcast %3 : vector<1x256xf32> to vector<8x256xf32>
    %5 = arith.addf %2, %4 : vector<8x256xf32>
    %c0_5 = arith.constant 0 : index
    %c0_6 = arith.constant 0 : index
    %6 = vector.load %arg5[%c0_5, %c0_6] : memref<8x256xf32, #tpu.memory_space<vmem>>, vector<8x256xf32>
    tpu.vector_store %arg5[%c0_5, %c0_6], %5 {strides = array<i32>} : memref<8x256xf32, #tpu.memory_space<vmem>>, vector<8x256xf32>,
    return
  }
  func.func @transform_0(%arg0: i32, %arg1: i32) -> (i32, i32) {
    %c0_i32 = arith.constant 0 : i32
    %c0_i32_0 = arith.constant 0 : i32
    return %arg0, %c0_i32 : i32, i32
  }
  func.func @transform_1(%arg0: i32, %arg1: i32) -> (i32, i32) {
    %c0_i32 = arith.constant 0 : i32
    %c0_i32_0 = arith.constant 0 : i32
    return %c0_i32, %arg1 : i32, i32
  }
  func.func @transform_2(%arg0: i32, %arg1: i32) -> (i32, i32) {
    %c0_i32 = arith.constant 0 : i32
    %c0_i32_0 = arith.constant 0 : i32
    return %c0_i32, %arg1 : i32, i32
  }
  func.func @transform_3(%arg0: i32, %arg1: i32) -> (i32, i32) {
    %c0_i32 = arith.constant 0 : i32
    return %arg0, %arg1 : i32, i32
  }
}

module attributes {stable_mosaic.version = 11 : i64} {
  func.func @_deconv_phase_kernel(%arg0: i32, %arg1: i32, %arg2: memref<1x8x9x8xf32, #tpu.memory_space<vmem>>, %arg3: memref<1x1x9x8xf32, #tpu.memory_space<vmem>>, %arg4: memref<32x128xf32, #tpu.memory_space<vmem>>, %arg5: memref<1x128xf32, #tpu.memory_space<vmem>>, %arg6: memref<1x8x8x128xf32, #tpu.memory_space<vmem>>) attributes {dimension_semantics = [#tpu.dimension_semantics<parallel>, #tpu.dimension_semantics<parallel>], iteration_bounds = array<i64: 2, 1>, scalar_prefetch = 0 : i64, scratch_operands = 0 : i64, tpu.core_type = #tpu.core_type<tc>, window_params = [{transform_indices = @transform_0, window_bounds = array<i64: 1, 8, 9, 8>}, {transform_indices = @transform_1, window_bounds = array<i64: 1, 1, 9, 8>}, {pipeline_mode = #tpu.pipeline_mode<synchronous>, transform_indices = @transform_2, window_bounds = array<i64: 32, 128>}, {pipeline_mode = #tpu.pipeline_mode<synchronous>, transform_indices = @transform_3, window_bounds = array<i64: 1, 128>}, {transform_indices = @transform_4, window_bounds = array<i64: 1, 8, 8, 128>}]} {
    %c0 = arith.constant 0 : index
    %c0_0 = arith.constant 0 : index
    %0 = vector.load %arg5[%c0, %c0_0] : memref<1x128xf32, #tpu.memory_space<vmem>>, vector<1x128xf32>
    %c0_1 = arith.constant 0 : index
    %c0_2 = arith.constant 0 : index
    %1 = vector.load %arg4[%c0_1, %c0_2] : memref<32x128xf32, #tpu.memory_space<vmem>>, vector<8x128xf32>
    %c8 = arith.constant 8 : index
    %c0_3 = arith.constant 0 : index
    %2 = vector.load %arg4[%c8, %c0_3] : memref<32x128xf32, #tpu.memory_space<vmem>>, vector<8x128xf32>
    %c16 = arith.constant 16 : index
    %c0_4 = arith.constant 0 : index
    %3 = vector.load %arg4[%c16, %c0_4] : memref<32x128xf32, #tpu.memory_space<vmem>>, vector<8x128xf32>
    %c24 = arith.constant 24 : index
    %c0_5 = arith.constant 0 : index
    %4 = vector.load %arg4[%c24, %c0_5] : memref<32x128xf32, #tpu.memory_space<vmem>>, vector<8x128xf32>
    %c0_6 = arith.constant 0 : index
    %c0_7 = arith.constant 0 : index
    %c0_8 = arith.constant 0 : index
    %c0_9 = arith.constant 0 : index
    %5 = vector.load %arg2[%c0_6, %c0_7, %c0_8, %c0_9] : memref<1x8x9x8xf32, #tpu.memory_space<vmem>>, vector<1x1x9x8xf32>
    %6 = vector.shape_cast %5 : vector<1x1x9x8xf32> to vector<9x8xf32>
    %c0_10 = arith.constant 0 : index
    %c1 = arith.constant 1 : index
    %c0_11 = arith.constant 0 : index
    %c0_12 = arith.constant 0 : index
    %7 = vector.load %arg2[%c0_10, %c1, %c0_11, %c0_12] : memref<1x8x9x8xf32, #tpu.memory_space<vmem>>, vector<1x1x9x8xf32>
    %8 = vector.shape_cast %7 : vector<1x1x9x8xf32> to vector<9x8xf32>
    %9 = vector.extract_strided_slice %6 {offsets = [0, 0], sizes = [8, 8], strides = [1, 1]} : vector<9x8xf32> to vector<8x8xf32>
    %cst = arith.constant dense<0.000000e+00> : vector<8x128xf32>
    %10 = tpu.matmul %9, %1, %cst {dimension_numbers = #tpu.dot_dimension_numbers<[1], [0], [0], [1], [0, 0, 1, 1], [], []>} : vector<8x8xf32>, vector<8x128xf32>, vector<8x128xf32> -> vector<8x128xf32>
    %11 = vector.extract_strided_slice %6 {offsets = [1, 0], sizes = [8, 8], strides = [1, 1]} : vector<9x8xf32> to vector<8x8xf32>
    %cst_13 = arith.constant dense<0.000000e+00> : vector<8x128xf32>
    %12 = tpu.matmul %11, %2, %cst_13 {dimension_numbers = #tpu.dot_dimension_numbers<[1], [0], [0], [1], [0, 0, 1, 1], [], []>} : vector<8x8xf32>, vector<8x128xf32>, vector<8x128xf32> -> vector<8x128xf32>
    %13 = arith.addf %10, %12 : vector<8x128xf32>
    %14 = vector.extract_strided_slice %8 {offsets = [0, 0], sizes = [8, 8], strides = [1, 1]} : vector<9x8xf32> to vector<8x8xf32>
    %cst_14 = arith.constant dense<0.000000e+00> : vector<8x128xf32>
    %15 = tpu.matmul %14, %3, %cst_14 {dimension_numbers = #tpu.dot_dimension_numbers<[1], [0], [0], [1], [0, 0, 1, 1], [], []>} : vector<8x8xf32>, vector<8x128xf32>, vector<8x128xf32> -> vector<8x128xf32>
    %16 = arith.addf %13, %15 : vector<8x128xf32>
    %17 = vector.extract_strided_slice %8 {offsets = [1, 0], sizes = [8, 8], strides = [1, 1]} : vector<9x8xf32> to vector<8x8xf32>
    %cst_15 = arith.constant dense<0.000000e+00> : vector<8x128xf32>
    %18 = tpu.matmul %17, %4, %cst_15 {dimension_numbers = #tpu.dot_dimension_numbers<[1], [0], [0], [1], [0, 0, 1, 1], [], []>} : vector<8x8xf32>, vector<8x128xf32>, vector<8x128xf32> -> vector<8x128xf32>
    %19 = arith.addf %16, %18 : vector<8x128xf32>
    %20 = vector.broadcast %0 : vector<1x128xf32> to vector<8x128xf32>
    %21 = arith.addf %19, %20 : vector<8x128xf32>
    %cst_16 = arith.constant 0.000000e+00 : f32
    %22 = vector.broadcast %cst_16 : f32 to vector<8x128xf32>
    %23 = arith.maximumf %21, %22 : vector<8x128xf32>
    %c0_17 = arith.constant 0 : index
    %c0_18 = arith.constant 0 : index
    %c0_19 = arith.constant 0 : index
    %c0_20 = arith.constant 0 : index
    %24 = vector.load %arg6[%c0_17, %c0_18, %c0_19, %c0_20] : memref<1x8x8x128xf32, #tpu.memory_space<vmem>>, vector<1x1x8x128xf32>
    %25 = vector.shape_cast %24 : vector<1x1x8x128xf32> to vector<8x128xf32>
    %26 = vector.shape_cast %23 : vector<8x128xf32> to vector<1x1x8x128xf32>
    tpu.vector_store %arg6[%c0_17, %c0_18, %c0_19, %c0_20], %26 {strides = array<i32>} : memref<1x8x8x128xf32, #tpu.memory_space<vmem>>, vector<1x1x8x128xf32>,
    %c0_21 = arith.constant 0 : index
    %c1_22 = arith.constant 1 : index
    %c0_23 = arith.constant 0 : index
    %c0_24 = arith.constant 0 : index
    %27 = vector.load %arg2[%c0_21, %c1_22, %c0_23, %c0_24] : memref<1x8x9x8xf32, #tpu.memory_space<vmem>>, vector<1x1x9x8xf32>
    %28 = vector.shape_cast %27 : vector<1x1x9x8xf32> to vector<9x8xf32>
    %c0_25 = arith.constant 0 : index
    %c2 = arith.constant 2 : index
    %c0_26 = arith.constant 0 : index
    %c0_27 = arith.constant 0 : index
    %29 = vector.load %arg2[%c0_25, %c2, %c0_26, %c0_27] : memref<1x8x9x8xf32, #tpu.memory_space<vmem>>, vector<1x1x9x8xf32>
    %30 = vector.shape_cast %29 : vector<1x1x9x8xf32> to vector<9x8xf32>
    %31 = vector.extract_strided_slice %28 {offsets = [0, 0], sizes = [8, 8], strides = [1, 1]} : vector<9x8xf32> to vector<8x8xf32>
    %cst_28 = arith.constant dense<0.000000e+00> : vector<8x128xf32>
    %32 = tpu.matmul %31, %1, %cst_28 {dimension_numbers = #tpu.dot_dimension_numbers<[1], [0], [0], [1], [0, 0, 1, 1], [], []>} : vector<8x8xf32>, vector<8x128xf32>, vector<8x128xf32> -> vector<8x128xf32>
    %33 = vector.extract_strided_slice %28 {offsets = [1, 0], sizes = [8, 8], strides = [1, 1]} : vector<9x8xf32> to vector<8x8xf32>
    %cst_29 = arith.constant dense<0.000000e+00> : vector<8x128xf32>
    %34 = tpu.matmul %33, %2, %cst_29 {dimension_numbers = #tpu.dot_dimension_numbers<[1], [0], [0], [1], [0, 0, 1, 1], [], []>} : vector<8x8xf32>, vector<8x128xf32>, vector<8x128xf32> -> vector<8x128xf32>
    %35 = arith.addf %32, %34 : vector<8x128xf32>
    %36 = vector.extract_strided_slice %30 {offsets = [0, 0], sizes = [8, 8], strides = [1, 1]} : vector<9x8xf32> to vector<8x8xf32>
    %cst_30 = arith.constant dense<0.000000e+00> : vector<8x128xf32>
    %37 = tpu.matmul %36, %3, %cst_30 {dimension_numbers = #tpu.dot_dimension_numbers<[1], [0], [0], [1], [0, 0, 1, 1], [], []>} : vector<8x8xf32>, vector<8x128xf32>, vector<8x128xf32> -> vector<8x128xf32>
    %38 = arith.addf %35, %37 : vector<8x128xf32>
    %39 = vector.extract_strided_slice %30 {offsets = [1, 0], sizes = [8, 8], strides = [1, 1]} : vector<9x8xf32> to vector<8x8xf32>
    %cst_31 = arith.constant dense<0.000000e+00> : vector<8x128xf32>
    %40 = tpu.matmul %39, %4, %cst_31 {dimension_numbers = #tpu.dot_dimension_numbers<[1], [0], [0], [1], [0, 0, 1, 1], [], []>} : vector<8x8xf32>, vector<8x128xf32>, vector<8x128xf32> -> vector<8x128xf32>
    %41 = arith.addf %38, %40 : vector<8x128xf32>
    %42 = vector.broadcast %0 : vector<1x128xf32> to vector<8x128xf32>
    %43 = arith.addf %41, %42 : vector<8x128xf32>
    %cst_32 = arith.constant 0.000000e+00 : f32
    %44 = vector.broadcast %cst_32 : f32 to vector<8x128xf32>
    %45 = arith.maximumf %43, %44 : vector<8x128xf32>
    %c0_33 = arith.constant 0 : index
    %c1_34 = arith.constant 1 : index
    %c0_35 = arith.constant 0 : index
    %c0_36 = arith.constant 0 : index
    %46 = vector.load %arg6[%c0_33, %c1_34, %c0_35, %c0_36] : memref<1x8x8x128xf32, #tpu.memory_space<vmem>>, vector<1x1x8x128xf32>
    %47 = vector.shape_cast %46 : vector<1x1x8x128xf32> to vector<8x128xf32>
    %48 = vector.shape_cast %45 : vector<8x128xf32> to vector<1x1x8x128xf32>
    tpu.vector_store %arg6[%c0_33, %c1_34, %c0_35, %c0_36], %48 {strides = array<i32>} : memref<1x8x8x128xf32, #tpu.memory_space<vmem>>, vector<1x1x8x128xf32>,
    %c0_37 = arith.constant 0 : index
    %c2_38 = arith.constant 2 : index
    %c0_39 = arith.constant 0 : index
    %c0_40 = arith.constant 0 : index
    %49 = vector.load %arg2[%c0_37, %c2_38, %c0_39, %c0_40] : memref<1x8x9x8xf32, #tpu.memory_space<vmem>>, vector<1x1x9x8xf32>
    %50 = vector.shape_cast %49 : vector<1x1x9x8xf32> to vector<9x8xf32>
    %c0_41 = arith.constant 0 : index
    %c3 = arith.constant 3 : index
    %c0_42 = arith.constant 0 : index
    %c0_43 = arith.constant 0 : index
    %51 = vector.load %arg2[%c0_41, %c3, %c0_42, %c0_43] : memref<1x8x9x8xf32, #tpu.memory_space<vmem>>, vector<1x1x9x8xf32>
    %52 = vector.shape_cast %51 : vector<1x1x9x8xf32> to vector<9x8xf32>
    %53 = vector.extract_strided_slice %50 {offsets = [0, 0], sizes = [8, 8], strides = [1, 1]} : vector<9x8xf32> to vector<8x8xf32>
    %cst_44 = arith.constant dense<0.000000e+00> : vector<8x128xf32>
    %54 = tpu.matmul %53, %1, %cst_44 {dimension_numbers = #tpu.dot_dimension_numbers<[1], [0], [0], [1], [0, 0, 1, 1], [], []>} : vector<8x8xf32>, vector<8x128xf32>, vector<8x128xf32> -> vector<8x128xf32>
    %55 = vector.extract_strided_slice %50 {offsets = [1, 0], sizes = [8, 8], strides = [1, 1]} : vector<9x8xf32> to vector<8x8xf32>
    %cst_45 = arith.constant dense<0.000000e+00> : vector<8x128xf32>
    %56 = tpu.matmul %55, %2, %cst_45 {dimension_numbers = #tpu.dot_dimension_numbers<[1], [0], [0], [1], [0, 0, 1, 1], [], []>} : vector<8x8xf32>, vector<8x128xf32>, vector<8x128xf32> -> vector<8x128xf32>
    %57 = arith.addf %54, %56 : vector<8x128xf32>
    %58 = vector.extract_strided_slice %52 {offsets = [0, 0], sizes = [8, 8], strides = [1, 1]} : vector<9x8xf32> to vector<8x8xf32>
    %cst_46 = arith.constant dense<0.000000e+00> : vector<8x128xf32>
    %59 = tpu.matmul %58, %3, %cst_46 {dimension_numbers = #tpu.dot_dimension_numbers<[1], [0], [0], [1], [0, 0, 1, 1], [], []>} : vector<8x8xf32>, vector<8x128xf32>, vector<8x128xf32> -> vector<8x128xf32>
    %60 = arith.addf %57, %59 : vector<8x128xf32>
    %61 = vector.extract_strided_slice %52 {offsets = [1, 0], sizes = [8, 8], strides = [1, 1]} : vector<9x8xf32> to vector<8x8xf32>
    %cst_47 = arith.constant dense<0.000000e+00> : vector<8x128xf32>
    %62 = tpu.matmul %61, %4, %cst_47 {dimension_numbers = #tpu.dot_dimension_numbers<[1], [0], [0], [1], [0, 0, 1, 1], [], []>} : vector<8x8xf32>, vector<8x128xf32>, vector<8x128xf32> -> vector<8x128xf32>
    %63 = arith.addf %60, %62 : vector<8x128xf32>
    %64 = vector.broadcast %0 : vector<1x128xf32> to vector<8x128xf32>
    %65 = arith.addf %63, %64 : vector<8x128xf32>
    %cst_48 = arith.constant 0.000000e+00 : f32
    %66 = vector.broadcast %cst_48 : f32 to vector<8x128xf32>
    %67 = arith.maximumf %65, %66 : vector<8x128xf32>
    %c0_49 = arith.constant 0 : index
    %c2_50 = arith.constant 2 : index
    %c0_51 = arith.constant 0 : index
    %c0_52 = arith.constant 0 : index
    %68 = vector.load %arg6[%c0_49, %c2_50, %c0_51, %c0_52] : memref<1x8x8x128xf32, #tpu.memory_space<vmem>>, vector<1x1x8x128xf32>
    %69 = vector.shape_cast %68 : vector<1x1x8x128xf32> to vector<8x128xf32>
    %70 = vector.shape_cast %67 : vector<8x128xf32> to vector<1x1x8x128xf32>
    tpu.vector_store %arg6[%c0_49, %c2_50, %c0_51, %c0_52], %70 {strides = array<i32>} : memref<1x8x8x128xf32, #tpu.memory_space<vmem>>, vector<1x1x8x128xf32>,
    %c0_53 = arith.constant 0 : index
    %c3_54 = arith.constant 3 : index
    %c0_55 = arith.constant 0 : index
    %c0_56 = arith.constant 0 : index
    %71 = vector.load %arg2[%c0_53, %c3_54, %c0_55, %c0_56] : memref<1x8x9x8xf32, #tpu.memory_space<vmem>>, vector<1x1x9x8xf32>
    %72 = vector.shape_cast %71 : vector<1x1x9x8xf32> to vector<9x8xf32>
    %c0_57 = arith.constant 0 : index
    %c4 = arith.constant 4 : index
    %c0_58 = arith.constant 0 : index
    %c0_59 = arith.constant 0 : index
    %73 = vector.load %arg2[%c0_57, %c4, %c0_58, %c0_59] : memref<1x8x9x8xf32, #tpu.memory_space<vmem>>, vector<1x1x9x8xf32>
    %74 = vector.shape_cast %73 : vector<1x1x9x8xf32> to vector<9x8xf32>
    %75 = vector.extract_strided_slice %72 {offsets = [0, 0], sizes = [8, 8], strides = [1, 1]} : vector<9x8xf32> to vector<8x8xf32>
    %cst_60 = arith.constant dense<0.000000e+00> : vector<8x128xf32>
    %76 = tpu.matmul %75, %1, %cst_60 {dimension_numbers = #tpu.dot_dimension_numbers<[1], [0], [0], [1], [0, 0, 1, 1], [], []>} : vector<8x8xf32>, vector<8x128xf32>, vector<8x128xf32> -> vector<8x128xf32>
    %77 = vector.extract_strided_slice %72 {offsets = [1, 0], sizes = [8, 8], strides = [1, 1]} : vector<9x8xf32> to vector<8x8xf32>
    %cst_61 = arith.constant dense<0.000000e+00> : vector<8x128xf32>
    %78 = tpu.matmul %77, %2, %cst_61 {dimension_numbers = #tpu.dot_dimension_numbers<[1], [0], [0], [1], [0, 0, 1, 1], [], []>} : vector<8x8xf32>, vector<8x128xf32>, vector<8x128xf32> -> vector<8x128xf32>
    %79 = arith.addf %76, %78 : vector<8x128xf32>
    %80 = vector.extract_strided_slice %74 {offsets = [0, 0], sizes = [8, 8], strides = [1, 1]} : vector<9x8xf32> to vector<8x8xf32>
    %cst_62 = arith.constant dense<0.000000e+00> : vector<8x128xf32>
    %81 = tpu.matmul %80, %3, %cst_62 {dimension_numbers = #tpu.dot_dimension_numbers<[1], [0], [0], [1], [0, 0, 1, 1], [], []>} : vector<8x8xf32>, vector<8x128xf32>, vector<8x128xf32> -> vector<8x128xf32>
    %82 = arith.addf %79, %81 : vector<8x128xf32>
    %83 = vector.extract_strided_slice %74 {offsets = [1, 0], sizes = [8, 8], strides = [1, 1]} : vector<9x8xf32> to vector<8x8xf32>
    %cst_63 = arith.constant dense<0.000000e+00> : vector<8x128xf32>
    %84 = tpu.matmul %83, %4, %cst_63 {dimension_numbers = #tpu.dot_dimension_numbers<[1], [0], [0], [1], [0, 0, 1, 1], [], []>} : vector<8x8xf32>, vector<8x128xf32>, vector<8x128xf32> -> vector<8x128xf32>
    %85 = arith.addf %82, %84 : vector<8x128xf32>
    %86 = vector.broadcast %0 : vector<1x128xf32> to vector<8x128xf32>
    %87 = arith.addf %85, %86 : vector<8x128xf32>
    %cst_64 = arith.constant 0.000000e+00 : f32
    %88 = vector.broadcast %cst_64 : f32 to vector<8x128xf32>
    %89 = arith.maximumf %87, %88 : vector<8x128xf32>
    %c0_65 = arith.constant 0 : index
    %c3_66 = arith.constant 3 : index
    %c0_67 = arith.constant 0 : index
    %c0_68 = arith.constant 0 : index
    %90 = vector.load %arg6[%c0_65, %c3_66, %c0_67, %c0_68] : memref<1x8x8x128xf32, #tpu.memory_space<vmem>>, vector<1x1x8x128xf32>
    %91 = vector.shape_cast %90 : vector<1x1x8x128xf32> to vector<8x128xf32>
    %92 = vector.shape_cast %89 : vector<8x128xf32> to vector<1x1x8x128xf32>
    tpu.vector_store %arg6[%c0_65, %c3_66, %c0_67, %c0_68], %92 {strides = array<i32>} : memref<1x8x8x128xf32, #tpu.memory_space<vmem>>, vector<1x1x8x128xf32>,
    %c0_69 = arith.constant 0 : index
    %c4_70 = arith.constant 4 : index
    %c0_71 = arith.constant 0 : index
    %c0_72 = arith.constant 0 : index
    %93 = vector.load %arg2[%c0_69, %c4_70, %c0_71, %c0_72] : memref<1x8x9x8xf32, #tpu.memory_space<vmem>>, vector<1x1x9x8xf32>
    %94 = vector.shape_cast %93 : vector<1x1x9x8xf32> to vector<9x8xf32>
    %c0_73 = arith.constant 0 : index
    %c5 = arith.constant 5 : index
    %c0_74 = arith.constant 0 : index
    %c0_75 = arith.constant 0 : index
    %95 = vector.load %arg2[%c0_73, %c5, %c0_74, %c0_75] : memref<1x8x9x8xf32, #tpu.memory_space<vmem>>, vector<1x1x9x8xf32>
    %96 = vector.shape_cast %95 : vector<1x1x9x8xf32> to vector<9x8xf32>
    %97 = vector.extract_strided_slice %94 {offsets = [0, 0], sizes = [8, 8], strides = [1, 1]} : vector<9x8xf32> to vector<8x8xf32>
    %cst_76 = arith.constant dense<0.000000e+00> : vector<8x128xf32>
    %98 = tpu.matmul %97, %1, %cst_76 {dimension_numbers = #tpu.dot_dimension_numbers<[1], [0], [0], [1], [0, 0, 1, 1], [], []>} : vector<8x8xf32>, vector<8x128xf32>, vector<8x128xf32> -> vector<8x128xf32>
    %99 = vector.extract_strided_slice %94 {offsets = [1, 0], sizes = [8, 8], strides = [1, 1]} : vector<9x8xf32> to vector<8x8xf32>
    %cst_77 = arith.constant dense<0.000000e+00> : vector<8x128xf32>
    %100 = tpu.matmul %99, %2, %cst_77 {dimension_numbers = #tpu.dot_dimension_numbers<[1], [0], [0], [1], [0, 0, 1, 1], [], []>} : vector<8x8xf32>, vector<8x128xf32>, vector<8x128xf32> -> vector<8x128xf32>
    %101 = arith.addf %98, %100 : vector<8x128xf32>
    %102 = vector.extract_strided_slice %96 {offsets = [0, 0], sizes = [8, 8], strides = [1, 1]} : vector<9x8xf32> to vector<8x8xf32>
    %cst_78 = arith.constant dense<0.000000e+00> : vector<8x128xf32>
    %103 = tpu.matmul %102, %3, %cst_78 {dimension_numbers = #tpu.dot_dimension_numbers<[1], [0], [0], [1], [0, 0, 1, 1], [], []>} : vector<8x8xf32>, vector<8x128xf32>, vector<8x128xf32> -> vector<8x128xf32>
    %104 = arith.addf %101, %103 : vector<8x128xf32>
    %105 = vector.extract_strided_slice %96 {offsets = [1, 0], sizes = [8, 8], strides = [1, 1]} : vector<9x8xf32> to vector<8x8xf32>
    %cst_79 = arith.constant dense<0.000000e+00> : vector<8x128xf32>
    %106 = tpu.matmul %105, %4, %cst_79 {dimension_numbers = #tpu.dot_dimension_numbers<[1], [0], [0], [1], [0, 0, 1, 1], [], []>} : vector<8x8xf32>, vector<8x128xf32>, vector<8x128xf32> -> vector<8x128xf32>
    %107 = arith.addf %104, %106 : vector<8x128xf32>
    %108 = vector.broadcast %0 : vector<1x128xf32> to vector<8x128xf32>
    %109 = arith.addf %107, %108 : vector<8x128xf32>
    %cst_80 = arith.constant 0.000000e+00 : f32
    %110 = vector.broadcast %cst_80 : f32 to vector<8x128xf32>
    %111 = arith.maximumf %109, %110 : vector<8x128xf32>
    %c0_81 = arith.constant 0 : index
    %c4_82 = arith.constant 4 : index
    %c0_83 = arith.constant 0 : index
    %c0_84 = arith.constant 0 : index
    %112 = vector.load %arg6[%c0_81, %c4_82, %c0_83, %c0_84] : memref<1x8x8x128xf32, #tpu.memory_space<vmem>>, vector<1x1x8x128xf32>
    %113 = vector.shape_cast %112 : vector<1x1x8x128xf32> to vector<8x128xf32>
    %114 = vector.shape_cast %111 : vector<8x128xf32> to vector<1x1x8x128xf32>
    tpu.vector_store %arg6[%c0_81, %c4_82, %c0_83, %c0_84], %114 {strides = array<i32>} : memref<1x8x8x128xf32, #tpu.memory_space<vmem>>, vector<1x1x8x128xf32>,
    %c0_85 = arith.constant 0 : index
    %c5_86 = arith.constant 5 : index
    %c0_87 = arith.constant 0 : index
    %c0_88 = arith.constant 0 : index
    %115 = vector.load %arg2[%c0_85, %c5_86, %c0_87, %c0_88] : memref<1x8x9x8xf32, #tpu.memory_space<vmem>>, vector<1x1x9x8xf32>
    %116 = vector.shape_cast %115 : vector<1x1x9x8xf32> to vector<9x8xf32>
    %c0_89 = arith.constant 0 : index
    %c6 = arith.constant 6 : index
    %c0_90 = arith.constant 0 : index
    %c0_91 = arith.constant 0 : index
    %117 = vector.load %arg2[%c0_89, %c6, %c0_90, %c0_91] : memref<1x8x9x8xf32, #tpu.memory_space<vmem>>, vector<1x1x9x8xf32>
    %118 = vector.shape_cast %117 : vector<1x1x9x8xf32> to vector<9x8xf32>
    %119 = vector.extract_strided_slice %116 {offsets = [0, 0], sizes = [8, 8], strides = [1, 1]} : vector<9x8xf32> to vector<8x8xf32>
    %cst_92 = arith.constant dense<0.000000e+00> : vector<8x128xf32>
    %120 = tpu.matmul %119, %1, %cst_92 {dimension_numbers = #tpu.dot_dimension_numbers<[1], [0], [0], [1], [0, 0, 1, 1], [], []>} : vector<8x8xf32>, vector<8x128xf32>, vector<8x128xf32> -> vector<8x128xf32>
    %121 = vector.extract_strided_slice %116 {offsets = [1, 0], sizes = [8, 8], strides = [1, 1]} : vector<9x8xf32> to vector<8x8xf32>
    %cst_93 = arith.constant dense<0.000000e+00> : vector<8x128xf32>
    %122 = tpu.matmul %121, %2, %cst_93 {dimension_numbers = #tpu.dot_dimension_numbers<[1], [0], [0], [1], [0, 0, 1, 1], [], []>} : vector<8x8xf32>, vector<8x128xf32>, vector<8x128xf32> -> vector<8x128xf32>
    %123 = arith.addf %120, %122 : vector<8x128xf32>
    %124 = vector.extract_strided_slice %118 {offsets = [0, 0], sizes = [8, 8], strides = [1, 1]} : vector<9x8xf32> to vector<8x8xf32>
    %cst_94 = arith.constant dense<0.000000e+00> : vector<8x128xf32>
    %125 = tpu.matmul %124, %3, %cst_94 {dimension_numbers = #tpu.dot_dimension_numbers<[1], [0], [0], [1], [0, 0, 1, 1], [], []>} : vector<8x8xf32>, vector<8x128xf32>, vector<8x128xf32> -> vector<8x128xf32>
    %126 = arith.addf %123, %125 : vector<8x128xf32>
    %127 = vector.extract_strided_slice %118 {offsets = [1, 0], sizes = [8, 8], strides = [1, 1]} : vector<9x8xf32> to vector<8x8xf32>
    %cst_95 = arith.constant dense<0.000000e+00> : vector<8x128xf32>
    %128 = tpu.matmul %127, %4, %cst_95 {dimension_numbers = #tpu.dot_dimension_numbers<[1], [0], [0], [1], [0, 0, 1, 1], [], []>} : vector<8x8xf32>, vector<8x128xf32>, vector<8x128xf32> -> vector<8x128xf32>
    %129 = arith.addf %126, %128 : vector<8x128xf32>
    %130 = vector.broadcast %0 : vector<1x128xf32> to vector<8x128xf32>
    %131 = arith.addf %129, %130 : vector<8x128xf32>
    %cst_96 = arith.constant 0.000000e+00 : f32
    %132 = vector.broadcast %cst_96 : f32 to vector<8x128xf32>
    %133 = arith.maximumf %131, %132 : vector<8x128xf32>
    %c0_97 = arith.constant 0 : index
    %c5_98 = arith.constant 5 : index
    %c0_99 = arith.constant 0 : index
    %c0_100 = arith.constant 0 : index
    %134 = vector.load %arg6[%c0_97, %c5_98, %c0_99, %c0_100] : memref<1x8x8x128xf32, #tpu.memory_space<vmem>>, vector<1x1x8x128xf32>
    %135 = vector.shape_cast %134 : vector<1x1x8x128xf32> to vector<8x128xf32>
    %136 = vector.shape_cast %133 : vector<8x128xf32> to vector<1x1x8x128xf32>
    tpu.vector_store %arg6[%c0_97, %c5_98, %c0_99, %c0_100], %136 {strides = array<i32>} : memref<1x8x8x128xf32, #tpu.memory_space<vmem>>, vector<1x1x8x128xf32>,
    %c0_101 = arith.constant 0 : index
    %c6_102 = arith.constant 6 : index
    %c0_103 = arith.constant 0 : index
    %c0_104 = arith.constant 0 : index
    %137 = vector.load %arg2[%c0_101, %c6_102, %c0_103, %c0_104] : memref<1x8x9x8xf32, #tpu.memory_space<vmem>>, vector<1x1x9x8xf32>
    %138 = vector.shape_cast %137 : vector<1x1x9x8xf32> to vector<9x8xf32>
    %c0_105 = arith.constant 0 : index
    %c7 = arith.constant 7 : index
    %c0_106 = arith.constant 0 : index
    %c0_107 = arith.constant 0 : index
    %139 = vector.load %arg2[%c0_105, %c7, %c0_106, %c0_107] : memref<1x8x9x8xf32, #tpu.memory_space<vmem>>, vector<1x1x9x8xf32>
    %140 = vector.shape_cast %139 : vector<1x1x9x8xf32> to vector<9x8xf32>
    %141 = vector.extract_strided_slice %138 {offsets = [0, 0], sizes = [8, 8], strides = [1, 1]} : vector<9x8xf32> to vector<8x8xf32>
    %cst_108 = arith.constant dense<0.000000e+00> : vector<8x128xf32>
    %142 = tpu.matmul %141, %1, %cst_108 {dimension_numbers = #tpu.dot_dimension_numbers<[1], [0], [0], [1], [0, 0, 1, 1], [], []>} : vector<8x8xf32>, vector<8x128xf32>, vector<8x128xf32> -> vector<8x128xf32>
    %143 = vector.extract_strided_slice %138 {offsets = [1, 0], sizes = [8, 8], strides = [1, 1]} : vector<9x8xf32> to vector<8x8xf32>
    %cst_109 = arith.constant dense<0.000000e+00> : vector<8x128xf32>
    %144 = tpu.matmul %143, %2, %cst_109 {dimension_numbers = #tpu.dot_dimension_numbers<[1], [0], [0], [1], [0, 0, 1, 1], [], []>} : vector<8x8xf32>, vector<8x128xf32>, vector<8x128xf32> -> vector<8x128xf32>
    %145 = arith.addf %142, %144 : vector<8x128xf32>
    %146 = vector.extract_strided_slice %140 {offsets = [0, 0], sizes = [8, 8], strides = [1, 1]} : vector<9x8xf32> to vector<8x8xf32>
    %cst_110 = arith.constant dense<0.000000e+00> : vector<8x128xf32>
    %147 = tpu.matmul %146, %3, %cst_110 {dimension_numbers = #tpu.dot_dimension_numbers<[1], [0], [0], [1], [0, 0, 1, 1], [], []>} : vector<8x8xf32>, vector<8x128xf32>, vector<8x128xf32> -> vector<8x128xf32>
    %148 = arith.addf %145, %147 : vector<8x128xf32>
    %149 = vector.extract_strided_slice %140 {offsets = [1, 0], sizes = [8, 8], strides = [1, 1]} : vector<9x8xf32> to vector<8x8xf32>
    %cst_111 = arith.constant dense<0.000000e+00> : vector<8x128xf32>
    %150 = tpu.matmul %149, %4, %cst_111 {dimension_numbers = #tpu.dot_dimension_numbers<[1], [0], [0], [1], [0, 0, 1, 1], [], []>} : vector<8x8xf32>, vector<8x128xf32>, vector<8x128xf32> -> vector<8x128xf32>
    %151 = arith.addf %148, %150 : vector<8x128xf32>
    %152 = vector.broadcast %0 : vector<1x128xf32> to vector<8x128xf32>
    %153 = arith.addf %151, %152 : vector<8x128xf32>
    %cst_112 = arith.constant 0.000000e+00 : f32
    %154 = vector.broadcast %cst_112 : f32 to vector<8x128xf32>
    %155 = arith.maximumf %153, %154 : vector<8x128xf32>
    %c0_113 = arith.constant 0 : index
    %c6_114 = arith.constant 6 : index
    %c0_115 = arith.constant 0 : index
    %c0_116 = arith.constant 0 : index
    %156 = vector.load %arg6[%c0_113, %c6_114, %c0_115, %c0_116] : memref<1x8x8x128xf32, #tpu.memory_space<vmem>>, vector<1x1x8x128xf32>
    %157 = vector.shape_cast %156 : vector<1x1x8x128xf32> to vector<8x128xf32>
    %158 = vector.shape_cast %155 : vector<8x128xf32> to vector<1x1x8x128xf32>
    tpu.vector_store %arg6[%c0_113, %c6_114, %c0_115, %c0_116], %158 {strides = array<i32>} : memref<1x8x8x128xf32, #tpu.memory_space<vmem>>, vector<1x1x8x128xf32>,
    %c0_117 = arith.constant 0 : index
    %c7_118 = arith.constant 7 : index
    %c0_119 = arith.constant 0 : index
    %c0_120 = arith.constant 0 : index
    %159 = vector.load %arg2[%c0_117, %c7_118, %c0_119, %c0_120] : memref<1x8x9x8xf32, #tpu.memory_space<vmem>>, vector<1x1x9x8xf32>
    %160 = vector.shape_cast %159 : vector<1x1x9x8xf32> to vector<9x8xf32>
    %c0_121 = arith.constant 0 : index
    %c0_122 = arith.constant 0 : index
    %c0_123 = arith.constant 0 : index
    %c0_124 = arith.constant 0 : index
    %161 = vector.load %arg3[%c0_121, %c0_122, %c0_123, %c0_124] : memref<1x1x9x8xf32, #tpu.memory_space<vmem>>, vector<1x1x9x8xf32>
    %162 = vector.shape_cast %161 : vector<1x1x9x8xf32> to vector<9x8xf32>
    %163 = vector.extract_strided_slice %160 {offsets = [0, 0], sizes = [8, 8], strides = [1, 1]} : vector<9x8xf32> to vector<8x8xf32>
    %cst_125 = arith.constant dense<0.000000e+00> : vector<8x128xf32>
    %164 = tpu.matmul %163, %1, %cst_125 {dimension_numbers = #tpu.dot_dimension_numbers<[1], [0], [0], [1], [0, 0, 1, 1], [], []>} : vector<8x8xf32>, vector<8x128xf32>, vector<8x128xf32> -> vector<8x128xf32>
    %165 = vector.extract_strided_slice %160 {offsets = [1, 0], sizes = [8, 8], strides = [1, 1]} : vector<9x8xf32> to vector<8x8xf32>
    %cst_126 = arith.constant dense<0.000000e+00> : vector<8x128xf32>
    %166 = tpu.matmul %165, %2, %cst_126 {dimension_numbers = #tpu.dot_dimension_numbers<[1], [0], [0], [1], [0, 0, 1, 1], [], []>} : vector<8x8xf32>, vector<8x128xf32>, vector<8x128xf32> -> vector<8x128xf32>
    %167 = arith.addf %164, %166 : vector<8x128xf32>
    %168 = vector.extract_strided_slice %162 {offsets = [0, 0], sizes = [8, 8], strides = [1, 1]} : vector<9x8xf32> to vector<8x8xf32>
    %cst_127 = arith.constant dense<0.000000e+00> : vector<8x128xf32>
    %169 = tpu.matmul %168, %3, %cst_127 {dimension_numbers = #tpu.dot_dimension_numbers<[1], [0], [0], [1], [0, 0, 1, 1], [], []>} : vector<8x8xf32>, vector<8x128xf32>, vector<8x128xf32> -> vector<8x128xf32>
    %170 = arith.addf %167, %169 : vector<8x128xf32>
    %171 = vector.extract_strided_slice %162 {offsets = [1, 0], sizes = [8, 8], strides = [1, 1]} : vector<9x8xf32> to vector<8x8xf32>
    %cst_128 = arith.constant dense<0.000000e+00> : vector<8x128xf32>
    %172 = tpu.matmul %171, %4, %cst_128 {dimension_numbers = #tpu.dot_dimension_numbers<[1], [0], [0], [1], [0, 0, 1, 1], [], []>} : vector<8x8xf32>, vector<8x128xf32>, vector<8x128xf32> -> vector<8x128xf32>
    %173 = arith.addf %170, %172 : vector<8x128xf32>
    %174 = vector.broadcast %0 : vector<1x128xf32> to vector<8x128xf32>
    %175 = arith.addf %173, %174 : vector<8x128xf32>
    %cst_129 = arith.constant 0.000000e+00 : f32
    %176 = vector.broadcast %cst_129 : f32 to vector<8x128xf32>
    %177 = arith.maximumf %175, %176 : vector<8x128xf32>
    %c0_130 = arith.constant 0 : index
    %c7_131 = arith.constant 7 : index
    %c0_132 = arith.constant 0 : index
    %c0_133 = arith.constant 0 : index
    %178 = vector.load %arg6[%c0_130, %c7_131, %c0_132, %c0_133] : memref<1x8x8x128xf32, #tpu.memory_space<vmem>>, vector<1x1x8x128xf32>
    %179 = vector.shape_cast %178 : vector<1x1x8x128xf32> to vector<8x128xf32>
    %180 = vector.shape_cast %177 : vector<8x128xf32> to vector<1x1x8x128xf32>
    tpu.vector_store %arg6[%c0_130, %c7_131, %c0_132, %c0_133], %180 {strides = array<i32>} : memref<1x8x8x128xf32, #tpu.memory_space<vmem>>, vector<1x1x8x128xf32>,
    return
  }
  func.func @transform_0(%arg0: i32, %arg1: i32) -> (i32, i32, i32, i32) {
    %c0_i32 = arith.constant 0 : i32
    %c0_i32_0 = arith.constant 0 : i32
    %c0_i32_1 = arith.constant 0 : i32
    return %arg0, %arg1, %c0_i32, %c0_i32_0 : i32, i32, i32, i32
  }
  func.func @transform_1(%arg0: i32, %arg1: i32) -> (i32, i32, i32, i32) {
    %c8_i32 = arith.constant 8 : i32
    %0 = arith.muli %arg1, %c8_i32 : i32
    %c8_i32_0 = arith.constant 8 : i32
    %1 = arith.addi %0, %c8_i32_0 : i32
    %c0_i32 = arith.constant 0 : i32
    %c0_i32_1 = arith.constant 0 : i32
    %c0_i32_2 = arith.constant 0 : i32
    return %arg0, %1, %c0_i32, %c0_i32_1 : i32, i32, i32, i32
  }
  func.func @transform_2(%arg0: i32, %arg1: i32) -> (i32, i32) {
    %c0_i32 = arith.constant 0 : i32
    %c0_i32_0 = arith.constant 0 : i32
    %c0_i32_1 = arith.constant 0 : i32
    return %c0_i32, %c0_i32_0 : i32, i32
  }
  func.func @transform_3(%arg0: i32, %arg1: i32) -> (i32, i32) {
    %c0_i32 = arith.constant 0 : i32
    %c0_i32_0 = arith.constant 0 : i32
    %c0_i32_1 = arith.constant 0 : i32
    return %c0_i32, %c0_i32_0 : i32, i32
  }
  func.func @transform_4(%arg0: i32, %arg1: i32) -> (i32, i32, i32, i32) {
    %c0_i32 = arith.constant 0 : i32
    %c0_i32_0 = arith.constant 0 : i32
    %c0_i32_1 = arith.constant 0 : i32
    return %arg0, %arg1, %c0_i32, %c0_i32_0 : i32, i32, i32, i32
  }
}

</mosaic_0001>

<llo_original>
// kernel: _lambda_.3
$region0: #{_lambda_.3}
  #allocation0 [shape = 'u32[]', space=smem, size = 0x4, offset = 0x4, fixed_abs, tag = 'smem constant byte address 0x4 - core index']
  #allocation1 [shape = 'u32[144,128]{1,0:T(1,128)}', space=vmem, size = 0x12000, scoped, tag = 'internal scratch']
  %s0 = inlined_call_operand.vmem [shape: f32[8,32], index: 0, kind: input, shape index: {}]
  %s1 = inlined_call_operand.hbm [shape: f32[32,256], index: 1, kind: input, shape index: {}]
  %s2 = inlined_call_operand.vmem [shape: f32[1,256], index: 2, kind: input, shape index: {}]
  %s3 = inlined_call_operand.vmem [shape: f32[8,256], index: 3, kind: output, shape index: {}]
  %s4 = sld [smem:[#allocation0]]
  $region26: #{_lambda_.3} parent=0
    _
  %s6 = ssub.s32 1, %s4
  %s7 = scalar_select 0, %s6, %s4
  $region1: #{_lambda_.3} parent=0
    #allocation2 [shape = 'u8[32768]{0}', space=vmem, size = 0x8000, scoped, tag = 'input window, operand 1, single buffered']
    #allocation3 [shape = 's32[1]{0}', space=sflag, size = 0x4, scoped, tag = 'scoped memory for _lambda_.3']
    %8 = vsyncpa [#allocation3], 0
    // Predicated region
    $region2: #{_lambda_.3} parent=1 // pred_check
      _
    $region3: #{_lambda_.3} parent=1 // pred_check_branch
      %10 = sbr.rel (0) target = $region5
    $region4: #{_lambda_.3} parent=1 // pred_region
      _
    $region5: #{_lambda_.3} parent=1 // pred_fallthru
      _
    // Predicated region
    $region6: #{_lambda_.3} parent=1 // pred_check
      _
    $region7: #{_lambda_.3} parent=1 // pred_check_branch
      %12 = sbr.rel (0) target = $region9
    $region8: #{_lambda_.3} parent=1 // pred_region
      %s14 = ssub.s32 1024, 1024
      %15 = vsyncadd [#allocation3], %s14
      %s16 = sshll.u32 [#allocation2], 4
      %s17 = int_to_ptr.vmem [resolvable:$true] %s16
      %22 = dma.hbm_to_vmem [thread:$0]  %s1, 1024, %s17, [#allocation3], 256, 256, 16
    $region9: #{_lambda_.3} parent=1 // pred_fallthru
      _
    // Predicated region
    $region10: #{_lambda_.3} parent=1 // pred_check
      _
    $region11: #{_lambda_.3} parent=1 // pred_check_branch
      %24 = sbr.rel (0) target = $region13
    $region12: #{_lambda_.3} parent=1 // pred_region
      _
    $region13: #{_lambda_.3} parent=1 // pred_fallthru
      _
    // Predicated region
    $region14: #{_lambda_.3} parent=1 // pred_check
      _
    $region15: #{_lambda_.3} parent=1 // pred_check_branch
      %26 = sbr.rel (0) target = $region17
    $region16: #{_lambda_.3} parent=1 // pred_region
      %27 = dma.done [#allocation3], 1024
    $region17: #{_lambda_.3} parent=1 // pred_fallthru
      _
    %v28 = vld [vmem:[%s0] sm:$0xff]
    %v29 = vld [vmem:[#allocation2] sm:$0xff]
    %v30 = vld [vmem:[#allocation2 + $0x8] sm:$0xff]
    %v31 = vld [vmem:[#allocation2 + $0x10] sm:$0xff]
    %v32 = vld [vmem:[#allocation2 + $0x18] sm:$0xff]
    %v33 = vld [vmem:[#allocation2 + $0x20] sm:$0xff]
    %v34 = vld [vmem:[#allocation2 + $0x28] sm:$0xff]
    %v35 = vld [vmem:[#allocation2 + $0x30] sm:$0xff]
    %v36 = vld [vmem:[#allocation2 + $0x38] sm:$0xff]
    %v37 = vld [vmem:[%s2] sm:$0x3]
    %v39 = vlaneseq
    %v40 = vshrl.u32 %v39, 7
    %v41 = vsub.s32 0, %v40
    %v42 = vrot.slane %v37, %v41
    %v43 = vlaneseq
    %v44 = vshrl.u32 %v43, 7
    %v45 = vsub.s32 1, %v44
    %v46 = vrot.slane %v37, %v45
    %vm49 = vcmask 261120
    %v51 = vsel %vm49, %v28, 0
    %53 = vmatprep.subr.mxu0 0.0
    %54 = vmatpush1.msra.mxu0 0.0
    %55 = vmatprep.subr.mxu0 0.0
    %56 = vmatpush1.msra.mxu0 0.0
    %57 = vmatprep.subr.mxu0 0.0
    %58 = vmatpush1.msra.mxu0 0.0
    %59 = vmatprep.subr.mxu0 0.0
    %60 = vmatpush1.msra.mxu0 0.0
    %61 = vmatprep.subr.mxu0 0.0
    %62 = vmatpush1.msra.mxu0 0.0
    %63 = vmatprep.subr.mxu0 0.0
    %64 = vmatpush1.msra.mxu0 0.0
    %65 = vmatprep.subr.mxu0 0.0
    %66 = vmatpush1.msra.mxu0 0.0
    %67 = vmatprep.subr.mxu0 0.0
    %68 = vmatpush1.msra.mxu0 0.0
    %69 = vmatprep.subr.mxu0 0.0
    %70 = vmatpush1.msra.mxu0 0.0
    %71 = vmatprep.subr.mxu0 0.0
    %72 = vmatpush1.msra.mxu0 0.0
    %73 = vmatprep.subr.mxu0 0.0
    %74 = vmatpush1.msra.mxu0 0.0
    %75 = vmatprep.subr.mxu0 0.0
    %76 = vmatpush1.msra.mxu0 0.0
    %77 = vmatprep.subr.mxu0 %v36
    %78 = vmatpush1.msra.mxu0 %v35
    %79 = vmatprep.subr.mxu0 %v34
    %80 = vmatpush1.msra.mxu0 %v33
    %81 = vmatprep.subr.mxu0 %v32
    %82 = vmatpush1.msra.mxu0 %v31
    %83 = vmatprep.subr.mxu0 %v30
    %84 = vmatpush1.msra.mxu0 %v29
    %85 = vmatprep.subr.mxu0 0.0
    %86 = vmatpush2.msra.mxu0 0.0
    %87 = vmatprep.subr.mxu0 0.0
    %88 = vmatpush2.msra.mxu0 0.0
    %89 = vmatprep.subr.mxu0 0.0
    %90 = vmatpush2.msra.mxu0 0.0
    %91 = vmatprep.subr.mxu0 0.0
    %92 = vmatpush2.msra.mxu0 0.0
    %93 = vmatprep.subr.mxu0 0.0
    %94 = vmatpush2.msra.mxu0 0.0
    %95 = vmatprep.subr.mxu0 0.0
    %96 = vmatpush2.msra.mxu0 0.0
    %97 = vmatprep.subr.mxu0 0.0
    %98 = vmatpush2.msra.mxu0 0.0
    %99 = vmatprep.subr.mxu0 0.0
    %100 = vmatpush2.msra.mxu0 0.0
    %101 = vmatprep.subr.mxu0 0.0
    %102 = vmatpush2.msra.mxu0 0.0
    %103 = vmatprep.subr.mxu0 0.0
    %104 = vmatpush2.msra.mxu0 0.0
    %105 = vmatprep.subr.mxu0 0.0
    %106 = vmatpush2.msra.mxu0 0.0
    %107 = vmatprep.subr.mxu0 0.0
    %108 = vmatpush2.msra.mxu0 0.0
    %109 = vmatprep.subr.mxu0 0.0
    %110 = vmatpush2.msra.mxu0 0.0
    %111 = vmatprep.subr.mxu0 0.0
    %112 = vmatpush2.msra.mxu0 0.0
    %113 = vmatprep.subr.mxu0 0.0
    %114 = vmatpush2.msra.mxu0 0.0
    %115 = vmatprep.subr.mxu0 0.0
    %116 = vmatpush2.msra.mxu0 0.0
    %117 = vmatprep.mubr.f32.mxu0 0.0
    %118 = vmatmul.mubr.f32.gmra.mxu0 %v51
    %v119 = vpop.f32.mrf.mxu0
    %v120 = vadd.f32 %v42, %v119
    %v121 = vpop.f32.mrf.mxu0
    %v122 = vadd.f32 %v46, %v121
    %123 = vdwg.mxu0
    %124 = vst [vmem:[%s3] sm:$0xff] %v120
    %125 = vst [vmem:[%s3 + $0x8] sm:$0xff] %v122
    // Predicated region
    $region18: #{_lambda_.3} parent=1 // pred_check
      _
    $region19: #{_lambda_.3} parent=1 // pred_check_branch
      %127 = sbr.rel (0) target = $region21
    $region20: #{_lambda_.3} parent=1 // pred_region
      _
    $region21: #{_lambda_.3} parent=1 // pred_fallthru
      _
    // Predicated region
    $region22: #{_lambda_.3} parent=1 // pred_check
      _
    $region23: #{_lambda_.3} parent=1 // pred_check_branch
      %129 = sbr.rel (0) target = $region25
    $region24: #{_lambda_.3} parent=1 // pred_region
      _
    $region25: #{_lambda_.3} parent=1 // pred_fallthru
      _
    %130 = vsyncpa [#allocation3], 1

// kernel: _lambda_.4
$region0: #{_lambda_.4}
  #allocation0 [shape = 'u32[]', space=smem, size = 0x4, offset = 0x4, fixed_abs, tag = 'smem constant byte address 0x4 - core index']
  #allocation1 [shape = 'u32[144,128]{1,0:T(1,128)}', space=vmem, size = 0x12000, scoped, tag = 'internal scratch']
  %s0 = inlined_call_operand.vmem [shape: f32[2,8,5,16], index: 0, kind: input, shape index: {}, may-alias: {0,1}]
  %s1 = inlined_call_operand.vmem [shape: f32[2,8,5,16], index: 1, kind: input, shape index: {}, may-alias: {0,1}]
  %s2 = inlined_call_operand.vmem [shape: f32[64,128], index: 2, kind: input, shape index: {}]
  %s3 = inlined_call_operand.vmem [shape: f32[1,128], index: 3, kind: input, shape index: {}]
  %s4 = inlined_call_operand.vmem [shape: f32[2,4,4,128], index: 4, kind: output, shape index: {}]
  %s5 = sld [smem:[#allocation0]]
  $region49: #{_lambda_.4} parent=0
    _
  %s7 = ssub.s32 1, %s5
  %s8 = scalar_select 0, %s7, %s5
  loop: start=0, step=1, limit=4
  $region2: #{_lambda_.4} parent=0 // loop_pre_header
    _
  $region3: #{_lambda_.4} parent=0 // loop_header
    %s10 = sphi 0, %s14
    %p11 = scmp.ge.s32.totalorder %s10, 4
    %s17 = sphi 0, %s29
    %s18 = sphi 0, %s25
    %s19 = sphi 0, %s17
    %s20 = sphi 0, %s18
    %s21 = sphi 0, %s19
    %s22 = sphi 0, %s20
    %s34 = sphi 0, %s36
    %s37 = sphi 0, %s34
    %s38 = sphi 0, %s37
    %s54 = sphi 0, %s38
    %s66 = sphi 0, %s68
    %s69 = sphi 0, %s66
    %s70 = sphi 0, %s69
    %s86 = sphi 0, %s70
    %s90 = sphi 0, %s90
    %s92 = sphi 0, %s90
    %s93 = sphi 0, %s92
    %s107 = sphi 0, %s93
    %s111 = sphi 0, %s111
    %s113 = sphi 0, %s111
    %s114 = sphi 0, %s113
    %s128 = sphi 0, %s114
    %s136 = sphi 0, %s138
    %s139 = sphi 0, %s136
    %s140 = sphi 0, %s139
    %s156 = sphi 0, %s140
  $region4: #{_lambda_.4} parent=0 // loop_header_branch
    %13 = sbr.rel (%p11) target = $region8
  $region5: #{_lambda_.4} parent=0 // loop_body
    %s15 = ssub.s32 %s10, 1
    %s16 = ssub.s32 %s10, 2
    %s23 = sadd.s32 1, %s18
    %p24 = scmp.ge.s32.totalorder %s23, 1
    %s25 = scalar_select %p24, 0, %s23
    %s26 = sadd.s32 1, %s17
    %s27 = scalar_select %p24, %s26, %s17
    %p28 = scmp.ge.s32.totalorder %s27, 2
    %s29 = scalar_select %p28, 0, %s27
    %s30 = ssub.s32 %s17, %s29
    %s31 = ssub.s32 %s18, %s25
    %s32 = sor.u32 %s30, %s31
    %p33 = scmp.eq.s32.totalorder %s32, 0
    %s35 = sadd.s32 %s34, 1
    %s36 = scalar_select %p33, %s34, %s35
    %p39 = pneg %p33
    %p40 = scmp.eq.s32.totalorder %s10, 1
    %p41 = por %p39, %p40
    %p42 = scmp.ne.s32.totalorder %s34, %s37
    %p43 = scmp.eq.s32.totalorder %s10, 0
    %p44 = por %p42, %p43
    %p45 = scmp.ne.s32.totalorder %s34, %s37
    %p46 = scmp.eq.s32.totalorder %s15, 1
    %p47 = por %p45, %p46
    %p48 = scmp.ne.s32.totalorder %s37, %s38
    %p49 = scmp.eq.s32.totalorder %s15, 0
    %p50 = por %p48, %p49
    %p51 = scmp.ne.s32.totalorder %s37, %s38
    %p52 = scmp.eq.s32.totalorder %s16, 1
    %p53 = por %p51, %p52
    %p55 = scmp.ne.s32.totalorder %s38, %s54
    %p56 = scmp.eq.s32.totalorder %s16, 0
    %p57 = por %p55, %p56
    %s58 = smul.u32 %s18, 4
    %s59 = sadd.s32 %s58, 4
    %s60 = smul.u32 %s25, 4
    %s61 = sadd.s32 %s60, 4
    %s62 = ssub.s32 %s17, %s29
    %s63 = ssub.s32 %s59, %s61
    %s64 = sor.u32 %s62, %s63
    %p65 = scmp.eq.s32.totalorder %s64, 0
    %s67 = sadd.s32 %s66, 1
    %s68 = scalar_select %p65, %s66, %s67
    %p71 = pneg %p65
    %p72 = scmp.eq.s32.totalorder %s10, 1
    %p73 = por %p71, %p72
    %p74 = scmp.ne.s32.totalorder %s66, %s69
    %p75 = scmp.eq.s32.totalorder %s10, 0
    %p76 = por %p74, %p75
    %p77 = scmp.ne.s32.totalorder %s66, %s69
    %p78 = scmp.eq.s32.totalorder %s15, 1
    %p79 = por %p77, %p78
    %p80 = scmp.ne.s32.totalorder %s69, %s70
    %p81 = scmp.eq.s32.totalorder %s15, 0
    %p82 = por %p80, %p81
    %p83 = scmp.ne.s32.totalorder %s69, %s70
    %p84 = scmp.eq.s32.totalorder %s16, 1
    %p85 = por %p83, %p84
    %p87 = scmp.ne.s32.totalorder %s70, %s86
    %p88 = scmp.eq.s32.totalorder %s16, 0
    %p89 = por %p87, %p88
    %s91 = sadd.s32 %s90, 1
    %p94 = scmp.eq.s32.totalorder %s10, 1
    %p95 = scmp.ne.s32.totalorder %s90, %s92
    %p96 = scmp.eq.s32.totalorder %s10, 0
    %p97 = por %p95, %p96
    %p98 = scmp.ne.s32.totalorder %s90, %s92
    %p99 = scmp.eq.s32.totalorder %s15, 1
    %p100 = por %p98, %p99
    %p101 = scmp.ne.s32.totalorder %s92, %s93
    %p102 = scmp.eq.s32.totalorder %s15, 0
    %p103 = por %p101, %p102
    %p104 = scmp.ne.s32.totalorder %s92, %s93
    %p105 = scmp.eq.s32.totalorder %s16, 1
    %p106 = por %p104, %p105
    %p108 = scmp.ne.s32.totalorder %s93, %s107
    %p109 = scmp.eq.s32.totalorder %s16, 0
    %p110 = por %p108, %p109
    %s112 = sadd.s32 %s111, 1
    %p115 = scmp.eq.s32.totalorder %s10, 1
    %p116 = scmp.ne.s32.totalorder %s111, %s113
    %p117 = scmp.eq.s32.totalorder %s10, 0
    %p118 = por %p116, %p117
    %p119 = scmp.ne.s32.totalorder %s111, %s113
    %p120 = scmp.eq.s32.totalorder %s15, 1
    %p121 = por %p119, %p120
    %p122 = scmp.ne.s32.totalorder %s113, %s114
    %p123 = scmp.eq.s32.totalorder %s15, 0
    %p124 = por %p122, %p123
    %p125 = scmp.ne.s32.totalorder %s113, %s114
    %p126 = scmp.eq.s32.totalorder %s16, 1
    %p127 = por %p125, %p126
    %p129 = scmp.ne.s32.totalorder %s114, %s128
    %p130 = scmp.eq.s32.totalorder %s16, 0
    %p131 = por %p129, %p130
    %s132 = ssub.s32 %s17, %s29
    %s133 = ssub.s32 %s18, %s25
    %s134 = sor.u32 %s132, %s133
    %p135 = scmp.eq.s32.totalorder %s134, 0
    %s137 = sadd.s32 %s136, 1
    %s138 = scalar_select %p135, %s136, %s137
    %p141 = pneg %p135
    %p142 = scmp.eq.s32.totalorder %s10, 1
    %p143 = por %p141, %p142
    %p144 = scmp.ne.s32.totalorder %s136, %s139
    %p145 = scmp.eq.s32.totalorder %s10, 0
    %p146 = por %p144, %p145
    %p147 = scmp.ne.s32.totalorder %s136, %s139
    %p148 = scmp.eq.s32.totalorder %s15, 1
    %p149 = por %p147, %p148
    %p150 = scmp.ne.s32.totalorder %s139, %s140
    %p151 = scmp.eq.s32.totalorder %s15, 0
    %p152 = por %p150, %p151
    %p153 = scmp.ne.s32.totalorder %s139, %s140
    %p154 = scmp.eq.s32.totalorder %s16, 1
    %p155 = por %p153, %p154
    %p157 = scmp.ne.s32.totalorder %s140, %s156
    %p158 = scmp.eq.s32.totalorder %s16, 0
    %p159 = por %p157, %p158
    %p160 = scmp.le.s32.totalorder 1, %s10
    %p161 = scmp.lt.s32.totalorder %s10, 3
    %p162 = pnand %p160, %p161
    %p163 = pneg %p162
    // Predicated region
    $region9: #{_lambda_.4} parent=5 // pred_check
      _
    $region10: #{_lambda_.4} parent=5 // pred_check_branch
      %165 = sbr.rel (%p162) target = $region12
    $region11: #{_lambda_.4} parent=5 // pred_region
      %s166 = ssub.s32 %s10, 1
      // Predicated region
      $region13: #{_lambda_.4} parent=11 // pred_check
        %p167 = pneg %p103
      $region14: #{_lambda_.4} parent=11 // pred_check_branch
        %169 = sbr.rel (%p167) target = $region16
      $region15: #{_lambda_.4} parent=11 // pred_region
        _
      $region16: #{_lambda_.4} parent=11 // pred_fallthru
        _
      // Predicated region
      $region17: #{_lambda_.4} parent=11 // pred_check
        %p170 = pneg %p124
      $region18: #{_lambda_.4} parent=11 // pred_check_branch
        %172 = sbr.rel (%p170) target = $region20
      $region19: #{_lambda_.4} parent=11 // pred_region
        _
      $region20: #{_lambda_.4} parent=11 // pred_fallthru
        _
    $region12: #{_lambda_.4} parent=5 // pred_fallthru
      _
    %p173 = scmp.lt.s32.totalorder %s10, 2
    // Predicated region
    $region21: #{_lambda_.4} parent=5 // pred_check
      %p174 = pneg %p173
    $region22: #{_lambda_.4} parent=5 // pred_check_branch
      %176 = sbr.rel (%p174) target = $region24
    $region23: #{_lambda_.4} parent=5 // pred_region
      // Predicated region
      $region25: #{_lambda_.4} parent=23 // pred_check
        %p177 = pneg %p44
      $region26: #{_lambda_.4} parent=23 // pred_check_branch
        %179 = sbr.rel (%p177) target = $region28
      $region27: #{_lambda_.4} parent=23 // pred_region
        %s180 = smul.u32 4, %s18
        %p181 = scmp.lt.s32.totalorder %s17, 1
        %s182 = scalar_select %p181, %s17, 1
        %p183 = scmp.lt.s32.totalorder %s180, 7
        %s184 = scalar_select %p183, %s180, 7
        %s185 = smul.addr %s182, 8
        %s186 = sadd.s32 %s184, %s185
        %s187 = smul.addr %s186, 8
        %s188 = scalar_lea.vmem %s0, %s187
        %s189 = smul.u32 4, %s18
      $region28: #{_lambda_.4} parent=23 // pred_fallthru
        _
      // Predicated region
      $region29: #{_lambda_.4} parent=23 // pred_check
        %p190 = pneg %p76
      $region30: #{_lambda_.4} parent=23 // pred_check_branch
        %192 = sbr.rel (%p190) target = $region32
      $region31: #{_lambda_.4} parent=23 // pred_region
        %s193 = smul.u32 %s18, 4
        %s194 = sadd.s32 %s193, 4
        %p195 = scmp.lt.s32.totalorder %s17, 1
        %s196 = scalar_select %p195, %s17, 1
        %p197 = scmp.lt.s32.totalorder %s194, 7
        %s198 = scalar_select %p197, %s194, 7
        %s199 = smul.addr %s196, 8
        %s200 = sadd.s32 %s198, %s199
        %s201 = smul.addr %s200, 8
        %s202 = scalar_lea.vmem %s1, %s201
        %s203 = smul.u32 %s18, 4
        %s204 = sadd.s32 %s203, 4
      $region32: #{_lambda_.4} parent=23 // pred_fallthru
        _
    $region24: #{_lambda_.4} parent=5 // pred_fallthru
      _
    %p205 = scmp.le.s32.totalorder 1, %s10
    %p206 = scmp.lt.s32.totalorder %s10, 3
    %p207 = pnand %p205, %p206
    %p208 = pneg %p207
    // Predicated region
    $region33: #{_lambda_.4} parent=5 // pred_check
      _
    $region34: #{_lambda_.4} parent=5 // pred_check_branch
      %210 = sbr.rel (%p207) target = $region36
    $region35: #{_lambda_.4} parent=5 // pred_region
      %s211 = ssub.s32 %s10, 1
      %s212 = smul.u32 4, %s20
      %p213 = scmp.lt.s32.totalorder %s19, 1
      %s214 = scalar_select %p213, %s19, 1
      %p215 = scmp.lt.s32.totalorder %s212, 7
      %s216 = scalar_select %p215, %s212, 7
      %s217 = smul.addr %s214, 8
      %s218 = sadd.s32 %s216, %s217
      %s219 = smul.addr %s218, 8
      %s220 = scalar_lea.vmem %s0, %s219
      %p221 = pneg %p50
      %p222 = pneg %p47
      %s223 = smul.u32 %s20, 4
      %s224 = sadd.s32 %s223, 4
      %p225 = scmp.lt.s32.totalorder %s19, 1
      %s226 = scalar_select %p225, %s19, 1
      %p227 = scmp.lt.s32.totalorder %s224, 7
      %s228 = scalar_select %p227, %s224, 7
      %s229 = smul.addr %s226, 8
      %s230 = sadd.s32 %s228, %s229
      %s231 = smul.addr %s230, 8
      %s232 = scalar_lea.vmem %s1, %s231
      %p233 = pneg %p82
      %p234 = pneg %p79
      %p235 = pneg %p103
      %p236 = pneg %p100
      %p237 = pneg %p124
      %p238 = pneg %p121
      %p239 = pneg %p152
      %p240 = pneg %p149
      %s241 = smul.u32 4, %s20
      %p242 = scmp.lt.s32.totalorder %s19, 1
      %s243 = scalar_select %p242, %s19, 1
      %p244 = scmp.lt.s32.totalorder %s241, 3
      %s245 = scalar_select %p244, %s241, 3
      %s246 = smul.addr %s243, 4
      %s247 = sadd.s32 %s245, %s246
      %s248 = smul.addr %s247, 4
      %s249 = scalar_lea.vmem %s4, %s248
      %s250 = smul.u32 4, %s20
      %p251 = scmp.lt.s32.totalorder %s19, 1
      %s252 = scalar_select %p251, %s19, 1
      %p253 = scmp.lt.s32.totalorder %s250, 7
      %s254 = scalar_select %p253, %s250, 7
      %s255 = smul.addr %s252, 8
      %s256 = sadd.s32 %s254, %s255
      %s257 = smul.addr %s256, 8
      %s258 = scalar_lea.vmem %s0, %s257
      %s259 = smul.u32 4, %s20
      %s260 = smul.u32 %s20, 4
      %s261 = sadd.s32 %s260, 4
      %p262 = scmp.lt.s32.totalorder %s19, 1
      %s263 = scalar_select %p262, %s19, 1
      %p264 = scmp.lt.s32.totalorder %s261, 7
      %s265 = scalar_select %p264, %s261, 7
      %s266 = smul.addr %s263, 8
      %s267 = sadd.s32 %s265, %s266
      %s268 = smul.addr %s267, 8
      %s269 = scalar_lea.vmem %s1, %s268
      %s270 = smul.u32 %s20, 4
      %s271 = sadd.s32 %s270, 4
      %s272 = smul.u32 4, %s20
      %p273 = scmp.lt.s32.totalorder %s19, 1
      %s274 = scalar_select %p273, %s19, 1
      %p275 = scmp.lt.s32.totalorder %s272, 3
      %s276 = scalar_select %p275, %s272, 3
      %s277 = smul.addr %s274, 4
      %s278 = sadd.s32 %s276, %s277
      %s279 = smul.addr %s278, 4
      %s280 = scalar_lea.vmem %s4, %s279
      %s281 = smul.u32 4, %s20
      %v282 = vld [vmem:[%s3] sm:$0x1]
      %v283 = vld [vmem:[%s2] sm:$0xff]
      %v284 = vld [vmem:[%s2 + $0x8] sm:$0xff]
      %v285 = vld [vmem:[%s2 + $0x10] sm:$0xff]
      %v286 = vld [vmem:[%s2 + $0x18] sm:$0xff]
      %v287 = vld [vmem:[%s2 + $0x20] sm:$0xff]
      %v288 = vld [vmem:[%s2 + $0x28] sm:$0xff]
      %v289 = vld [vmem:[%s2 + $0x30] sm:$0xff]
      %v290 = vld [vmem:[%s2 + $0x38] sm:$0xff]
      %v291 = vld [vmem:[%s258] sm:$0x1f]
      %s292 = scalar_lea.vmem %s258, 8
      %v293 = vld [vmem:[%s292] sm:$0x1f]
      %v295 = vrot.slane %v291, 1
      %vm296 = vcmask 130048
      %v297 = vsel %vm296, %v295, 0
      %299 = vmatprep.subr.mxu0 0.0
      %300 = vmatpush1.msra.mxu0 0.0
      %301 = vmatprep.subr.mxu0 0.0
      %302 = vmatpush1.msra.mxu0 0.0
      %303 = vmatprep.subr.mxu0 0.0
      %304 = vmatpush1.msra.mxu0 0.0
      %305 = vmatprep.subr.mxu0 0.0
      %306 = vmatpush1.msra.mxu0 0.0
      %307 = vmatprep.subr.mxu0 0.0
      %308 = vmatpush1.msra.mxu0 0.0
      %309 = vmatprep.subr.mxu0 0.0
      %310 = vmatpush1.msra.mxu0 0.0
      %311 = vmatprep.subr.mxu0 0.0
      %312 = vmatpush1.msra.mxu0 0.0
      %313 = vmatprep.subr.mxu0 0.0
      %314 = vmatpush1.msra.mxu0 0.0
      %315 = vmatprep.subr.mxu0 0.0
      %316 = vmatpush1.msra.mxu0 0.0
      %317 = vmatprep.subr.mxu0 0.0
      %318 = vmatpush1.msra.mxu0 0.0
      %319 = vmatprep.subr.mxu0 0.0
      %320 = vmatpush1.msra.mxu0 0.0
      %321 = vmatprep.subr.mxu0 0.0
      %322 = vmatpush1.msra.mxu0 0.0
      %323 = vmatprep.subr.mxu0 0.0
      %324 = vmatpush1.msra.mxu0 0.0
      %325 = vmatprep.subr.mxu0 0.0
      %326 = vmatpush1.msra.mxu0 0.0
      %327 = vmatprep.subr.mxu0 0.0
      %328 = vmatpush1.msra.mxu0 %v286
      %329 = vmatprep.subr.mxu0 0.0
      %330 = vmatpush1.msra.mxu0 %v285
      %331 = vmatprep.subr.mxu0 0.0
      %332 = vmatpush2.msra.mxu0 0.0
      %333 = vmatprep.subr.mxu0 0.0
      %334 = vmatpush2.msra.mxu0 0.0
      %335 = vmatprep.subr.mxu0 0.0
      %336 = vmatpush2.msra.mxu0 0.0
      %337 = vmatprep.subr.mxu0 0.0
      %338 = vmatpush2.msra.mxu0 0.0
      %339 = vmatprep.subr.mxu0 0.0
      %340 = vmatpush2.msra.mxu0 0.0
      %341 = vmatprep.subr.mxu0 0.0
      %342 = vmatpush2.msra.mxu0 0.0
      %343 = vmatprep.subr.mxu0 0.0
      %344 = vmatpush2.msra.mxu0 0.0
      %345 = vmatprep.subr.mxu0 0.0
      %346 = vmatpush2.msra.mxu0 0.0
      %347 = vmatprep.subr.mxu0 0.0
      %348 = vmatpush2.msra.mxu0 0.0
      %349 = vmatprep.subr.mxu0 0.0
      %350 = vmatpush2.msra.mxu0 0.0
      %351 = vmatprep.subr.mxu0 0.0
      %352 = vmatpush2.msra.mxu0 0.0
      %353 = vmatprep.subr.mxu0 0.0
      %354 = vmatpush2.msra.mxu0 0.0
      %355 = vmatprep.subr.mxu0 0.0
      %356 = vmatpush2.msra.mxu0 0.0
      %357 = vmatprep.subr.mxu0 0.0
      %358 = vmatpush2.msra.mxu0 0.0
      %359 = vmatprep.subr.mxu0 0.0
      %360 = vmatpush2.msra.mxu0 0.0
      %361 = vmatprep.subr.mxu0 0.0
      %362 = vmatpush2.msra.mxu0 0.0
      %363 = vmatprep.mubr.f32.mxu0 0.0
      %364 = vmatmul.mubr.f32.gmra.mxu0 %v297
      %v365 = vpop.f32.mrf.mxu0
      %v366 = vadd.f32 0.0, %v365
      %v367 = vpop.f32.mrf.mxu0
      %368 = vdwg.mxu0
      %v369 = vsel %vm296, %v291, 0
      %371 = vmatprep.subr.mxu0 0.0
      %372 = vmatpush1.msra.mxu0 0.0
      %373 = vmatprep.subr.mxu0 0.0
      %374 = vmatpush1.msra.mxu0 0.0
      %375 = vmatprep.subr.mxu0 0.0
      %376 = vmatpush1.msra.mxu0 0.0
      %377 = vmatprep.subr.mxu0 0.0
      %378 = vmatpush1.msra.mxu0 0.0
      %379 = vmatprep.subr.mxu0 0.0
      %380 = vmatpush1.msra.mxu0 0.0
      %381 = vmatprep.subr.mxu0 0.0
      %382 = vmatpush1.msra.mxu0 0.0
      %383 = vmatprep.subr.mxu0 0.0
      %384 = vmatpush1.msra.mxu0 0.0
      %385 = vmatprep.subr.mxu0 0.0
      %386 = vmatpush1.msra.mxu0 0.0
      %387 = vmatprep.subr.mxu0 0.0
      %388 = vmatpush1.msra.mxu0 0.0
      %389 = vmatprep.subr.mxu0 0.0
      %390 = vmatpush1.msra.mxu0 0.0
      %391 = vmatprep.subr.mxu0 0.0
      %392 = vmatpush1.msra.mxu0 0.0
      %393 = vmatprep.subr.mxu0 0.0
      %394 = vmatpush1.msra.mxu0 0.0
      %395 = vmatprep.subr.mxu0 0.0
      %396 = vmatpush1.msra.mxu0 0.0
      %397 = vmatprep.subr.mxu0 0.0
      %398 = vmatpush1.msra.mxu0 0.0
      %399 = vmatprep.subr.mxu0 0.0
      %400 = vmatpush1.msra.mxu0 %v284
      %401 = vmatprep.subr.mxu0 0.0
      %402 = vmatpush1.msra.mxu0 %v283
      %403 = vmatprep.subr.mxu0 0.0
      %404 = vmatpush2.msra.mxu0 0.0
      %405 = vmatprep.subr.mxu0 0.0
      %406 = vmatpush2.msra.mxu0 0.0
      %407 = vmatprep.subr.mxu0 0.0
      %408 = vmatpush2.msra.mxu0 0.0
      %409 = vmatprep.subr.mxu0 0.0
      %410 = vmatpush2.msra.mxu0 0.0
      %411 = vmatprep.subr.mxu0 0.0
      %412 = vmatpush2.msra.mxu0 0.0
      %413 = vmatprep.subr.mxu0 0.0
      %414 = vmatpush2.msra.mxu0 0.0
      %415 = vmatprep.subr.mxu0 0.0
      %416 = vmatpush2.msra.mxu0 0.0
      %417 = vmatprep.subr.mxu0 0.0
      %418 = vmatpush2.msra.mxu0 0.0
      %419 = vmatprep.subr.mxu0 0.0
      %420 = vmatpush2.msra.mxu0 0.0
      %421 = vmatprep.subr.mxu0 0.0
      %422 = vmatpush2.msra.mxu0 0.0
      %423 = vmatprep.subr.mxu0 0.0
      %424 = vmatpush2.msra.mxu0 0.0
      %425 = vmatprep.subr.mxu0 0.0
      %426 = vmatpush2.msra.mxu0 0.0
      %427 = vmatprep.subr.mxu0 0.0
      %428 = vmatpush2.msra.mxu0 0.0
      %429 = vmatprep.subr.mxu0 0.0
      %430 = vmatpush2.msra.mxu0 0.0
      %431 = vmatprep.subr.mxu0 0.0
      %432 = vmatpush2.msra.mxu0 0.0
      %433 = vmatprep.subr.mxu0 0.0
      %434 = vmatpush2.msra.mxu0 0.0
      %435 = vmatprep.mubr.f32.mxu0 0.0
      %436 = vmatmul.mubr.f32.gmra.mxu0 %v369
      %v437 = vpop.f32.mrf.mxu0
      %v438 = vadd.f32 %v366, %v437
      %v439 = vpop.f32.mrf.mxu0
      %440 = vdwg.mxu0
      %v442 = vsel %vm296, %v293, 0
      %444 = vmatprep.subr.mxu0 0.0
      %445 = vmatpush1.msra.mxu0 0.0
      %446 = vmatprep.subr.mxu0 0.0
      %447 = vmatpush1.msra.mxu0 0.0
      %448 = vmatprep.subr.mxu0 0.0
      %449 = vmatpush1.msra.mxu0 0.0
      %450 = vmatprep.subr.mxu0 0.0
      %451 = vmatpush1.msra.mxu0 0.0
      %452 = vmatprep.subr.mxu0 0.0
      %453 = vmatpush1.msra.mxu0 0.0
      %454 = vmatprep.subr.mxu0 0.0
      %455 = vmatpush1.msra.mxu0 0.0
      %456 = vmatprep.subr.mxu0 0.0
      %457 = vmatpush1.msra.mxu0 0.0
      %458 = vmatprep.subr.mxu0 0.0
      %459 = vmatpush1.msra.mxu0 0.0
      %460 = vmatprep.subr.mxu0 0.0
      %461 = vmatpush1.msra.mxu0 0.0
      %462 = vmatprep.subr.mxu0 0.0
      %463 = vmatpush1.msra.mxu0 0.0
      %464 = vmatprep.subr.mxu0 0.0
      %465 = vmatpush1.msra.mxu0 0.0
      %466 = vmatprep.subr.mxu0 0.0
      %467 = vmatpush1.msra.mxu0 0.0
      %468 = vmatprep.subr.mxu0 0.0
      %469 = vmatpush1.msra.mxu0 0.0
      %470 = vmatprep.subr.mxu0 0.0
      %471 = vmatpush1.msra.mxu0 0.0
      %472 = vmatprep.subr.mxu0 0.0
      %473 = vmatpush1.msra.mxu0 %v288
      %474 = vmatprep.subr.mxu0 0.0
      %475 = vmatpush1.msra.mxu0 %v287
      %476 = vmatprep.subr.mxu0 0.0
      %477 = vmatpush2.msra.mxu0 0.0
      %478 = vmatprep.subr.mxu0 0.0
      %479 = vmatpush2.msra.mxu0 0.0
      %480 = vmatprep.subr.mxu0 0.0
      %481 = vmatpush2.msra.mxu0 0.0
      %482 = vmatprep.subr.mxu0 0.0
      %483 = vmatpush2.msra.mxu0 0.0
      %484 = vmatprep.subr.mxu0 0.0
      %485 = vmatpush2.msra.mxu0 0.0
      %486 = vmatprep.subr.mxu0 0.0
      %487 = vmatpush2.msra.mxu0 0.0
      %488 = vmatprep.subr.mxu0 0.0
      %489 = vmatpush2.msra.mxu0 0.0
      %490 = vmatprep.subr.mxu0 0.0
      %491 = vmatpush2.msra.mxu0 0.0
      %492 = vmatprep.subr.mxu0 0.0
      %493 = vmatpush2.msra.mxu0 0.0
      %494 = vmatprep.subr.mxu0 0.0
      %495 = vmatpush2.msra.mxu0 0.0
      %496 = vmatprep.subr.mxu0 0.0
      %497 = vmatpush2.msra.mxu0 0.0
      %498 = vmatprep.subr.mxu0 0.0
      %499 = vmatpush2.msra.mxu0 0.0
      %500 = vmatprep.subr.mxu0 0.0
      %501 = vmatpush2.msra.mxu0 0.0
      %502 = vmatprep.subr.mxu0 0.0
      %503 = vmatpush2.msra.mxu0 0.0
      %504 = vmatprep.subr.mxu0 0.0
      %505 = vmatpush2.msra.mxu0 0.0
      %506 = vmatprep.subr.mxu0 0.0
      %507 = vmatpush2.msra.mxu0 0.0
      %508 = vmatprep.mubr.f32.mxu0 0.0
      %509 = vmatmul.mubr.f32.gmra.mxu0 %v442
      %v510 = vpop.f32.mrf.mxu0
      %v511 = vadd.f32 0.0, %v510
      %v512 = vpop.f32.mrf.mxu0
      %513 = vdwg.mxu0
      %v514 = vadd.f32 %v438, %v511
      %v515 = vrot.slane %v293, 1
      %v516 = vsel %vm296, %v515, 0
      %518 = vmatprep.subr.mxu0 0.0
      %519 = vmatpush1.msra.mxu0 0.0
      %520 = vmatprep.subr.mxu0 0.0
      %521 = vmatpush1.msra.mxu0 0.0
      %522 = vmatprep.subr.mxu0 0.0
      %523 = vmatpush1.msra.mxu0 0.0
      %524 = vmatprep.subr.mxu0 0.0
      %525 = vmatpush1.msra.mxu0 0.0
      %526 = vmatprep.subr.mxu0 0.0
      %527 = vmatpush1.msra.mxu0 0.0
      %528 = vmatprep.subr.mxu0 0.0
      %529 = vmatpush1.msra.mxu0 0.0
      %530 = vmatprep.subr.mxu0 0.0
      %531 = vmatpush1.msra.mxu0 0.0
      %532 = vmatprep.subr.mxu0 0.0
      %533 = vmatpush1.msra.mxu0 0.0
      %534 = vmatprep.subr.mxu0 0.0
      %535 = vmatpush1.msra.mxu0 0.0
      %536 = vmatprep.subr.mxu0 0.0
      %537 = vmatpush1.msra.mxu0 0.0
      %538 = vmatprep.subr.mxu0 0.0
      %539 = vmatpush1.msra.mxu0 0.0
      %540 = vmatprep.subr.mxu0 0.0
      %541 = vmatpush1.msra.mxu0 0.0
      %542 = vmatprep.subr.mxu0 0.0
      %543 = vmatpush1.msra.mxu0 0.0
      %544 = vmatprep.subr.mxu0 0.0
      %545 = vmatpush1.msra.mxu0 0.0
      %546 = vmatprep.subr.mxu0 0.0
      %547 = vmatpush1.msra.mxu0 %v290
      %548 = vmatprep.subr.mxu0 0.0
      %549 = vmatpush1.msra.mxu0 %v289
      %550 = vmatprep.subr.mxu0 0.0
      %551 = vmatpush2.msra.mxu0 0.0
      %552 = vmatprep.subr.mxu0 0.0
      %553 = vmatpush2.msra.mxu0 0.0
      %554 = vmatprep.subr.mxu0 0.0
      %555 = vmatpush2.msra.mxu0 0.0
      %556 = vmatprep.subr.mxu0 0.0
      %557 = vmatpush2.msra.mxu0 0.0
      %558 = vmatprep.subr.mxu0 0.0
      %559 = vmatpush2.msra.mxu0 0.0
      %560 = vmatprep.subr.mxu0 0.0
      %561 = vmatpush2.msra.mxu0 0.0
      %562 = vmatprep.subr.mxu0 0.0
      %563 = vmatpush2.msra.mxu0 0.0
      %564 = vmatprep.subr.mxu0 0.0
      %565 = vmatpush2.msra.mxu0 0.0
      %566 = vmatprep.subr.mxu0 0.0
      %567 = vmatpush2.msra.mxu0 0.0
      %568 = vmatprep.subr.mxu0 0.0
      %569 = vmatpush2.msra.mxu0 0.0
      %570 = vmatprep.subr.mxu0 0.0
      %571 = vmatpush2.msra.mxu0 0.0
      %572 = vmatprep.subr.mxu0 0.0
      %573 = vmatpush2.msra.mxu0 0.0
      %574 = vmatprep.subr.mxu0 0.0
      %575 = vmatpush2.msra.mxu0 0.0
      %576 = vmatprep.subr.mxu0 0.0
      %577 = vmatpush2.msra.mxu0 0.0
      %578 = vmatprep.subr.mxu0 0.0
      %579 = vmatpush2.msra.mxu0 0.0
      %580 = vmatprep.subr.mxu0 0.0
      %581 = vmatpush2.msra.mxu0 0.0
      %582 = vmatprep.mubr.f32.mxu0 0.0
      %583 = vmatmul.mubr.f32.gmra.mxu0 %v516
      %v584 = vpop.f32.mrf.mxu0
      %v585 = vadd.f32 0.0, %v584
      %v586 = vpop.f32.mrf.mxu0
      %587 = vdwg.mxu0
      %v588 = vadd.f32 %v514, %v585
      %v590 = vlaneseq
      %v591 = vshrl.u32 %v590, 7
      %v592 = vsub.s32 0, %v591
      %v593 = vrot.slane %v282, %v592
      %v595 = vadd.f32 %v588, %v593
      %v596 = vmax.f32 %v595, 0.0
      %597 = vst [vmem:[%s280] sm:$0xf] %v596
      %v598 = vld [vmem:[%s292] sm:$0x1f]
      %s599 = scalar_lea.vmem %s258, 16
      %v600 = vld [vmem:[%s599] sm:$0x1f]
      %v602 = vrot.slane %v598, 1
      %v603 = vsel %vm296, %v602, 0
      %605 = vmatprep.subr.mxu0 0.0
      %606 = vmatpush1.msra.mxu0 0.0
      %607 = vmatprep.subr.mxu0 0.0
      %608 = vmatpush1.msra.mxu0 0.0
      %609 = vmatprep.subr.mxu0 0.0
      %610 = vmatpush1.msra.mxu0 0.0
      %611 = vmatprep.subr.mxu0 0.0
      %612 = vmatpush1.msra.mxu0 0.0
      %613 = vmatprep.subr.mxu0 0.0
      %614 = vmatpush1.msra.mxu0 0.0
      %615 = vmatprep.subr.mxu0 0.0
      %616 = vmatpush1.msra.mxu0 0.0
      %617 = vmatprep.subr.mxu0 0.0
      %618 = vmatpush1.msra.mxu0 0.0
      %619 = vmatprep.subr.mxu0 0.0
      %620 = vmatpush1.msra.mxu0 0.0
      %621 = vmatprep.subr.mxu0 0.0
      %622 = vmatpush1.msra.mxu0 0.0
      %623 = vmatprep.subr.mxu0 0.0
      %624 = vmatpush1.msra.mxu0 0.0
      %625 = vmatprep.subr.mxu0 0.0
      %626 = vmatpush1.msra.mxu0 0.0
      %627 = vmatprep.subr.mxu0 0.0
      %628 = vmatpush1.msra.mxu0 0.0
      %629 = vmatprep.subr.mxu0 0.0
      %630 = vmatpush1.msra.mxu0 0.0
      %631 = vmatprep.subr.mxu0 0.0
      %632 = vmatpush1.msra.mxu0 0.0
      %633 = vmatprep.subr.mxu0 0.0
      %634 = vmatpush1.msra.mxu0 %v286
      %635 = vmatprep.subr.mxu0 0.0
      %636 = vmatpush1.msra.mxu0 %v285
      %637 = vmatprep.subr.mxu0 0.0
      %638 = vmatpush2.msra.mxu0 0.0
      %639 = vmatprep.subr.mxu0 0.0
      %640 = vmatpush2.msra.mxu0 0.0
      %641 = vmatprep.subr.mxu0 0.0
      %642 = vmatpush2.msra.mxu0 0.0
      %643 = vmatprep.subr.mxu0 0.0
      %644 = vmatpush2.msra.mxu0 0.0
      %645 = vmatprep.subr.mxu0 0.0
      %646 = vmatpush2.msra.mxu0 0.0
      %647 = vmatprep.subr.mxu0 0.0
      %648 = vmatpush2.msra.mxu0 0.0
      %649 = vmatprep.subr.mxu0 0.0
      %650 = vmatpush2.msra.mxu0 0.0
      %651 = vmatprep.subr.mxu0 0.0
      %652 = vmatpush2.msra.mxu0 0.0
      %653 = vmatprep.subr.mxu0 0.0
      %654 = vmatpush2.msra.mxu0 0.0
      %655 = vmatprep.subr.mxu0 0.0
      %656 = vmatpush2.msra.mxu0 0.0
      %657 = vmatprep.subr.mxu0 0.0
      %658 = vmatpush2.msra.mxu0 0.0
      %659 = vmatprep.subr.mxu0 0.0
      %660 = vmatpush2.msra.mxu0 0.0
      %661 = vmatprep.subr.mxu0 0.0
      %662 = vmatpush2.msra.mxu0 0.0
      %663 = vmatprep.subr.mxu0 0.0
      %664 = vmatpush2.msra.mxu0 0.0
      %665 = vmatprep.subr.mxu0 0.0
      %666 = vmatpush2.msra.mxu0 0.0
      %667 = vmatprep.subr.mxu0 0.0
      %668 = vmatpush2.msra.mxu0 0.0
      %669 = vmatprep.mubr.f32.mxu0 0.0
      %670 = vmatmul.mubr.f32.gmra.mxu0 %v603
      %v671 = vpop.f32.mrf.mxu0
      %v672 = vadd.f32 0.0, %v671
      %v673 = vpop.f32.mrf.mxu0
      %674 = vdwg.mxu0
      %v675 = vsel %vm296, %v598, 0
      %677 = vmatprep.subr.mxu0 0.0
      %678 = vmatpush1.msra.mxu0 0.0
      %679 = vmatprep.subr.mxu0 0.0
      %680 = vmatpush1.msra.mxu0 0.0
      %681 = vmatprep.subr.mxu0 0.0
      %682 = vmatpush1.msra.mxu0 0.0
      %683 = vmatprep.subr.mxu0 0.0
      %684 = vmatpush1.msra.mxu0 0.0
      %685 = vmatprep.subr.mxu0 0.0
      %686 = vmatpush1.msra.mxu0 0.0
      %687 = vmatprep.subr.mxu0 0.0
      %688 = vmatpush1.msra.mxu0 0.0
      %689 = vmatprep.subr.mxu0 0.0
      %690 = vmatpush1.msra.mxu0 0.0
      %691 = vmatprep.subr.mxu0 0.0
      %692 = vmatpush1.msra.mxu0 0.0
      %693 = vmatprep.subr.mxu0 0.0
      %694 = vmatpush1.msra.mxu0 0.0
      %695 = vmatprep.subr.mxu0 0.0
      %696 = vmatpush1.msra.mxu0 0.0
      %697 = vmatprep.subr.mxu0 0.0
      %698 = vmatpush1.msra.mxu0 0.0
      %699 = vmatprep.subr.mxu0 0.0
      %700 = vmatpush1.msra.mxu0 0.0
      %701 = vmatprep.subr.mxu0 0.0
      %702 = vmatpush1.msra.mxu0 0.0
      %703 = vmatprep.subr.mxu0 0.0
      %704 = vmatpush1.msra.mxu0 0.0
      %705 = vmatprep.subr.mxu0 0.0
      %706 = vmatpush1.msra.mxu0 %v284
      %707 = vmatprep.subr.mxu0 0.0
      %708 = vmatpush1.msra.mxu0 %v283
      %709 = vmatprep.subr.mxu0 0.0
      %710 = vmatpush2.msra.mxu0 0.0
      %711 = vmatprep.subr.mxu0 0.0
      %712 = vmatpush2.msra.mxu0 0.0
      %713 = vmatprep.subr.mxu0 0.0
      %714 = vmatpush2.msra.mxu0 0.0
      %715 = vmatprep.subr.mxu0 0.0
      %716 = vmatpush2.msra.mxu0 0.0
      %717 = vmatprep.subr.mxu0 0.0
      %718 = vmatpush2.msra.mxu0 0.0
      %719 = vmatprep.subr.mxu0 0.0
      %720 = vmatpush2.msra.mxu0 0.0
      %721 = vmatprep.subr.mxu0 0.0
      %722 = vmatpush2.msra.mxu0 0.0
      %723 = vmatprep.subr.mxu0 0.0
      %724 = vmatpush2.msra.mxu0 0.0
      %725 = vmatprep.subr.mxu0 0.0
      %726 = vmatpush2.msra.mxu0 0.0
      %727 = vmatprep.subr.mxu0 0.0
      %728 = vmatpush2.msra.mxu0 0.0
      %729 = vmatprep.subr.mxu0 0.0
      %730 = vmatpush2.msra.mxu0 0.0
      %731 = vmatprep.subr.mxu0 0.0
      %732 = vmatpush2.msra.mxu0 0.0
      %733 = vmatprep.subr.mxu0 0.0
      %734 = vmatpush2.msra.mxu0 0.0
      %735 = vmatprep.subr.mxu0 0.0
      %736 = vmatpush2.msra.mxu0 0.0
      %737 = vmatprep.subr.mxu0 0.0
      %738 = vmatpush2.msra.mxu0 0.0
      %739 = vmatprep.subr.mxu0 0.0
      %740 = vmatpush2.msra.mxu0 0.0
      %741 = vmatprep.mubr.f32.mxu0 0.0
      %742 = vmatmul.mubr.f32.gmra.mxu0 %v675
      %v743 = vpop.f32.mrf.mxu0
      %v744 = vadd.f32 %v672, %v743
      %v745 = vpop.f32.mrf.mxu0
      %746 = vdwg.mxu0
      %v748 = vsel %vm296, %v600, 0
      %750 = vmatprep.subr.mxu0 0.0
      %751 = vmatpush1.msra.mxu0 0.0
      %752 = vmatprep.subr.mxu0 0.0
      %753 = vmatpush1.msra.mxu0 0.0
      %754 = vmatprep.subr.mxu0 0.0
      %755 = vmatpush1.msra.mxu0 0.0
      %756 = vmatprep.subr.mxu0 0.0
      %757 = vmatpush1.msra.mxu0 0.0
      %758 = vmatprep.subr.mxu0 0.0
      %759 = vmatpush1.msra.mxu0 0.0
      %760 = vmatprep.subr.mxu0 0.0
      %761 = vmatpush1.msra.mxu0 0.0
      %762 = vmatprep.subr.mxu0 0.0
      %763 = vmatpush1.msra.mxu0 0.0
      %764 = vmatprep.subr.mxu0 0.0
      %765 = vmatpush1.msra.mxu0 0.0
      %766 = vmatprep.subr.mxu0 0.0
      %767 = vmatpush1.msra.mxu0 0.0
      %768 = vmatprep.subr.mxu0 0.0
      %769 = vmatpush1.msra.mxu0 0.0
      %770 = vmatprep.subr.mxu0 0.0
      %771 = vmatpush1.msra.mxu0 0.0
      %772 = vmatprep.subr.mxu0 0.0
      %773 = vmatpush1.msra.mxu0 0.0
      %774 = vmatprep.subr.mxu0 0.0
      %775 = vmatpush1.msra.mxu0 0.0
      %776 = vmatprep.subr.mxu0 0.0
      %777 = vmatpush1.msra.mxu0 0.0
      %778 = vmatprep.subr.mxu0 0.0
      %779 = vmatpush1.msra.mxu0 %v288
      %780 = vmatprep.subr.mxu0 0.0
      %781 = vmatpush1.msra.mxu0 %v287
      %782 = vmatprep.subr.mxu0 0.0
      %783 = vmatpush2.msra.mxu0 0.0
      %784 = vmatprep.subr.mxu0 0.0
      %785 = vmatpush2.msra.mxu0 0.0
      %786 = vmatprep.subr.mxu0 0.0
      %787 = vmatpush2.msra.mxu0 0.0
      %788 = vmatprep.subr.mxu0 0.0
      %789 = vmatpush2.msra.mxu0 0.0
      %790 = vmatprep.subr.mxu0 0.0
      %791 = vmatpush2.msra.mxu0 0.0
      %792 = vmatprep.subr.mxu0 0.0
      %793 = vmatpush2.msra.mxu0 0.0
      %794 = vmatprep.subr.mxu0 0.0
      %795 = vmatpush2.msra.mxu0 0.0
      %796 = vmatprep.subr.mxu0 0.0
      %797 = vmatpush2.msra.mxu0 0.0
      %798 = vmatprep.subr.mxu0 0.0
      %799 = vmatpush2.msra.mxu0 0.0
      %800 = vmatprep.subr.mxu0 0.0
      %801 = vmatpush2.msra.mxu0 0.0
      %802 = vmatprep.subr.mxu0 0.0
      %803 = vmatpush2.msra.mxu0 0.0
      %804 = vmatprep.subr.mxu0 0.0
      %805 = vmatpush2.msra.mxu0 0.0
      %806 = vmatprep.subr.mxu0 0.0
      %807 = vmatpush2.msra.mxu0 0.0
      %808 = vmatprep.subr.mxu0 0.0
      %809 = vmatpush2.msra.mxu0 0.0
      %810 = vmatprep.subr.mxu0 0.0
      %811 = vmatpush2.msra.mxu0 0.0
      %812 = vmatprep.subr.mxu0 0.0
      %813 = vmatpush2.msra.mxu0 0.0
      %814 = vmatprep.mubr.f32.mxu0 0.0
      %815 = vmatmul.mubr.f32.gmra.mxu0 %v748
      %v816 = vpop.f32.mrf.mxu0
      %v817 = vadd.f32 0.0, %v816
      %v818 = vpop.f32.mrf.mxu0
      %819 = vdwg.mxu0
      %v820 = vadd.f32 %v744, %v817
      %v821 = vrot.slane %v600, 1
      %v822 = vsel %vm296, %v821, 0
      %824 = vmatprep.subr.mxu0 0.0
      %825 = vmatpush1.msra.mxu0 0.0
      %826 = vmatprep.subr.mxu0 0.0
      %827 = vmatpush1.msra.mxu0 0.0
      %828 = vmatprep.subr.mxu0 0.0
      %829 = vmatpush1.msra.mxu0 0.0
      %830 = vmatprep.subr.mxu0 0.0
      %831 = vmatpush1.msra.mxu0 0.0
      %832 = vmatprep.subr.mxu0 0.0
      %833 = vmatpush1.msra.mxu0 0.0
      %834 = vmatprep.subr.mxu0 0.0
      %835 = vmatpush1.msra.mxu0 0.0
      %836 = vmatprep.subr.mxu0 0.0
      %837 = vmatpush1.msra.mxu0 0.0
      %838 = vmatprep.subr.mxu0 0.0
      %839 = vmatpush1.msra.mxu0 0.0
      %840 = vmatprep.subr.mxu0 0.0
      %841 = vmatpush1.msra.mxu0 0.0
      %842 = vmatprep.subr.mxu0 0.0
      %843 = vmatpush1.msra.mxu0 0.0
      %844 = vmatprep.subr.mxu0 0.0
      %845 = vmatpush1.msra.mxu0 0.0
      %846 = vmatprep.subr.mxu0 0.0
      %847 = vmatpush1.msra.mxu0 0.0
      %848 = vmatprep.subr.mxu0 0.0
      %849 = vmatpush1.msra.mxu0 0.0
      %850 = vmatprep.subr.mxu0 0.0
      %851 = vmatpush1.msra.mxu0 0.0
      %852 = vmatprep.subr.mxu0 0.0
      %853 = vmatpush1.msra.mxu0 %v290
      %854 = vmatprep.subr.mxu0 0.0
      %855 = vmatpush1.msra.mxu0 %v289
      %856 = vmatprep.subr.mxu0 0.0
      %857 = vmatpush2.msra.mxu0 0.0
      %858 = vmatprep.subr.mxu0 0.0
      %859 = vmatpush2.msra.mxu0 0.0
      %860 = vmatprep.subr.mxu0 0.0
      %861 = vmatpush2.msra.mxu0 0.0
      %862 = vmatprep.subr.mxu0 0.0
      %863 = vmatpush2.msra.mxu0 0.0
      %864 = vmatprep.subr.mxu0 0.0
      %865 = vmatpush2.msra.mxu0 0.0
      %866 = vmatprep.subr.mxu0 0.0
      %867 = vmatpush2.msra.mxu0 0.0
      %868 = vmatprep.subr.mxu0 0.0
      %869 = vmatpush2.msra.mxu0 0.0
      %870 = vmatprep.subr.mxu0 0.0
      %871 = vmatpush2.msra.mxu0 0.0
      %872 = vmatprep.subr.mxu0 0.0
      %873 = vmatpush2.msra.mxu0 0.0
      %874 = vmatprep.subr.mxu0 0.0
      %875 = vmatpush2.msra.mxu0 0.0
      %876 = vmatprep.subr.mxu0 0.0
      %877 = vmatpush2.msra.mxu0 0.0
      %878 = vmatprep.subr.mxu0 0.0
      %879 = vmatpush2.msra.mxu0 0.0
      %880 = vmatprep.subr.mxu0 0.0
      %881 = vmatpush2.msra.mxu0 0.0
      %882 = vmatprep.subr.mxu0 0.0
      %883 = vmatpush2.msra.mxu0 0.0
      %884 = vmatprep.subr.mxu0 0.0
      %885 = vmatpush2.msra.mxu0 0.0
      %886 = vmatprep.subr.mxu0 0.0
      %887 = vmatpush2.msra.mxu0 0.0
      %888 = vmatprep.mubr.f32.mxu0 0.0
      %889 = vmatmul.mubr.f32.gmra.mxu0 %v822
      %v890 = vpop.f32.mrf.mxu0
      %v891 = vadd.f32 0.0, %v890
      %v892 = vpop.f32.mrf.mxu0
      %893 = vdwg.mxu0
      %v894 = vadd.f32 %v820, %v891
      %v895 = vadd.f32 %v894, %v593
      %v896 = vmax.f32 %v895, 0.0
      %s897 = scalar_lea.vmem %s280, 4
      %898 = vst [vmem:[%s897] sm:$0xf] %v896
      %v899 = vld [vmem:[%s599] sm:$0x1f]
      %s900 = scalar_lea.vmem %s258, 24
      %v901 = vld [vmem:[%s900] sm:$0x1f]
      %v903 = vrot.slane %v899, 1
      %v904 = vsel %vm296, %v903, 0
      %906 = vmatprep.subr.mxu0 0.0
      %907 = vmatpush1.msra.mxu0 0.0
      %908 = vmatprep.subr.mxu0 0.0
      %909 = vmatpush1.msra.mxu0 0.0
      %910 = vmatprep.subr.mxu0 0.0
      %911 = vmatpush1.msra.mxu0 0.0
      %912 = vmatprep.subr.mxu0 0.0
      %913 = vmatpush1.msra.mxu0 0.0
      %914 = vmatprep.subr.mxu0 0.0
      %915 = vmatpush1.msra.mxu0 0.0
      %916 = vmatprep.subr.mxu0 0.0
      %917 = vmatpush1.msra.mxu0 0.0
      %918 = vmatprep.subr.mxu0 0.0
      %919 = vmatpush1.msra.mxu0 0.0
      %920 = vmatprep.subr.mxu0 0.0
      %921 = vmatpush1.msra.mxu0 0.0
      %922 = vmatprep.subr.mxu0 0.0
      %923 = vmatpush1.msra.mxu0 0.0
      %924 = vmatprep.subr.mxu0 0.0
      %925 = vmatpush1.msra.mxu0 0.0
      %926 = vmatprep.subr.mxu0 0.0
      %927 = vmatpush1.msra.mxu0 0.0
      %928 = vmatprep.subr.mxu0 0.0
      %929 = vmatpush1.msra.mxu0 0.0
      %930 = vmatprep.subr.mxu0 0.0
      %931 = vmatpush1.msra.mxu0 0.0
      %932 = vmatprep.subr.mxu0 0.0
      %933 = vmatpush1.msra.mxu0 0.0
      %934 = vmatprep.subr.mxu0 0.0
      %935 = vmatpush1.msra.mxu0 %v286
      %936 = vmatprep.subr.mxu0 0.0
      %937 = vmatpush1.msra.mxu0 %v285
      %938 = vmatprep.subr.mxu0 0.0
      %939 = vmatpush2.msra.mxu0 0.0
      %940 = vmatprep.subr.mxu0 0.0
      %941 = vmatpush2.msra.mxu0 0.0
      %942 = vmatprep.subr.mxu0 0.0
      %943 = vmatpush2.msra.mxu0 0.0
      %944 = vmatprep.subr.mxu0 0.0
      %945 = vmatpush2.msra.mxu0 0.0
      %946 = vmatprep.subr.mxu0 0.0
      %947 = vmatpush2.msra.mxu0 0.0
      %948 = vmatprep.subr.mxu0 0.0
      %949 = vmatpush2.msra.mxu0 0.0
      %950 = vmatprep.subr.mxu0 0.0
      %951 = vmatpush2.msra.mxu0 0.0
      %952 = vmatprep.subr.mxu0 0.0
      %953 = vmatpush2.msra.mxu0 0.0
      %954 = vmatprep.subr.mxu0 0.0
      %955 = vmatpush2.msra.mxu0 0.0
      %956 = vmatprep.subr.mxu0 0.0
      %957 = vmatpush2.msra.mxu0 0.0
      %958 = vmatprep.subr.mxu0 0.0
      %959 = vmatpush2.msra.mxu0 0.0
      %960 = vmatprep.subr.mxu0 0.0
      %961 = vmatpush2.msra.mxu0 0.0
      %962 = vmatprep.subr.mxu0 0.0
      %963 = vmatpush2.msra.mxu0 0.0
      %964 = vmatprep.subr.mxu0 0.0
      %965 = vmatpush2.msra.mxu0 0.0
      %966 = vmatprep.subr.mxu0 0.0
      %967 = vmatpush2.msra.mxu0 0.0
      %968 = vmatprep.subr.mxu0 0.0
      %969 = vmatpush2.msra.mxu0 0.0
      %970 = vmatprep.mubr.f32.mxu0 0.0
      %971 = vmatmul.mubr.f32.gmra.mxu0 %v904
      %v972 = vpop.f32.mrf.mxu0
      %v973 = vadd.f32 0.0, %v972
      %v974 = vpop.f32.mrf.mxu0
      %975 = vdwg.mxu0
      %v976 = vsel %vm296, %v899, 0
      %978 = vmatprep.subr.mxu0 0.0
      %979 = vmatpush1.msra.mxu0 0.0
      %980 = vmatprep.subr.mxu0 0.0
      %981 = vmatpush1.msra.mxu0 0.0
      %982 = vmatprep.subr.mxu0 0.0
      %983 = vmatpush1.msra.mxu0 0.0
      %984 = vmatprep.subr.mxu0 0.0
      %985 = vmatpush1.msra.mxu0 0.0
      %986 = vmatprep.subr.mxu0 0.0
      %987 = vmatpush1.msra.mxu0 0.0
      %988 = vmatprep.subr.mxu0 0.0
      %989 = vmatpush1.msra.mxu0 0.0
      %990 = vmatprep.subr.mxu0 0.0
      %991 = vmatpush1.msra.mxu0 0.0
      %992 = vmatprep.subr.mxu0 0.0
      %993 = vmatpush1.msra.mxu0 0.0
      %994 = vmatprep.subr.mxu0 0.0
      %995 = vmatpush1.msra.mxu0 0.0
      %996 = vmatprep.subr.mxu0 0.0
      %997 = vmatpush1.msra.mxu0 0.0
      %998 = vmatprep.subr.mxu0 0.0
      %999 = vmatpush1.msra.mxu0 0.0
      %1000 = vmatprep.subr.mxu0 0.0
      %1001 = vmatpush1.msra.mxu0 0.0
      %1002 = vmatprep.subr.mxu0 0.0
      %1003 = vmatpush1.msra.mxu0 0.0
      %1004 = vmatprep.subr.mxu0 0.0
      %1005 = vmatpush1.msra.mxu0 0.0
      %1006 = vmatprep.subr.mxu0 0.0
      %1007 = vmatpush1.msra.mxu0 %v284
      %1008 = vmatprep.subr.mxu0 0.0
      %1009 = vmatpush1.msra.mxu0 %v283
      %1010 = vmatprep.subr.mxu0 0.0
      %1011 = vmatpush2.msra.mxu0 0.0
      %1012 = vmatprep.subr.mxu0 0.0
      %1013 = vmatpush2.msra.mxu0 0.0
      %1014 = vmatprep.subr.mxu0 0.0
      %1015 = vmatpush2.msra.mxu0 0.0
      %1016 = vmatprep.subr.mxu0 0.0
      %1017 = vmatpush2.msra.mxu0 0.0
      %1018 = vmatprep.subr.mxu0 0.0
      %1019 = vmatpush2.msra.mxu0 0.0
      %1020 = vmatprep.subr.mxu0 0.0
      %1021 = vmatpush2.msra.mxu0 0.0
      %1022 = vmatprep.subr.mxu0 0.0
      %1023 = vmatpush2.msra.mxu0 0.0
      %1024 = vmatprep.subr.mxu0 0.0
      %1025 = vmatpush2.msra.mxu0 0.0
      %1026 = vmatprep.subr.mxu0 0.0
      %1027 = vmatpush2.msra.mxu0 0.0
      %1028 = vmatprep.subr.mxu0 0.0
      %1029 = vmatpush2.msra.mxu0 0.0
      %1030 = vmatprep.subr.mxu0 0.0
      %1031 = vmatpush2.msra.mxu0 0.0
      %1032 = vmatprep.subr.mxu0 0.0
      %1033 = vmatpush2.msra.mxu0 0.0
      %1034 = vmatprep.subr.mxu0 0.0
      %1035 = vmatpush2.msra.mxu0 0.0
      %1036 = vmatprep.subr.mxu0 0.0
      %1037 = vmatpush2.msra.mxu0 0.0
      %1038 = vmatprep.subr.mxu0 0.0
      %1039 = vmatpush2.msra.mxu0 0.0
      %1040 = vmatprep.subr.mxu0 0.0
      %1041 = vmatpush2.msra.mxu0 0.0
      %1042 = vmatprep.mubr.f32.mxu0 0.0
      %1043 = vmatmul.mubr.f32.gmra.mxu0 %v976
      %v1044 = vpop.f32.mrf.mxu0
      %v1045 = vadd.f32 %v973, %v1044
      %v1046 = vpop.f32.mrf.mxu0
      %1047 = vdwg.mxu0
      %v1049 = vsel %vm296, %v901, 0
      %1051 = vmatprep.subr.mxu0 0.0
      %1052 = vmatpush1.msra.mxu0 0.0
      %1053 = vmatprep.subr.mxu0 0.0
      %1054 = vmatpush1.msra.mxu0 0.0
      %1055 = vmatprep.subr.mxu0 0.0
      %1056 = vmatpush1.msra.mxu0 0.0
      %1057 = vmatprep.subr.mxu0 0.0
      %1058 = vmatpush1.msra.mxu0 0.0
      %1059 = vmatprep.subr.mxu0 0.0
      %1060 = vmatpush1.msra.mxu0 0.0
      %1061 = vmatprep.subr.mxu0 0.0
      %1062 = vmatpush1.msra.mxu0 0.0
      %1063 = vmatprep.subr.mxu0 0.0
      %1064 = vmatpush1.msra.mxu0 0.0
      %1065 = vmatprep.subr.mxu0 0.0
      %1066 = vmatpush1.msra.mxu0 0.0
      %1067 = vmatprep.subr.mxu0 0.0
      %1068 = vmatpush1.msra.mxu0 0.0
      %1069 = vmatprep.subr.mxu0 0.0
      %1070 = vmatpush1.msra.mxu0 0.0
      %1071 = vmatprep.subr.mxu0 0.0
      %1072 = vmatpush1.msra.mxu0 0.0
      %1073 = vmatprep.subr.mxu0 0.0
      %1074 = vmatpush1.msra.mxu0 0.0
      %1075 = vmatprep.subr.mxu0 0.0
      %1076 = vmatpush1.msra.mxu0 0.0
      %1077 = vmatprep.subr.mxu0 0.0
      %1078 = vmatpush1.msra.mxu0 0.0
      %1079 = vmatprep.subr.mxu0 0.0
      %1080 = vmatpush1.msra.mxu0 %v288
      %1081 = vmatprep.subr.mxu0 0.0
      %1082 = vmatpush1.msra.mxu0 %v287
      %1083 = vmatprep.subr.mxu0 0.0
      %1084 = vmatpush2.msra.mxu0 0.0
      %1085 = vmatprep.subr.mxu0 0.0
      %1086 = vmatpush2.msra.mxu0 0.0
      %1087 = vmatprep.subr.mxu0 0.0
      %1088 = vmatpush2.msra.mxu0 0.0
      %1089 = vmatprep.subr.mxu0 0.0
      %1090 = vmatpush2.msra.mxu0 0.0
      %1091 = vmatprep.subr.mxu0 0.0
      %1092 = vmatpush2.msra.mxu0 0.0
      %1093 = vmatprep.subr.mxu0 0.0
      %1094 = vmatpush2.msra.mxu0 0.0
      %1095 = vmatprep.subr.mxu0 0.0
      %1096 = vmatpush2.msra.mxu0 0.0
      %1097 = vmatprep.subr.mxu0 0.0
      %1098 = vmatpush2.msra.mxu0 0.0
      %1099 = vmatprep.subr.mxu0 0.0
      %1100 = vmatpush2.msra.mxu0 0.0
      %1101 = vmatprep.subr.mxu0 0.0
      %1102 = vmatpush2.msra.mxu0 0.0
      %1103 = vmatprep.subr.mxu0 0.0
      %1104 = vmatpush2.msra.mxu0 0.0
      %1105 = vmatprep.subr.mxu0 0.0
      %1106 = vmatpush2.msra.mxu0 0.0
      %1107 = vmatprep.subr.mxu0 0.0
      %1108 = vmatpush2.msra.mxu0 0.0
      %1109 = vmatprep.subr.mxu0 0.0
      %1110 = vmatpush2.msra.mxu0 0.0
      %1111 = vmatprep.subr.mxu0 0.0
      %1112 = vmatpush2.msra.mxu0 0.0
      %1113 = vmatprep.subr.mxu0 0.0
      %1114 = vmatpush2.msra.mxu0 0.0
      %1115 = vmatprep.mubr.f32.mxu0 0.0
      %1116 = vmatmul.mubr.f32.gmra.mxu0 %v1049
      %v1117 = vpop.f32.mrf.mxu0
      %v1118 = vadd.f32 0.0, %v1117
      %v1119 = vpop.f32.mrf.mxu0
      %1120 = vdwg.mxu0
      %v1121 = vadd.f32 %v1045, %v1118
      %v1122 = vrot.slane %v901, 1
      %v1123 = vsel %vm296, %v1122, 0
      %1125 = vmatprep.subr.mxu0 0.0
      %1126 = vmatpush1.msra.mxu0 0.0
      %1127 = vmatprep.subr.mxu0 0.0
      %1128 = vmatpush1.msra.mxu0 0.0
      %1129 = vmatprep.subr.mxu0 0.0
      %1130 = vmatpush1.msra.mxu0 0.0
      %1131 = vmatprep.subr.mxu0 0.0
      %1132 = vmatpush1.msra.mxu0 0.0
      %1133 = vmatprep.subr.mxu0 0.0
      %1134 = vmatpush1.msra.mxu0 0.0
      %1135 = vmatprep.subr.mxu0 0.0
      %1136 = vmatpush1.msra.mxu0 0.0
      %1137 = vmatprep.subr.mxu0 0.0
      %1138 = vmatpush1.msra.mxu0 0.0
      %1139 = vmatprep.subr.mxu0 0.0
      %1140 = vmatpush1.msra.mxu0 0.0
      %1141 = vmatprep.subr.mxu0 0.0
      %1142 = vmatpush1.msra.mxu0 0.0
      %1143 = vmatprep.subr.mxu0 0.0
      %1144 = vmatpush1.msra.mxu0 0.0
      %1145 = vmatprep.subr.mxu0 0.0
      %1146 = vmatpush1.msra.mxu0 0.0
      %1147 = vmatprep.subr.mxu0 0.0
      %1148 = vmatpush1.msra.mxu0 0.0
      %1149 = vmatprep.subr.mxu0 0.0
      %1150 = vmatpush1.msra.mxu0 0.0
      %1151 = vmatprep.subr.mxu0 0.0
      %1152 = vmatpush1.msra.mxu0 0.0
      %1153 = vmatprep.subr.mxu0 0.0
      %1154 = vmatpush1.msra.mxu0 %v290
      %1155 = vmatprep.subr.mxu0 0.0
      %1156 = vmatpush1.msra.mxu0 %v289
      %1157 = vmatprep.subr.mxu0 0.0
      %1158 = vmatpush2.msra.mxu0 0.0
      %1159 = vmatprep.subr.mxu0 0.0
      %1160 = vmatpush2.msra.mxu0 0.0
      %1161 = vmatprep.subr.mxu0 0.0
      %1162 = vmatpush2.msra.mxu0 0.0
      %1163 = vmatprep.subr.mxu0 0.0
      %1164 = vmatpush2.msra.mxu0 0.0
      %1165 = vmatprep.subr.mxu0 0.0
      %1166 = vmatpush2.msra.mxu0 0.0
      %1167 = vmatprep.subr.mxu0 0.0
      %1168 = vmatpush2.msra.mxu0 0.0
      %1169 = vmatprep.subr.mxu0 0.0
      %1170 = vmatpush2.msra.mxu0 0.0
      %1171 = vmatprep.subr.mxu0 0.0
      %1172 = vmatpush2.msra.mxu0 0.0
      %1173 = vmatprep.subr.mxu0 0.0
      %1174 = vmatpush2.msra.mxu0 0.0
      %1175 = vmatprep.subr.mxu0 0.0
      %1176 = vmatpush2.msra.mxu0 0.0
      %1177 = vmatprep.subr.mxu0 0.0
      %1178 = vmatpush2.msra.mxu0 0.0
      %1179 = vmatprep.subr.mxu0 0.0
      %1180 = vmatpush2.msra.mxu0 0.0
      %1181 = vmatprep.subr.mxu0 0.0
      %1182 = vmatpush2.msra.mxu0 0.0
      %1183 = vmatprep.subr.mxu0 0.0
      %1184 = vmatpush2.msra.mxu0 0.0
      %1185 = vmatprep.subr.mxu0 0.0
      %1186 = vmatpush2.msra.mxu0 0.0
      %1187 = vmatprep.subr.mxu0 0.0
      %1188 = vmatpush2.msra.mxu0 0.0
      %1189 = vmatprep.mubr.f32.mxu0 0.0
      %1190 = vmatmul.mubr.f32.gmra.mxu0 %v1123
      %v1191 = vpop.f32.mrf.mxu0
      %v1192 = vadd.f32 0.0, %v1191
      %v1193 = vpop.f32.mrf.mxu0
      %1194 = vdwg.mxu0
      %v1195 = vadd.f32 %v1121, %v1192
      %v1196 = vadd.f32 %v1195, %v593
      %v1197 = vmax.f32 %v1196, 0.0
      %s1198 = scalar_lea.vmem %s280, 8
      %1199 = vst [vmem:[%s1198] sm:$0xf] %v1197
      %v1200 = vld [vmem:[%s900] sm:$0x1f]
      %v1201 = vld [vmem:[%s269] sm:$0x1f]
      %v1203 = vrot.slane %v1200, 1
      %v1204 = vsel %vm296, %v1203, 0
      %1206 = vmatprep.subr.mxu0 0.0
      %1207 = vmatpush1.msra.mxu0 0.0
      %1208 = vmatprep.subr.mxu0 0.0
      %1209 = vmatpush1.msra.mxu0 0.0
      %1210 = vmatprep.subr.mxu0 0.0
      %1211 = vmatpush1.msra.mxu0 0.0
      %1212 = vmatprep.subr.mxu0 0.0
      %1213 = vmatpush1.msra.mxu0 0.0
      %1214 = vmatprep.subr.mxu0 0.0
      %1215 = vmatpush1.msra.mxu0 0.0
      %1216 = vmatprep.subr.mxu0 0.0
      %1217 = vmatpush1.msra.mxu0 0.0
      %1218 = vmatprep.subr.mxu0 0.0
      %1219 = vmatpush1.msra.mxu0 0.0
      %1220 = vmatprep.subr.mxu0 0.0
      %1221 = vmatpush1.msra.mxu0 0.0
      %1222 = vmatprep.subr.mxu0 0.0
      %1223 = vmatpush1.msra.mxu0 0.0
      %1224 = vmatprep.subr.mxu0 0.0
      %1225 = vmatpush1.msra.mxu0 0.0
      %1226 = vmatprep.subr.mxu0 0.0
      %1227 = vmatpush1.msra.mxu0 0.0
      %1228 = vmatprep.subr.mxu0 0.0
      %1229 = vmatpush1.msra.mxu0 0.0
      %1230 = vmatprep.subr.mxu0 0.0
      %1231 = vmatpush1.msra.mxu0 0.0
      %1232 = vmatprep.subr.mxu0 0.0
      %1233 = vmatpush1.msra.mxu0 0.0
      %1234 = vmatprep.subr.mxu0 0.0
      %1235 = vmatpush1.msra.mxu0 %v286
      %1236 = vmatprep.subr.mxu0 0.0
      %1237 = vmatpush1.msra.mxu0 %v285
      %1238 = vmatprep.subr.mxu0 0.0
      %1239 = vmatpush2.msra.mxu0 0.0
      %1240 = vmatprep.subr.mxu0 0.0
      %1241 = vmatpush2.msra.mxu0 0.0
      %1242 = vmatprep.subr.mxu0 0.0
      %1243 = vmatpush2.msra.mxu0 0.0
      %1244 = vmatprep.subr.mxu0 0.0
      %1245 = vmatpush2.msra.mxu0 0.0
      %1246 = vmatprep.subr.mxu0 0.0
      %1247 = vmatpush2.msra.mxu0 0.0
      %1248 = vmatprep.subr.mxu0 0.0
      %1249 = vmatpush2.msra.mxu0 0.0
      %1250 = vmatprep.subr.mxu0 0.0
      %1251 = vmatpush2.msra.mxu0 0.0
      %1252 = vmatprep.subr.mxu0 0.0
      %1253 = vmatpush2.msra.mxu0 0.0
      %1254 = vmatprep.subr.mxu0 0.0
      %1255 = vmatpush2.msra.mxu0 0.0
      %1256 = vmatprep.subr.mxu0 0.0
      %1257 = vmatpush2.msra.mxu0 0.0
      %1258 = vmatprep.subr.mxu0 0.0
      %1259 = vmatpush2.msra.mxu0 0.0
      %1260 = vmatprep.subr.mxu0 0.0
      %1261 = vmatpush2.msra.mxu0 0.0
      %1262 = vmatprep.subr.mxu0 0.0
      %1263 = vmatpush2.msra.mxu0 0.0
      %1264 = vmatprep.subr.mxu0 0.0
      %1265 = vmatpush2.msra.mxu0 0.0
      %1266 = vmatprep.subr.mxu0 0.0
      %1267 = vmatpush2.msra.mxu0 0.0
      %1268 = vmatprep.subr.mxu0 0.0
      %1269 = vmatpush2.msra.mxu0 0.0
      %1270 = vmatprep.mubr.f32.mxu0 0.0
      %1271 = vmatmul.mubr.f32.gmra.mxu0 %v1204
      %v1272 = vpop.f32.mrf.mxu0
      %v1273 = vadd.f32 0.0, %v1272
      %v1274 = vpop.f32.mrf.mxu0
      %1275 = vdwg.mxu0
      %v1276 = vsel %vm296, %v1200, 0
      %1278 = vmatprep.subr.mxu0 0.0
      %1279 = vmatpush1.msra.mxu0 0.0
      %1280 = vmatprep.subr.mxu0 0.0
      %1281 = vmatpush1.msra.mxu0 0.0
      %1282 = vmatprep.subr.mxu0 0.0
      %1283 = vmatpush1.msra.mxu0 0.0
      %1284 = vmatprep.subr.mxu0 0.0
      %1285 = vmatpush1.msra.mxu0 0.0
      %1286 = vmatprep.subr.mxu0 0.0
      %1287 = vmatpush1.msra.mxu0 0.0
      %1288 = vmatprep.subr.mxu0 0.0
      %1289 = vmatpush1.msra.mxu0 0.0
      %1290 = vmatprep.subr.mxu0 0.0
      %1291 = vmatpush1.msra.mxu0 0.0
      %1292 = vmatprep.subr.mxu0 0.0
      %1293 = vmatpush1.msra.mxu0 0.0
      %1294 = vmatprep.subr.mxu0 0.0
      %1295 = vmatpush1.msra.mxu0 0.0
      %1296 = vmatprep.subr.mxu0 0.0
      %1297 = vmatpush1.msra.mxu0 0.0
      %1298 = vmatprep.subr.mxu0 0.0
      %1299 = vmatpush1.msra.mxu0 0.0
      %1300 = vmatprep.subr.mxu0 0.0
      %1301 = vmatpush1.msra.mxu0 0.0
      %1302 = vmatprep.subr.mxu0 0.0
      %1303 = vmatpush1.msra.mxu0 0.0
      %1304 = vmatprep.subr.mxu0 0.0
      %1305 = vmatpush1.msra.mxu0 0.0
      %1306 = vmatprep.subr.mxu0 0.0
      %1307 = vmatpush1.msra.mxu0 %v284
      %1308 = vmatprep.subr.mxu0 0.0
      %1309 = vmatpush1.msra.mxu0 %v283
      %1310 = vmatprep.subr.mxu0 0.0
      %1311 = vmatpush2.msra.mxu0 0.0
      %1312 = vmatprep.subr.mxu0 0.0
      %1313 = vmatpush2.msra.mxu0 0.0
      %1314 = vmatprep.subr.mxu0 0.0
      %1315 = vmatpush2.msra.mxu0 0.0
      %1316 = vmatprep.subr.mxu0 0.0
      %1317 = vmatpush2.msra.mxu0 0.0
      %1318 = vmatprep.subr.mxu0 0.0
      %1319 = vmatpush2.msra.mxu0 0.0
      %1320 = vmatprep.subr.mxu0 0.0
      %1321 = vmatpush2.msra.mxu0 0.0
      %1322 = vmatprep.subr.mxu0 0.0
      %1323 = vmatpush2.msra.mxu0 0.0
      %1324 = vmatprep.subr.mxu0 0.0
      %1325 = vmatpush2.msra.mxu0 0.0
      %1326 = vmatprep.subr.mxu0 0.0
      %1327 = vmatpush2.msra.mxu0 0.0
      %1328 = vmatprep.subr.mxu0 0.0
      %1329 = vmatpush2.msra.mxu0 0.0
      %1330 = vmatprep.subr.mxu0 0.0
      %1331 = vmatpush2.msra.mxu0 0.0
      %1332 = vmatprep.subr.mxu0 0.0
      %1333 = vmatpush2.msra.mxu0 0.0
      %1334 = vmatprep.subr.mxu0 0.0
      %1335 = vmatpush2.msra.mxu0 0.0
      %1336 = vmatprep.subr.mxu0 0.0
      %1337 = vmatpush2.msra.mxu0 0.0
      %1338 = vmatprep.subr.mxu0 0.0
      %1339 = vmatpush2.msra.mxu0 0.0
      %1340 = vmatprep.subr.mxu0 0.0
      %1341 = vmatpush2.msra.mxu0 0.0
      %1342 = vmatprep.mubr.f32.mxu0 0.0
      %1343 = vmatmul.mubr.f32.gmra.mxu0 %v1276
      %v1344 = vpop.f32.mrf.mxu0
      %v1345 = vadd.f32 %v1273, %v1344
      %v1346 = vpop.f32.mrf.mxu0
      %1347 = vdwg.mxu0
      %v1349 = vsel %vm296, %v1201, 0
      %1351 = vmatprep.subr.mxu0 0.0
      %1352 = vmatpush1.msra.mxu0 0.0
      %1353 = vmatprep.subr.mxu0 0.0
      %1354 = vmatpush1.msra.mxu0 0.0
      %1355 = vmatprep.subr.mxu0 0.0
      %1356 = vmatpush1.msra.mxu0 0.0
      %1357 = vmatprep.subr.mxu0 0.0
      %1358 = vmatpush1.msra.mxu0 0.0
      %1359 = vmatprep.subr.mxu0 0.0
      %1360 = vmatpush1.msra.mxu0 0.0
      %1361 = vmatprep.subr.mxu0 0.0
      %1362 = vmatpush1.msra.mxu0 0.0
      %1363 = vmatprep.subr.mxu0 0.0
      %1364 = vmatpush1.msra.mxu0 0.0
      %1365 = vmatprep.subr.mxu0 0.0
      %1366 = vmatpush1.msra.mxu0 0.0
      %1367 = vmatprep.subr.mxu0 0.0
      %1368 = vmatpush1.msra.mxu0 0.0
      %1369 = vmatprep.subr.mxu0 0.0
      %1370 = vmatpush1.msra.mxu0 0.0
      %1371 = vmatprep.subr.mxu0 0.0
      %1372 = vmatpush1.msra.mxu0 0.0
      %1373 = vmatprep.subr.mxu0 0.0
      %1374 = vmatpush1.msra.mxu0 0.0
      %1375 = vmatprep.subr.mxu0 0.0
      %1376 = vmatpush1.msra.mxu0 0.0
      %1377 = vmatprep.subr.mxu0 0.0
      %1378 = vmatpush1.msra.mxu0 0.0
      %1379 = vmatprep.subr.mxu0 0.0
      %1380 = vmatpush1.msra.mxu0 %v288
      %1381 = vmatprep.subr.mxu0 0.0
      %1382 = vmatpush1.msra.mxu0 %v287
      %1383 = vmatprep.subr.mxu0 0.0
      %1384 = vmatpush2.msra.mxu0 0.0
      %1385 = vmatprep.subr.mxu0 0.0
      %1386 = vmatpush2.msra.mxu0 0.0
      %1387 = vmatprep.subr.mxu0 0.0
      %1388 = vmatpush2.msra.mxu0 0.0
      %1389 = vmatprep.subr.mxu0 0.0
      %1390 = vmatpush2.msra.mxu0 0.0
      %1391 = vmatprep.subr.mxu0 0.0
      %1392 = vmatpush2.msra.mxu0 0.0
      %1393 = vmatprep.subr.mxu0 0.0
      %1394 = vmatpush2.msra.mxu0 0.0
      %1395 = vmatprep.subr.mxu0 0.0
      %1396 = vmatpush2.msra.mxu0 0.0
      %1397 = vmatprep.subr.mxu0 0.0
      %1398 = vmatpush2.msra.mxu0 0.0
      %1399 = vmatprep.subr.mxu0 0.0
      %1400 = vmatpush2.msra.mxu0 0.0
      %1401 = vmatprep.subr.mxu0 0.0
      %1402 = vmatpush2.msra.mxu0 0.0
      %1403 = vmatprep.subr.mxu0 0.0
      %1404 = vmatpush2.msra.mxu0 0.0
      %1405 = vmatprep.subr.mxu0 0.0
      %1406 = vmatpush2.msra.mxu0 0.0
      %1407 = vmatprep.subr.mxu0 0.0
      %1408 = vmatpush2.msra.mxu0 0.0
      %1409 = vmatprep.subr.mxu0 0.0
      %1410 = vmatpush2.msra.mxu0 0.0
      %1411 = vmatprep.subr.mxu0 0.0
      %1412 = vmatpush2.msra.mxu0 0.0
      %1413 = vmatprep.subr.mxu0 0.0
      %1414 = vmatpush2.msra.mxu0 0.0
      %1415 = vmatprep.mubr.f32.mxu0 0.0
      %1416 = vmatmul.mubr.f32.gmra.mxu0 %v1349
      %v1417 = vpop.f32.mrf.mxu0
      %v1418 = vadd.f32 0.0, %v1417
      %v1419 = vpop.f32.mrf.mxu0
      %1420 = vdwg.mxu0
      %v1421 = vadd.f32 %v1345, %v1418
      %v1422 = vrot.slane %v1201, 1
      %v1423 = vsel %vm296, %v1422, 0
      %1425 = vmatprep.subr.mxu0 0.0
      %1426 = vmatpush1.msra.mxu0 0.0
      %1427 = vmatprep.subr.mxu0 0.0
      %1428 = vmatpush1.msra.mxu0 0.0
      %1429 = vmatprep.subr.mxu0 0.0
      %1430 = vmatpush1.msra.mxu0 0.0
      %1431 = vmatprep.subr.mxu0 0.0
      %1432 = vmatpush1.msra.mxu0 0.0
      %1433 = vmatprep.subr.mxu0 0.0
      %1434 = vmatpush1.msra.mxu0 0.0
      %1435 = vmatprep.subr.mxu0 0.0
      %1436 = vmatpush1.msra.mxu0 0.0
      %1437 = vmatprep.subr.mxu0 0.0
      %1438 = vmatpush1.msra.mxu0 0.0
      %1439 = vmatprep.subr.mxu0 0.0
      %1440 = vmatpush1.msra.mxu0 0.0
      %1441 = vmatprep.subr.mxu0 0.0
      %1442 = vmatpush1.msra.mxu0 0.0
      %1443 = vmatprep.subr.mxu0 0.0
      %1444 = vmatpush1.msra.mxu0 0.0
      %1445 = vmatprep.subr.mxu0 0.0
      %1446 = vmatpush1.msra.mxu0 0.0
      %1447 = vmatprep.subr.mxu0 0.0
      %1448 = vmatpush1.msra.mxu0 0.0
      %1449 = vmatprep.subr.mxu0 0.0
      %1450 = vmatpush1.msra.mxu0 0.0
      %1451 = vmatprep.subr.mxu0 0.0
      %1452 = vmatpush1.msra.mxu0 0.0
      %1453 = vmatprep.subr.mxu0 0.0
      %1454 = vmatpush1.msra.mxu0 %v290
      %1455 = vmatprep.subr.mxu0 0.0
      %1456 = vmatpush1.msra.mxu0 %v289
      %1457 = vmatprep.subr.mxu0 0.0
      %1458 = vmatpush2.msra.mxu0 0.0
      %1459 = vmatprep.subr.mxu0 0.0
      %1460 = vmatpush2.msra.mxu0 0.0
      %1461 = vmatprep.subr.mxu0 0.0
      %1462 = vmatpush2.msra.mxu0 0.0
      %1463 = vmatprep.subr.mxu0 0.0
      %1464 = vmatpush2.msra.mxu0 0.0
      %1465 = vmatprep.subr.mxu0 0.0
      %1466 = vmatpush2.msra.mxu0 0.0
      %1467 = vmatprep.subr.mxu0 0.0
      %1468 = vmatpush2.msra.mxu0 0.0
      %1469 = vmatprep.subr.mxu0 0.0
      %1470 = vmatpush2.msra.mxu0 0.0
      %1471 = vmatprep.subr.mxu0 0.0
      %1472 = vmatpush2.msra.mxu0 0.0
      %1473 = vmatprep.subr.mxu0 0.0
      %1474 = vmatpush2.msra.mxu0 0.0
      %1475 = vmatprep.subr.mxu0 0.0
      %1476 = vmatpush2.msra.mxu0 0.0
      %1477 = vmatprep.subr.mxu0 0.0
      %1478 = vmatpush2.msra.mxu0 0.0
      %1479 = vmatprep.subr.mxu0 0.0
      %1480 = vmatpush2.msra.mxu0 0.0
      %1481 = vmatprep.subr.mxu0 0.0
      %1482 = vmatpush2.msra.mxu0 0.0
      %1483 = vmatprep.subr.mxu0 0.0
      %1484 = vmatpush2.msra.mxu0 0.0
      %1485 = vmatprep.subr.mxu0 0.0
      %1486 = vmatpush2.msra.mxu0 0.0
      %1487 = vmatprep.subr.mxu0 0.0
      %1488 = vmatpush2.msra.mxu0 0.0
      %1489 = vmatprep.mubr.f32.mxu0 0.0
      %1490 = vmatmul.mubr.f32.gmra.mxu0 %v1423
      %v1491 = vpop.f32.mrf.mxu0
      %v1492 = vadd.f32 0.0, %v1491
      %v1493 = vpop.f32.mrf.mxu0
      %1494 = vdwg.mxu0
      %v1495 = vadd.f32 %v1421, %v1492
      %v1496 = vadd.f32 %v1495, %v593
      %v1497 = vmax.f32 %v1496, 0.0
      %s1498 = scalar_lea.vmem %s280, 12
      %1499 = vst [vmem:[%s1498] sm:$0xf] %v1497
      %s1500 = smul.u32 4, %s20
      %p1501 = scmp.lt.s32.totalorder %s19, 1
      %s1502 = scalar_select %p1501, %s19, 1
      %p1503 = scmp.lt.s32.totalorder %s1500, 3
      %s1504 = scalar_select %p1503, %s1500, 3
      %s1505 = smul.addr %s1502, 4
      %s1506 = sadd.s32 %s1504, %s1505
      %s1507 = smul.addr %s1506, 4
      %s1508 = scalar_lea.vmem %s4, %s1507
      // Predicated region
      $region37: #{_lambda_.4} parent=35 // pred_check
        %p1509 = pneg %p149
      $region38: #{_lambda_.4} parent=35 // pred_check_branch
        %1511 = sbr.rel (%p1509) target = $region40
      $region39: #{_lambda_.4} parent=35 // pred_region
        %s1512 = smul.u32 4, %s20
      $region40: #{_lambda_.4} parent=35 // pred_fallthru
        _
    $region36: #{_lambda_.4} parent=5 // pred_fallthru
      _
    %p1513 = scmp.le.s32.totalorder 2, %s10
    // Predicated region
    $region41: #{_lambda_.4} parent=5 // pred_check
      %p1514 = pneg %p1513
    $region42: #{_lambda_.4} parent=5 // pred_check_branch
      %1516 = sbr.rel (%p1514) target = $region44
    $region43: #{_lambda_.4} parent=5 // pred_region
      %s1517 = ssub.s32 %s10, 2
      // Predicated region
      $region45: #{_lambda_.4} parent=43 // pred_check
        %p1518 = pneg %p155
      $region46: #{_lambda_.4} parent=43 // pred_check_branch
        %1520 = sbr.rel (%p1518) target = $region48
      $region47: #{_lambda_.4} parent=43 // pred_region
        %s1521 = smul.u32 4, %s22
        %p1522 = scmp.lt.s32.totalorder %s21, 1
        %s1523 = scalar_select %p1522, %s21, 1
        %p1524 = scmp.lt.s32.totalorder %s1521, 3
        %s1525 = scalar_select %p1524, %s1521, 3
        %s1526 = smul.addr %s1523, 4
        %s1527 = sadd.s32 %s1525, %s1526
        %s1528 = smul.addr %s1527, 4
        %s1529 = scalar_lea.vmem %s4, %s1528
      $region48: #{_lambda_.4} parent=43 // pred_fallthru
        _
    $region44: #{_lambda_.4} parent=5 // pred_fallthru
      _
  $region6: #{_lambda_.4} parent=0 // loop_footer
    %s14 = sadd.s32 1, %s10
  $region7: #{_lambda_.4} parent=0 // loop_footer_branch
    %9 = sbr.rel target = $region3
  $region8: #{_lambda_.4} parent=0 // loop_exit
    _

// kernel: _lambda_.5
$region0: #{_lambda_.5}
  #allocation0 [shape = 'u32[]', space=smem, size = 0x4, offset = 0x4, fixed_abs, tag = 'smem constant byte address 0x4 - core index']
  #allocation1 [shape = 'u32[144,128]{1,0:T(1,128)}', space=vmem, size = 0x12000, scoped, tag = 'internal scratch']
  %s0 = inlined_call_operand.vmem [shape: f32[2,16,9,8], index: 0, kind: input, shape index: {}, may-alias: {0,1}]
  %s1 = inlined_call_operand.vmem [shape: f32[2,16,9,8], index: 1, kind: input, shape index: {}, may-alias: {0,1}]
  %s2 = inlined_call_operand.vmem [shape: f32[32,128], index: 2, kind: input, shape index: {}]
  %s3 = inlined_call_operand.vmem [shape: f32[1,128], index: 3, kind: input, shape index: {}]
  %s4 = inlined_call_operand.vmem [shape: f32[2,8,8,128], index: 4, kind: output, shape index: {}]
  %s5 = sld [smem:[#allocation0]]
  $region49: #{_lambda_.5} parent=0
    _
  %s7 = ssub.s32 1, %s5
  %s8 = scalar_select 0, %s7, %s5
  loop: start=0, step=1, limit=4
  $region2: #{_lambda_.5} parent=0 // loop_pre_header
    _
  $region3: #{_lambda_.5} parent=0 // loop_header
    %s10 = sphi 0, %s14
    %p11 = scmp.ge.s32.totalorder %s10, 4
    %s17 = sphi 0, %s29
    %s18 = sphi 0, %s25
    %s19 = sphi 0, %s17
    %s20 = sphi 0, %s18
    %s21 = sphi 0, %s19
    %s22 = sphi 0, %s20
    %s34 = sphi 0, %s36
    %s37 = sphi 0, %s34
    %s38 = sphi 0, %s37
    %s54 = sphi 0, %s38
    %s66 = sphi 0, %s68
    %s69 = sphi 0, %s66
    %s70 = sphi 0, %s69
    %s86 = sphi 0, %s70
    %s90 = sphi 0, %s90
    %s92 = sphi 0, %s90
    %s93 = sphi 0, %s92
    %s107 = sphi 0, %s93
    %s111 = sphi 0, %s111
    %s113 = sphi 0, %s111
    %s114 = sphi 0, %s113
    %s128 = sphi 0, %s114
    %s136 = sphi 0, %s138
    %s139 = sphi 0, %s136
    %s140 = sphi 0, %s139
    %s156 = sphi 0, %s140
  $region4: #{_lambda_.5} parent=0 // loop_header_branch
    %13 = sbr.rel (%p11) target = $region8
  $region5: #{_lambda_.5} parent=0 // loop_body
    %s15 = ssub.s32 %s10, 1
    %s16 = ssub.s32 %s10, 2
    %s23 = sadd.s32 1, %s18
    %p24 = scmp.ge.s32.totalorder %s23, 1
    %s25 = scalar_select %p24, 0, %s23
    %s26 = sadd.s32 1, %s17
    %s27 = scalar_select %p24, %s26, %s17
    %p28 = scmp.ge.s32.totalorder %s27, 2
    %s29 = scalar_select %p28, 0, %s27
    %s30 = ssub.s32 %s17, %s29
    %s31 = ssub.s32 %s18, %s25
    %s32 = sor.u32 %s30, %s31
    %p33 = scmp.eq.s32.totalorder %s32, 0
    %s35 = sadd.s32 %s34, 1
    %s36 = scalar_select %p33, %s34, %s35
    %p39 = pneg %p33
    %p40 = scmp.eq.s32.totalorder %s10, 1
    %p41 = por %p39, %p40
    %p42 = scmp.ne.s32.totalorder %s34, %s37
    %p43 = scmp.eq.s32.totalorder %s10, 0
    %p44 = por %p42, %p43
    %p45 = scmp.ne.s32.totalorder %s34, %s37
    %p46 = scmp.eq.s32.totalorder %s15, 1
    %p47 = por %p45, %p46
    %p48 = scmp.ne.s32.totalorder %s37, %s38
    %p49 = scmp.eq.s32.totalorder %s15, 0
    %p50 = por %p48, %p49
    %p51 = scmp.ne.s32.totalorder %s37, %s38
    %p52 = scmp.eq.s32.totalorder %s16, 1
    %p53 = por %p51, %p52
    %p55 = scmp.ne.s32.totalorder %s38, %s54
    %p56 = scmp.eq.s32.totalorder %s16, 0
    %p57 = por %p55, %p56
    %s58 = smul.u32 %s18, 8
    %s59 = sadd.s32 %s58, 8
    %s60 = smul.u32 %s25, 8
    %s61 = sadd.s32 %s60, 8
    %s62 = ssub.s32 %s17, %s29
    %s63 = ssub.s32 %s59, %s61
    %s64 = sor.u32 %s62, %s63
    %p65 = scmp.eq.s32.totalorder %s64, 0
    %s67 = sadd.s32 %s66, 1
    %s68 = scalar_select %p65, %s66, %s67
    %p71 = pneg %p65
    %p72 = scmp.eq.s32.totalorder %s10, 1
    %p73 = por %p71, %p72
    %p74 = scmp.ne.s32.totalorder %s66, %s69
    %p75 = scmp.eq.s32.totalorder %s10, 0
    %p76 = por %p74, %p75
    %p77 = scmp.ne.s32.totalorder %s66, %s69
    %p78 = scmp.eq.s32.totalorder %s15, 1
    %p79 = por %p77, %p78
    %p80 = scmp.ne.s32.totalorder %s69, %s70
    %p81 = scmp.eq.s32.totalorder %s15, 0
    %p82 = por %p80, %p81
    %p83 = scmp.ne.s32.totalorder %s69, %s70
    %p84 = scmp.eq.s32.totalorder %s16, 1
    %p85 = por %p83, %p84
    %p87 = scmp.ne.s32.totalorder %s70, %s86
    %p88 = scmp.eq.s32.totalorder %s16, 0
    %p89 = por %p87, %p88
    %s91 = sadd.s32 %s90, 1
    %p94 = scmp.eq.s32.totalorder %s10, 1
    %p95 = scmp.ne.s32.totalorder %s90, %s92
    %p96 = scmp.eq.s32.totalorder %s10, 0
    %p97 = por %p95, %p96
    %p98 = scmp.ne.s32.totalorder %s90, %s92
    %p99 = scmp.eq.s32.totalorder %s15, 1
    %p100 = por %p98, %p99
    %p101 = scmp.ne.s32.totalorder %s92, %s93
    %p102 = scmp.eq.s32.totalorder %s15, 0
    %p103 = por %p101, %p102
    %p104 = scmp.ne.s32.totalorder %s92, %s93
    %p105 = scmp.eq.s32.totalorder %s16, 1
    %p106 = por %p104, %p105
    %p108 = scmp.ne.s32.totalorder %s93, %s107
    %p109 = scmp.eq.s32.totalorder %s16, 0
    %p110 = por %p108, %p109
    %s112 = sadd.s32 %s111, 1
    %p115 = scmp.eq.s32.totalorder %s10, 1
    %p116 = scmp.ne.s32.totalorder %s111, %s113
    %p117 = scmp.eq.s32.totalorder %s10, 0
    %p118 = por %p116, %p117
    %p119 = scmp.ne.s32.totalorder %s111, %s113
    %p120 = scmp.eq.s32.totalorder %s15, 1
    %p121 = por %p119, %p120
    %p122 = scmp.ne.s32.totalorder %s113, %s114
    %p123 = scmp.eq.s32.totalorder %s15, 0
    %p124 = por %p122, %p123
    %p125 = scmp.ne.s32.totalorder %s113, %s114
    %p126 = scmp.eq.s32.totalorder %s16, 1
    %p127 = por %p125, %p126
    %p129 = scmp.ne.s32.totalorder %s114, %s128
    %p130 = scmp.eq.s32.totalorder %s16, 0
    %p131 = por %p129, %p130
    %s132 = ssub.s32 %s17, %s29
    %s133 = ssub.s32 %s18, %s25
    %s134 = sor.u32 %s132, %s133
    %p135 = scmp.eq.s32.totalorder %s134, 0
    %s137 = sadd.s32 %s136, 1
    %s138 = scalar_select %p135, %s136, %s137
    %p141 = pneg %p135
    %p142 = scmp.eq.s32.totalorder %s10, 1
    %p143 = por %p141, %p142
    %p144 = scmp.ne.s32.totalorder %s136, %s139
    %p145 = scmp.eq.s32.totalorder %s10, 0
    %p146 = por %p144, %p145
    %p147 = scmp.ne.s32.totalorder %s136, %s139
    %p148 = scmp.eq.s32.totalorder %s15, 1
    %p149 = por %p147, %p148
    %p150 = scmp.ne.s32.totalorder %s139, %s140
    %p151 = scmp.eq.s32.totalorder %s15, 0
    %p152 = por %p150, %p151
    %p153 = scmp.ne.s32.totalorder %s139, %s140
    %p154 = scmp.eq.s32.totalorder %s16, 1
    %p155 = por %p153, %p154
    %p157 = scmp.ne.s32.totalorder %s140, %s156
    %p158 = scmp.eq.s32.totalorder %s16, 0
    %p159 = por %p157, %p158
    %p160 = scmp.le.s32.totalorder 1, %s10
    %p161 = scmp.lt.s32.totalorder %s10, 3
    %p162 = pnand %p160, %p161
    %p163 = pneg %p162
    // Predicated region
    $region9: #{_lambda_.5} parent=5 // pred_check
      _
    $region10: #{_lambda_.5} parent=5 // pred_check_branch
      %165 = sbr.rel (%p162) target = $region12
    $region11: #{_lambda_.5} parent=5 // pred_region
      %s166 = ssub.s32 %s10, 1
      // Predicated region
      $region13: #{_lambda_.5} parent=11 // pred_check
        %p167 = pneg %p103
      $region14: #{_lambda_.5} parent=11 // pred_check_branch
        %169 = sbr.rel (%p167) target = $region16
      $region15: #{_lambda_.5} parent=11 // pred_region
        _
      $region16: #{_lambda_.5} parent=11 // pred_fallthru
        _
      // Predicated region
      $region17: #{_lambda_.5} parent=11 // pred_check
        %p170 = pneg %p124
      $region18: #{_lambda_.5} parent=11 // pred_check_branch
        %172 = sbr.rel (%p170) target = $region20
      $region19: #{_lambda_.5} parent=11 // pred_region
        _
      $region20: #{_lambda_.5} parent=11 // pred_fallthru
        _
    $region12: #{_lambda_.5} parent=5 // pred_fallthru
      _
    %p173 = scmp.lt.s32.totalorder %s10, 2
    // Predicated region
    $region21: #{_lambda_.5} parent=5 // pred_check
      %p174 = pneg %p173
    $region22: #{_lambda_.5} parent=5 // pred_check_branch
      %176 = sbr.rel (%p174) target = $region24
    $region23: #{_lambda_.5} parent=5 // pred_region
      // Predicated region
      $region25: #{_lambda_.5} parent=23 // pred_check
        %p177 = pneg %p44
      $region26: #{_lambda_.5} parent=23 // pred_check_branch
        %179 = sbr.rel (%p177) target = $region28
      $region27: #{_lambda_.5} parent=23 // pred_region
        %s180 = smul.u32 8, %s18
        %p181 = scmp.lt.s32.totalorder %s17, 1
        %s182 = scalar_select %p181, %s17, 1
        %p183 = scmp.lt.s32.totalorder %s180, 15
        %s184 = scalar_select %p183, %s180, 15
        %s185 = smul.addr %s184, 2
        %s186 = smul.addr %s182, 32
        %s187 = sadd.s32 %s185, %s186
        %s188 = smul.addr %s187, 8
        %s189 = scalar_lea.vmem %s0, %s188
        %s190 = smul.u32 8, %s18
      $region28: #{_lambda_.5} parent=23 // pred_fallthru
        _
      // Predicated region
      $region29: #{_lambda_.5} parent=23 // pred_check
        %p191 = pneg %p76
      $region30: #{_lambda_.5} parent=23 // pred_check_branch
        %193 = sbr.rel (%p191) target = $region32
      $region31: #{_lambda_.5} parent=23 // pred_region
        %s194 = smul.u32 %s18, 8
        %s195 = sadd.s32 %s194, 8
        %p196 = scmp.lt.s32.totalorder %s17, 1
        %s197 = scalar_select %p196, %s17, 1
        %p198 = scmp.lt.s32.totalorder %s195, 15
        %s199 = scalar_select %p198, %s195, 15
        %s200 = smul.addr %s199, 2
        %s201 = smul.addr %s197, 32
        %s202 = sadd.s32 %s200, %s201
        %s203 = smul.addr %s202, 8
        %s204 = scalar_lea.vmem %s1, %s203
        %s205 = smul.u32 %s18, 8
        %s206 = sadd.s32 %s205, 8
      $region32: #{_lambda_.5} parent=23 // pred_fallthru
        _
    $region24: #{_lambda_.5} parent=5 // pred_fallthru
      _
    %p207 = scmp.le.s32.totalorder 1, %s10
    %p208 = scmp.lt.s32.totalorder %s10, 3
    %p209 = pnand %p207, %p208
    %p210 = pneg %p209
    // Predicated region
    $region33: #{_lambda_.5} parent=5 // pred_check
      _
    $region34: #{_lambda_.5} parent=5 // pred_check_branch
      %212 = sbr.rel (%p209) target = $region36
    $region35: #{_lambda_.5} parent=5 // pred_region
      %s213 = ssub.s32 %s10, 1
      %s214 = smul.u32 8, %s20
      %p215 = scmp.lt.s32.totalorder %s19, 1
      %s216 = scalar_select %p215, %s19, 1
      %p217 = scmp.lt.s32.totalorder %s214, 15
      %s218 = scalar_select %p217, %s214, 15
      %s219 = smul.addr %s218, 2
      %s220 = smul.addr %s216, 32
      %s221 = sadd.s32 %s219, %s220
      %s222 = smul.addr %s221, 8
      %s223 = scalar_lea.vmem %s0, %s222
      %p224 = pneg %p50
      %p225 = pneg %p47
      %s226 = smul.u32 %s20, 8
      %s227 = sadd.s32 %s226, 8
      %p228 = scmp.lt.s32.totalorder %s19, 1
      %s229 = scalar_select %p228, %s19, 1
      %p230 = scmp.lt.s32.totalorder %s227, 15
      %s231 = scalar_select %p230, %s227, 15
      %s232 = smul.addr %s231, 2
      %s233 = smul.addr %s229, 32
      %s234 = sadd.s32 %s232, %s233
      %s235 = smul.addr %s234, 8
      %s236 = scalar_lea.vmem %s1, %s235
      %p237 = pneg %p82
      %p238 = pneg %p79
      %p239 = pneg %p103
      %p240 = pneg %p100
      %p241 = pneg %p124
      %p242 = pneg %p121
      %p243 = pneg %p152
      %p244 = pneg %p149
      %s245 = smul.u32 8, %s20
      %p246 = scmp.lt.s32.totalorder %s19, 1
      %s247 = scalar_select %p246, %s19, 1
      %p248 = scmp.lt.s32.totalorder %s245, 7
      %s249 = scalar_select %p248, %s245, 7
      %s250 = smul.addr %s247, 8
      %s251 = sadd.s32 %s249, %s250
      %s252 = smul.addr %s251, 8
      %s253 = scalar_lea.vmem %s4, %s252
      %s254 = smul.u32 8, %s20
      %p255 = scmp.lt.s32.totalorder %s19, 1
      %s256 = scalar_select %p255, %s19, 1
      %p257 = scmp.lt.s32.totalorder %s254, 15
      %s258 = scalar_select %p257, %s254, 15
      %s259 = smul.addr %s258, 2
      %s260 = smul.addr %s256, 32
      %s261 = sadd.s32 %s259, %s260
      %s262 = smul.addr %s261, 8
      %s263 = scalar_lea.vmem %s0, %s262
      %s264 = smul.u32 8, %s20
      %s265 = smul.u32 %s20, 8
      %s266 = sadd.s32 %s265, 8
      %p267 = scmp.lt.s32.totalorder %s19, 1
      %s268 = scalar_select %p267, %s19, 1
      %p269 = scmp.lt.s32.totalorder %s266, 15
      %s270 = scalar_select %p269, %s266, 15
      %s271 = smul.addr %s270, 2
      %s272 = smul.addr %s268, 32
      %s273 = sadd.s32 %s271, %s272
      %s274 = smul.addr %s273, 8
      %s275 = scalar_lea.vmem %s1, %s274
      %s276 = smul.u32 %s20, 8
      %s277 = sadd.s32 %s276, 8
      %s278 = smul.u32 8, %s20
      %p279 = scmp.lt.s32.totalorder %s19, 1
      %s280 = scalar_select %p279, %s19, 1
      %p281 = scmp.lt.s32.totalorder %s278, 7
      %s282 = scalar_select %p281, %s278, 7
      %s283 = smul.addr %s280, 8
      %s284 = sadd.s32 %s282, %s283
      %s285 = smul.addr %s284, 8
      %s286 = scalar_lea.vmem %s4, %s285
      %s287 = smul.u32 8, %s20
      %v288 = vld [vmem:[%s3] sm:$0x1]
      %v289 = vld [vmem:[%s2] sm:$0xff]
      %v290 = vld [vmem:[%s2 + $0x8] sm:$0xff]
      %v291 = vld [vmem:[%s2 + $0x10] sm:$0xff]
      %v292 = vld [vmem:[%s2 + $0x18] sm:$0xff]
      %v293 = vld [vmem:[%s263] sm:$0xff]
      %v294 = vld [vmem:[%s263 + $0x8] sm:$0x1]
      %s295 = scalar_lea.vmem %s263, 16
      %v296 = vld [vmem:[%s295] sm:$0xff]
      %v297 = vld [vmem:[%s295 + $0x8] sm:$0x1]
      %vm300 = vcmask 1046528
      %v301 = vrot.slane %v293, 1
      %v302 = vrot.slane %v294, 1
      %v303 = vsel %vm300, %v301, %v302
      %vm304 = vcmask 64512
      %v305 = vsel %vm304, %v303, 0
      %307 = vmatprep.subr.mxu0 0.0
      %308 = vmatpush1.msra.mxu0 0.0
      %309 = vmatprep.subr.mxu0 0.0
      %310 = vmatpush1.msra.mxu0 0.0
      %311 = vmatprep.subr.mxu0 0.0
      %312 = vmatpush1.msra.mxu0 0.0
      %313 = vmatprep.subr.mxu0 0.0
      %314 = vmatpush1.msra.mxu0 0.0
      %315 = vmatprep.subr.mxu0 0.0
      %316 = vmatpush1.msra.mxu0 0.0
      %317 = vmatprep.subr.mxu0 0.0
      %318 = vmatpush1.msra.mxu0 0.0
      %319 = vmatprep.subr.mxu0 0.0
      %320 = vmatpush1.msra.mxu0 0.0
      %321 = vmatprep.subr.mxu0 0.0
      %322 = vmatpush1.msra.mxu0 0.0
      %323 = vmatprep.subr.mxu0 0.0
      %324 = vmatpush1.msra.mxu0 0.0
      %325 = vmatprep.subr.mxu0 0.0
      %326 = vmatpush1.msra.mxu0 0.0
      %327 = vmatprep.subr.mxu0 0.0
      %328 = vmatpush1.msra.mxu0 0.0
      %329 = vmatprep.subr.mxu0 0.0
      %330 = vmatpush1.msra.mxu0 0.0
      %331 = vmatprep.subr.mxu0 0.0
      %332 = vmatpush1.msra.mxu0 0.0
      %333 = vmatprep.subr.mxu0 0.0
      %334 = vmatpush1.msra.mxu0 0.0
      %335 = vmatprep.subr.mxu0 0.0
      %336 = vmatpush1.msra.mxu0 0.0
      %337 = vmatprep.subr.mxu0 0.0
      %338 = vmatpush1.msra.mxu0 %v290
      %339 = vmatprep.subr.mxu0 0.0
      %340 = vmatpush2.msra.mxu0 0.0
      %341 = vmatprep.subr.mxu0 0.0
      %342 = vmatpush2.msra.mxu0 0.0
      %343 = vmatprep.subr.mxu0 0.0
      %344 = vmatpush2.msra.mxu0 0.0
      %345 = vmatprep.subr.mxu0 0.0
      %346 = vmatpush2.msra.mxu0 0.0
      %347 = vmatprep.subr.mxu0 0.0
      %348 = vmatpush2.msra.mxu0 0.0
      %349 = vmatprep.subr.mxu0 0.0
      %350 = vmatpush2.msra.mxu0 0.0
      %351 = vmatprep.subr.mxu0 0.0
      %352 = vmatpush2.msra.mxu0 0.0
      %353 = vmatprep.subr.mxu0 0.0
      %354 = vmatpush2.msra.mxu0 0.0
      %355 = vmatprep.subr.mxu0 0.0
      %356 = vmatpush2.msra.mxu0 0.0
      %357 = vmatprep.subr.mxu0 0.0
      %358 = vmatpush2.msra.mxu0 0.0
      %359 = vmatprep.subr.mxu0 0.0
      %360 = vmatpush2.msra.mxu0 0.0
      %361 = vmatprep.subr.mxu0 0.0
      %362 = vmatpush2.msra.mxu0 0.0
      %363 = vmatprep.subr.mxu0 0.0
      %364 = vmatpush2.msra.mxu0 0.0
      %365 = vmatprep.subr.mxu0 0.0
      %366 = vmatpush2.msra.mxu0 0.0
      %367 = vmatprep.subr.mxu0 0.0
      %368 = vmatpush2.msra.mxu0 0.0
      %369 = vmatprep.subr.mxu0 0.0
      %370 = vmatpush2.msra.mxu0 0.0
      %371 = vmatprep.mubr.f32.mxu0 0.0
      %372 = vmatmul.mubr.f32.gmra.mxu0 %v305
      %v373 = vpop.f32.mrf.mxu0
      %v374 = vadd.f32 0.0, %v373
      %v375 = vpop.f32.mrf.mxu0
      %376 = vdwg.mxu0
      %v377 = vsel %vm304, %v293, 0
      %379 = vmatprep.subr.mxu0 0.0
      %380 = vmatpush1.msra.mxu0 0.0
      %381 = vmatprep.subr.mxu0 0.0
      %382 = vmatpush1.msra.mxu0 0.0
      %383 = vmatprep.subr.mxu0 0.0
      %384 = vmatpush1.msra.mxu0 0.0
      %385 = vmatprep.subr.mxu0 0.0
      %386 = vmatpush1.msra.mxu0 0.0
      %387 = vmatprep.subr.mxu0 0.0
      %388 = vmatpush1.msra.mxu0 0.0
      %389 = vmatprep.subr.mxu0 0.0
      %390 = vmatpush1.msra.mxu0 0.0
      %391 = vmatprep.subr.mxu0 0.0
      %392 = vmatpush1.msra.mxu0 0.0
      %393 = vmatprep.subr.mxu0 0.0
      %394 = vmatpush1.msra.mxu0 0.0
      %395 = vmatprep.subr.mxu0 0.0
      %396 = vmatpush1.msra.mxu0 0.0
      %397 = vmatprep.subr.mxu0 0.0
      %398 = vmatpush1.msra.mxu0 0.0
      %399 = vmatprep.subr.mxu0 0.0
      %400 = vmatpush1.msra.mxu0 0.0
      %401 = vmatprep.subr.mxu0 0.0
      %402 = vmatpush1.msra.mxu0 0.0
      %403 = vmatprep.subr.mxu0 0.0
      %404 = vmatpush1.msra.mxu0 0.0
      %405 = vmatprep.subr.mxu0 0.0
      %406 = vmatpush1.msra.mxu0 0.0
      %407 = vmatprep.subr.mxu0 0.0
      %408 = vmatpush1.msra.mxu0 0.0
      %409 = vmatprep.subr.mxu0 0.0
      %410 = vmatpush1.msra.mxu0 %v289
      %411 = vmatprep.subr.mxu0 0.0
      %412 = vmatpush2.msra.mxu0 0.0
      %413 = vmatprep.subr.mxu0 0.0
      %414 = vmatpush2.msra.mxu0 0.0
      %415 = vmatprep.subr.mxu0 0.0
      %416 = vmatpush2.msra.mxu0 0.0
      %417 = vmatprep.subr.mxu0 0.0
      %418 = vmatpush2.msra.mxu0 0.0
      %419 = vmatprep.subr.mxu0 0.0
      %420 = vmatpush2.msra.mxu0 0.0
      %421 = vmatprep.subr.mxu0 0.0
      %422 = vmatpush2.msra.mxu0 0.0
      %423 = vmatprep.subr.mxu0 0.0
      %424 = vmatpush2.msra.mxu0 0.0
      %425 = vmatprep.subr.mxu0 0.0
      %426 = vmatpush2.msra.mxu0 0.0
      %427 = vmatprep.subr.mxu0 0.0
      %428 = vmatpush2.msra.mxu0 0.0
      %429 = vmatprep.subr.mxu0 0.0
      %430 = vmatpush2.msra.mxu0 0.0
      %431 = vmatprep.subr.mxu0 0.0
      %432 = vmatpush2.msra.mxu0 0.0
      %433 = vmatprep.subr.mxu0 0.0
      %434 = vmatpush2.msra.mxu0 0.0
      %435 = vmatprep.subr.mxu0 0.0
      %436 = vmatpush2.msra.mxu0 0.0
      %437 = vmatprep.subr.mxu0 0.0
      %438 = vmatpush2.msra.mxu0 0.0
      %439 = vmatprep.subr.mxu0 0.0
      %440 = vmatpush2.msra.mxu0 0.0
      %441 = vmatprep.subr.mxu0 0.0
      %442 = vmatpush2.msra.mxu0 0.0
      %443 = vmatprep.mubr.f32.mxu0 0.0
      %444 = vmatmul.mubr.f32.gmra.mxu0 %v377
      %v445 = vpop.f32.mrf.mxu0
      %v446 = vadd.f32 %v374, %v445
      %v447 = vpop.f32.mrf.mxu0
      %448 = vdwg.mxu0
      %v450 = vsel %vm304, %v296, 0
      %452 = vmatprep.subr.mxu0 0.0
      %453 = vmatpush1.msra.mxu0 0.0
      %454 = vmatprep.subr.mxu0 0.0
      %455 = vmatpush1.msra.mxu0 0.0
      %456 = vmatprep.subr.mxu0 0.0
      %457 = vmatpush1.msra.mxu0 0.0
      %458 = vmatprep.subr.mxu0 0.0
      %459 = vmatpush1.msra.mxu0 0.0
      %460 = vmatprep.subr.mxu0 0.0
      %461 = vmatpush1.msra.mxu0 0.0
      %462 = vmatprep.subr.mxu0 0.0
      %463 = vmatpush1.msra.mxu0 0.0
      %464 = vmatprep.subr.mxu0 0.0
      %465 = vmatpush1.msra.mxu0 0.0
      %466 = vmatprep.subr.mxu0 0.0
      %467 = vmatpush1.msra.mxu0 0.0
      %468 = vmatprep.subr.mxu0 0.0
      %469 = vmatpush1.msra.mxu0 0.0
      %470 = vmatprep.subr.mxu0 0.0
      %471 = vmatpush1.msra.mxu0 0.0
      %472 = vmatprep.subr.mxu0 0.0
      %473 = vmatpush1.msra.mxu0 0.0
      %474 = vmatprep.subr.mxu0 0.0
      %475 = vmatpush1.msra.mxu0 0.0
      %476 = vmatprep.subr.mxu0 0.0
      %477 = vmatpush1.msra.mxu0 0.0
      %478 = vmatprep.subr.mxu0 0.0
      %479 = vmatpush1.msra.mxu0 0.0
      %480 = vmatprep.subr.mxu0 0.0
      %481 = vmatpush1.msra.mxu0 0.0
      %482 = vmatprep.subr.mxu0 0.0
      %483 = vmatpush1.msra.mxu0 %v291
      %484 = vmatprep.subr.mxu0 0.0
      %485 = vmatpush2.msra.mxu0 0.0
      %486 = vmatprep.subr.mxu0 0.0
      %487 = vmatpush2.msra.mxu0 0.0
      %488 = vmatprep.subr.mxu0 0.0
      %489 = vmatpush2.msra.mxu0 0.0
      %490 = vmatprep.subr.mxu0 0.0
      %491 = vmatpush2.msra.mxu0 0.0
      %492 = vmatprep.subr.mxu0 0.0
      %493 = vmatpush2.msra.mxu0 0.0
      %494 = vmatprep.subr.mxu0 0.0
      %495 = vmatpush2.msra.mxu0 0.0
      %496 = vmatprep.subr.mxu0 0.0
      %497 = vmatpush2.msra.mxu0 0.0
      %498 = vmatprep.subr.mxu0 0.0
      %499 = vmatpush2.msra.mxu0 0.0
      %500 = vmatprep.subr.mxu0 0.0
      %501 = vmatpush2.msra.mxu0 0.0
      %502 = vmatprep.subr.mxu0 0.0
      %503 = vmatpush2.msra.mxu0 0.0
      %504 = vmatprep.subr.mxu0 0.0
      %505 = vmatpush2.msra.mxu0 0.0
      %506 = vmatprep.subr.mxu0 0.0
      %507 = vmatpush2.msra.mxu0 0.0
      %508 = vmatprep.subr.mxu0 0.0
      %509 = vmatpush2.msra.mxu0 0.0
      %510 = vmatprep.subr.mxu0 0.0
      %511 = vmatpush2.msra.mxu0 0.0
      %512 = vmatprep.subr.mxu0 0.0
      %513 = vmatpush2.msra.mxu0 0.0
      %514 = vmatprep.subr.mxu0 0.0
      %515 = vmatpush2.msra.mxu0 0.0
      %516 = vmatprep.mubr.f32.mxu0 0.0
      %517 = vmatmul.mubr.f32.gmra.mxu0 %v450
      %v518 = vpop.f32.mrf.mxu0
      %v519 = vadd.f32 0.0, %v518
      %v520 = vpop.f32.mrf.mxu0
      %521 = vdwg.mxu0
      %v522 = vadd.f32 %v446, %v519
      %v524 = vrot.slane %v296, 1
      %v525 = vrot.slane %v297, 1
      %v526 = vsel %vm300, %v524, %v525
      %v527 = vsel %vm304, %v526, 0
      %529 = vmatprep.subr.mxu0 0.0
      %530 = vmatpush1.msra.mxu0 0.0
      %531 = vmatprep.subr.mxu0 0.0
      %532 = vmatpush1.msra.mxu0 0.0
      %533 = vmatprep.subr.mxu0 0.0
      %534 = vmatpush1.msra.mxu0 0.0
      %535 = vmatprep.subr.mxu0 0.0
      %536 = vmatpush1.msra.mxu0 0.0
      %537 = vmatprep.subr.mxu0 0.0
      %538 = vmatpush1.msra.mxu0 0.0
      %539 = vmatprep.subr.mxu0 0.0
      %540 = vmatpush1.msra.mxu0 0.0
      %541 = vmatprep.subr.mxu0 0.0
      %542 = vmatpush1.msra.mxu0 0.0
      %543 = vmatprep.subr.mxu0 0.0
      %544 = vmatpush1.msra.mxu0 0.0
      %545 = vmatprep.subr.mxu0 0.0
      %546 = vmatpush1.msra.mxu0 0.0
      %547 = vmatprep.subr.mxu0 0.0
      %548 = vmatpush1.msra.mxu0 0.0
      %549 = vmatprep.subr.mxu0 0.0
      %550 = vmatpush1.msra.mxu0 0.0
      %551 = vmatprep.subr.mxu0 0.0
      %552 = vmatpush1.msra.mxu0 0.0
      %553 = vmatprep.subr.mxu0 0.0
      %554 = vmatpush1.msra.mxu0 0.0
      %555 = vmatprep.subr.mxu0 0.0
      %556 = vmatpush1.msra.mxu0 0.0
      %557 = vmatprep.subr.mxu0 0.0
      %558 = vmatpush1.msra.mxu0 0.0
      %559 = vmatprep.subr.mxu0 0.0
      %560 = vmatpush1.msra.mxu0 %v292
      %561 = vmatprep.subr.mxu0 0.0
      %562 = vmatpush2.msra.mxu0 0.0
      %563 = vmatprep.subr.mxu0 0.0
      %564 = vmatpush2.msra.mxu0 0.0
      %565 = vmatprep.subr.mxu0 0.0
      %566 = vmatpush2.msra.mxu0 0.0
      %567 = vmatprep.subr.mxu0 0.0
      %568 = vmatpush2.msra.mxu0 0.0
      %569 = vmatprep.subr.mxu0 0.0
      %570 = vmatpush2.msra.mxu0 0.0
      %571 = vmatprep.subr.mxu0 0.0
      %572 = vmatpush2.msra.mxu0 0.0
      %573 = vmatprep.subr.mxu0 0.0
      %574 = vmatpush2.msra.mxu0 0.0
      %575 = vmatprep.subr.mxu0 0.0
      %576 = vmatpush2.msra.mxu0 0.0
      %577 = vmatprep.subr.mxu0 0.0
      %578 = vmatpush2.msra.mxu0 0.0
      %579 = vmatprep.subr.mxu0 0.0
      %580 = vmatpush2.msra.mxu0 0.0
      %581 = vmatprep.subr.mxu0 0.0
      %582 = vmatpush2.msra.mxu0 0.0
      %583 = vmatprep.subr.mxu0 0.0
      %584 = vmatpush2.msra.mxu0 0.0
      %585 = vmatprep.subr.mxu0 0.0
      %586 = vmatpush2.msra.mxu0 0.0
      %587 = vmatprep.subr.mxu0 0.0
      %588 = vmatpush2.msra.mxu0 0.0
      %589 = vmatprep.subr.mxu0 0.0
      %590 = vmatpush2.msra.mxu0 0.0
      %591 = vmatprep.subr.mxu0 0.0
      %592 = vmatpush2.msra.mxu0 0.0
      %593 = vmatprep.mubr.f32.mxu0 0.0
      %594 = vmatmul.mubr.f32.gmra.mxu0 %v527
      %v595 = vpop.f32.mrf.mxu0
      %v596 = vadd.f32 0.0, %v595
      %v597 = vpop.f32.mrf.mxu0
      %598 = vdwg.mxu0
      %v599 = vadd.f32 %v522, %v596
      %v601 = vlaneseq
      %v602 = vshrl.u32 %v601, 7
      %v603 = vsub.s32 0, %v602
      %v604 = vrot.slane %v288, %v603
      %v606 = vadd.f32 %v599, %v604
      %v607 = vmax.f32 %v606, 0.0
      %608 = vst [vmem:[%s286] sm:$0xff] %v607
      %v609 = vld [vmem:[%s295] sm:$0xff]
      %v610 = vld [vmem:[%s295 + $0x8] sm:$0x1]
      %s611 = scalar_lea.vmem %s263, 32
      %v612 = vld [vmem:[%s611] sm:$0xff]
      %v613 = vld [vmem:[%s611 + $0x8] sm:$0x1]
      %v616 = vrot.slane %v609, 1
      %v617 = vrot.slane %v610, 1
      %v618 = vsel %vm300, %v616, %v617
      %v619 = vsel %vm304, %v618, 0
      %621 = vmatprep.subr.mxu0 0.0
      %622 = vmatpush1.msra.mxu0 0.0
      %623 = vmatprep.subr.mxu0 0.0
      %624 = vmatpush1.msra.mxu0 0.0
      %625 = vmatprep.subr.mxu0 0.0
      %626 = vmatpush1.msra.mxu0 0.0
      %627 = vmatprep.subr.mxu0 0.0
      %628 = vmatpush1.msra.mxu0 0.0
      %629 = vmatprep.subr.mxu0 0.0
      %630 = vmatpush1.msra.mxu0 0.0
      %631 = vmatprep.subr.mxu0 0.0
      %632 = vmatpush1.msra.mxu0 0.0
      %633 = vmatprep.subr.mxu0 0.0
      %634 = vmatpush1.msra.mxu0 0.0
      %635 = vmatprep.subr.mxu0 0.0
      %636 = vmatpush1.msra.mxu0 0.0
      %637 = vmatprep.subr.mxu0 0.0
      %638 = vmatpush1.msra.mxu0 0.0
      %639 = vmatprep.subr.mxu0 0.0
      %640 = vmatpush1.msra.mxu0 0.0
      %641 = vmatprep.subr.mxu0 0.0
      %642 = vmatpush1.msra.mxu0 0.0
      %643 = vmatprep.subr.mxu0 0.0
      %644 = vmatpush1.msra.mxu0 0.0
      %645 = vmatprep.subr.mxu0 0.0
      %646 = vmatpush1.msra.mxu0 0.0
      %647 = vmatprep.subr.mxu0 0.0
      %648 = vmatpush1.msra.mxu0 0.0
      %649 = vmatprep.subr.mxu0 0.0
      %650 = vmatpush1.msra.mxu0 0.0
      %651 = vmatprep.subr.mxu0 0.0
      %652 = vmatpush1.msra.mxu0 %v290
      %653 = vmatprep.subr.mxu0 0.0
      %654 = vmatpush2.msra.mxu0 0.0
      %655 = vmatprep.subr.mxu0 0.0
      %656 = vmatpush2.msra.mxu0 0.0
      %657 = vmatprep.subr.mxu0 0.0
      %658 = vmatpush2.msra.mxu0 0.0
      %659 = vmatprep.subr.mxu0 0.0
      %660 = vmatpush2.msra.mxu0 0.0
      %661 = vmatprep.subr.mxu0 0.0
      %662 = vmatpush2.msra.mxu0 0.0
      %663 = vmatprep.subr.mxu0 0.0
      %664 = vmatpush2.msra.mxu0 0.0
      %665 = vmatprep.subr.mxu0 0.0
      %666 = vmatpush2.msra.mxu0 0.0
      %667 = vmatprep.subr.mxu0 0.0
      %668 = vmatpush2.msra.mxu0 0.0
      %669 = vmatprep.subr.mxu0 0.0
      %670 = vmatpush2.msra.mxu0 0.0
      %671 = vmatprep.subr.mxu0 0.0
      %672 = vmatpush2.msra.mxu0 0.0
      %673 = vmatprep.subr.mxu0 0.0
      %674 = vmatpush2.msra.mxu0 0.0
      %675 = vmatprep.subr.mxu0 0.0
      %676 = vmatpush2.msra.mxu0 0.0
      %677 = vmatprep.subr.mxu0 0.0
      %678 = vmatpush2.msra.mxu0 0.0
      %679 = vmatprep.subr.mxu0 0.0
      %680 = vmatpush2.msra.mxu0 0.0
      %681 = vmatprep.subr.mxu0 0.0
      %682 = vmatpush2.msra.mxu0 0.0
      %683 = vmatprep.subr.mxu0 0.0
      %684 = vmatpush2.msra.mxu0 0.0
      %685 = vmatprep.mubr.f32.mxu0 0.0
      %686 = vmatmul.mubr.f32.gmra.mxu0 %v619
      %v687 = vpop.f32.mrf.mxu0
      %v688 = vadd.f32 0.0, %v687
      %v689 = vpop.f32.mrf.mxu0
      %690 = vdwg.mxu0
      %v691 = vsel %vm304, %v609, 0
      %693 = vmatprep.subr.mxu0 0.0
      %694 = vmatpush1.msra.mxu0 0.0
      %695 = vmatprep.subr.mxu0 0.0
      %696 = vmatpush1.msra.mxu0 0.0
      %697 = vmatprep.subr.mxu0 0.0
      %698 = vmatpush1.msra.mxu0 0.0
      %699 = vmatprep.subr.mxu0 0.0
      %700 = vmatpush1.msra.mxu0 0.0
      %701 = vmatprep.subr.mxu0 0.0
      %702 = vmatpush1.msra.mxu0 0.0
      %703 = vmatprep.subr.mxu0 0.0
      %704 = vmatpush1.msra.mxu0 0.0
      %705 = vmatprep.subr.mxu0 0.0
      %706 = vmatpush1.msra.mxu0 0.0
      %707 = vmatprep.subr.mxu0 0.0
      %708 = vmatpush1.msra.mxu0 0.0
      %709 = vmatprep.subr.mxu0 0.0
      %710 = vmatpush1.msra.mxu0 0.0
      %711 = vmatprep.subr.mxu0 0.0
      %712 = vmatpush1.msra.mxu0 0.0
      %713 = vmatprep.subr.mxu0 0.0
      %714 = vmatpush1.msra.mxu0 0.0
      %715 = vmatprep.subr.mxu0 0.0
      %716 = vmatpush1.msra.mxu0 0.0
      %717 = vmatprep.subr.mxu0 0.0
      %718 = vmatpush1.msra.mxu0 0.0
      %719 = vmatprep.subr.mxu0 0.0
      %720 = vmatpush1.msra.mxu0 0.0
      %721 = vmatprep.subr.mxu0 0.0
      %722 = vmatpush1.msra.mxu0 0.0
      %723 = vmatprep.subr.mxu0 0.0
      %724 = vmatpush1.msra.mxu0 %v289
      %725 = vmatprep.subr.mxu0 0.0
      %726 = vmatpush2.msra.mxu0 0.0
      %727 = vmatprep.subr.mxu0 0.0
      %728 = vmatpush2.msra.mxu0 0.0
      %729 = vmatprep.subr.mxu0 0.0
      %730 = vmatpush2.msra.mxu0 0.0
      %731 = vmatprep.subr.mxu0 0.0
      %732 = vmatpush2.msra.mxu0 0.0
      %733 = vmatprep.subr.mxu0 0.0
      %734 = vmatpush2.msra.mxu0 0.0
      %735 = vmatprep.subr.mxu0 0.0
      %736 = vmatpush2.msra.mxu0 0.0
      %737 = vmatprep.subr.mxu0 0.0
      %738 = vmatpush2.msra.mxu0 0.0
      %739 = vmatprep.subr.mxu0 0.0
      %740 = vmatpush2.msra.mxu0 0.0
      %741 = vmatprep.subr.mxu0 0.0
      %742 = vmatpush2.msra.mxu0 0.0
      %743 = vmatprep.subr.mxu0 0.0
      %744 = vmatpush2.msra.mxu0 0.0
      %745 = vmatprep.subr.mxu0 0.0
      %746 = vmatpush2.msra.mxu0 0.0
      %747 = vmatprep.subr.mxu0 0.0
      %748 = vmatpush2.msra.mxu0 0.0
      %749 = vmatprep.subr.mxu0 0.0
      %750 = vmatpush2.msra.mxu0 0.0
      %751 = vmatprep.subr.mxu0 0.0
      %752 = vmatpush2.msra.mxu0 0.0
      %753 = vmatprep.subr.mxu0 0.0
      %754 = vmatpush2.msra.mxu0 0.0
      %755 = vmatprep.subr.mxu0 0.0
      %756 = vmatpush2.msra.mxu0 0.0
      %757 = vmatprep.mubr.f32.mxu0 0.0
      %758 = vmatmul.mubr.f32.gmra.mxu0 %v691
      %v759 = vpop.f32.mrf.mxu0
      %v760 = vadd.f32 %v688, %v759
      %v761 = vpop.f32.mrf.mxu0
      %762 = vdwg.mxu0
      %v764 = vsel %vm304, %v612, 0
      %766 = vmatprep.subr.mxu0 0.0
      %767 = vmatpush1.msra.mxu0 0.0
      %768 = vmatprep.subr.mxu0 0.0
      %769 = vmatpush1.msra.mxu0 0.0
      %770 = vmatprep.subr.mxu0 0.0
      %771 = vmatpush1.msra.mxu0 0.0
      %772 = vmatprep.subr.mxu0 0.0
      %773 = vmatpush1.msra.mxu0 0.0
      %774 = vmatprep.subr.mxu0 0.0
      %775 = vmatpush1.msra.mxu0 0.0
      %776 = vmatprep.subr.mxu0 0.0
      %777 = vmatpush1.msra.mxu0 0.0
      %778 = vmatprep.subr.mxu0 0.0
      %779 = vmatpush1.msra.mxu0 0.0
      %780 = vmatprep.subr.mxu0 0.0
      %781 = vmatpush1.msra.mxu0 0.0
      %782 = vmatprep.subr.mxu0 0.0
      %783 = vmatpush1.msra.mxu0 0.0
      %784 = vmatprep.subr.mxu0 0.0
      %785 = vmatpush1.msra.mxu0 0.0
      %786 = vmatprep.subr.mxu0 0.0
      %787 = vmatpush1.msra.mxu0 0.0
      %788 = vmatprep.subr.mxu0 0.0
      %789 = vmatpush1.msra.mxu0 0.0
      %790 = vmatprep.subr.mxu0 0.0
      %791 = vmatpush1.msra.mxu0 0.0
      %792 = vmatprep.subr.mxu0 0.0
      %793 = vmatpush1.msra.mxu0 0.0
      %794 = vmatprep.subr.mxu0 0.0
      %795 = vmatpush1.msra.mxu0 0.0
      %796 = vmatprep.subr.mxu0 0.0
      %797 = vmatpush1.msra.mxu0 %v291
      %798 = vmatprep.subr.mxu0 0.0
      %799 = vmatpush2.msra.mxu0 0.0
      %800 = vmatprep.subr.mxu0 0.0
      %801 = vmatpush2.msra.mxu0 0.0
      %802 = vmatprep.subr.mxu0 0.0
      %803 = vmatpush2.msra.mxu0 0.0
      %804 = vmatprep.subr.mxu0 0.0
      %805 = vmatpush2.msra.mxu0 0.0
      %806 = vmatprep.subr.mxu0 0.0
      %807 = vmatpush2.msra.mxu0 0.0
      %808 = vmatprep.subr.mxu0 0.0
      %809 = vmatpush2.msra.mxu0 0.0
      %810 = vmatprep.subr.mxu0 0.0
      %811 = vmatpush2.msra.mxu0 0.0
      %812 = vmatprep.subr.mxu0 0.0
      %813 = vmatpush2.msra.mxu0 0.0
      %814 = vmatprep.subr.mxu0 0.0
      %815 = vmatpush2.msra.mxu0 0.0
      %816 = vmatprep.subr.mxu0 0.0
      %817 = vmatpush2.msra.mxu0 0.0
      %818 = vmatprep.subr.mxu0 0.0
      %819 = vmatpush2.msra.mxu0 0.0
      %820 = vmatprep.subr.mxu0 0.0
      %821 = vmatpush2.msra.mxu0 0.0
      %822 = vmatprep.subr.mxu0 0.0
      %823 = vmatpush2.msra.mxu0 0.0
      %824 = vmatprep.subr.mxu0 0.0
      %825 = vmatpush2.msra.mxu0 0.0
      %826 = vmatprep.subr.mxu0 0.0
      %827 = vmatpush2.msra.mxu0 0.0
      %828 = vmatprep.subr.mxu0 0.0
      %829 = vmatpush2.msra.mxu0 0.0
      %830 = vmatprep.mubr.f32.mxu0 0.0
      %831 = vmatmul.mubr.f32.gmra.mxu0 %v764
      %v832 = vpop.f32.mrf.mxu0
      %v833 = vadd.f32 0.0, %v832
      %v834 = vpop.f32.mrf.mxu0
      %835 = vdwg.mxu0
      %v836 = vadd.f32 %v760, %v833
      %v838 = vrot.slane %v612, 1
      %v839 = vrot.slane %v613, 1
      %v840 = vsel %vm300, %v838, %v839
      %v841 = vsel %vm304, %v840, 0
      %843 = vmatprep.subr.mxu0 0.0
      %844 = vmatpush1.msra.mxu0 0.0
      %845 = vmatprep.subr.mxu0 0.0
      %846 = vmatpush1.msra.mxu0 0.0
      %847 = vmatprep.subr.mxu0 0.0
      %848 = vmatpush1.msra.mxu0 0.0
      %849 = vmatprep.subr.mxu0 0.0
      %850 = vmatpush1.msra.mxu0 0.0
      %851 = vmatprep.subr.mxu0 0.0
      %852 = vmatpush1.msra.mxu0 0.0
      %853 = vmatprep.subr.mxu0 0.0
      %854 = vmatpush1.msra.mxu0 0.0
      %855 = vmatprep.subr.mxu0 0.0
      %856 = vmatpush1.msra.mxu0 0.0
      %857 = vmatprep.subr.mxu0 0.0
      %858 = vmatpush1.msra.mxu0 0.0
      %859 = vmatprep.subr.mxu0 0.0
      %860 = vmatpush1.msra.mxu0 0.0
      %861 = vmatprep.subr.mxu0 0.0
      %862 = vmatpush1.msra.mxu0 0.0
      %863 = vmatprep.subr.mxu0 0.0
      %864 = vmatpush1.msra.mxu0 0.0
      %865 = vmatprep.subr.mxu0 0.0
      %866 = vmatpush1.msra.mxu0 0.0
      %867 = vmatprep.subr.mxu0 0.0
      %868 = vmatpush1.msra.mxu0 0.0
      %869 = vmatprep.subr.mxu0 0.0
      %870 = vmatpush1.msra.mxu0 0.0
      %871 = vmatprep.subr.mxu0 0.0
      %872 = vmatpush1.msra.mxu0 0.0
      %873 = vmatprep.subr.mxu0 0.0
      %874 = vmatpush1.msra.mxu0 %v292
      %875 = vmatprep.subr.mxu0 0.0
      %876 = vmatpush2.msra.mxu0 0.0
      %877 = vmatprep.subr.mxu0 0.0
      %878 = vmatpush2.msra.mxu0 0.0
      %879 = vmatprep.subr.mxu0 0.0
      %880 = vmatpush2.msra.mxu0 0.0
      %881 = vmatprep.subr.mxu0 0.0
      %882 = vmatpush2.msra.mxu0 0.0
      %883 = vmatprep.subr.mxu0 0.0
      %884 = vmatpush2.msra.mxu0 0.0
      %885 = vmatprep.subr.mxu0 0.0
      %886 = vmatpush2.msra.mxu0 0.0
      %887 = vmatprep.subr.mxu0 0.0
      %888 = vmatpush2.msra.mxu0 0.0
      %889 = vmatprep.subr.mxu0 0.0
      %890 = vmatpush2.msra.mxu0 0.0
      %891 = vmatprep.subr.mxu0 0.0
      %892 = vmatpush2.msra.mxu0 0.0
      %893 = vmatprep.subr.mxu0 0.0
      %894 = vmatpush2.msra.mxu0 0.0
      %895 = vmatprep.subr.mxu0 0.0
      %896 = vmatpush2.msra.mxu0 0.0
      %897 = vmatprep.subr.mxu0 0.0
      %898 = vmatpush2.msra.mxu0 0.0
      %899 = vmatprep.subr.mxu0 0.0
      %900 = vmatpush2.msra.mxu0 0.0
      %901 = vmatprep.subr.mxu0 0.0
      %902 = vmatpush2.msra.mxu0 0.0
      %903 = vmatprep.subr.mxu0 0.0
      %904 = vmatpush2.msra.mxu0 0.0
      %905 = vmatprep.subr.mxu0 0.0
      %906 = vmatpush2.msra.mxu0 0.0
      %907 = vmatprep.mubr.f32.mxu0 0.0
      %908 = vmatmul.mubr.f32.gmra.mxu0 %v841
      %v909 = vpop.f32.mrf.mxu0
      %v910 = vadd.f32 0.0, %v909
      %v911 = vpop.f32.mrf.mxu0
      %912 = vdwg.mxu0
      %v913 = vadd.f32 %v836, %v910
      %v914 = vadd.f32 %v913, %v604
      %v915 = vmax.f32 %v914, 0.0
      %s916 = scalar_lea.vmem %s286, 8
      %917 = vst [vmem:[%s916] sm:$0xff] %v915
      %v918 = vld [vmem:[%s611] sm:$0xff]
      %v919 = vld [vmem:[%s611 + $0x8] sm:$0x1]
      %s920 = scalar_lea.vmem %s263, 48
      %v921 = vld [vmem:[%s920] sm:$0xff]
      %v922 = vld [vmem:[%s920 + $0x8] sm:$0x1]
      %v925 = vrot.slane %v918, 1
      %v926 = vrot.slane %v919, 1
      %v927 = vsel %vm300, %v925, %v926
      %v928 = vsel %vm304, %v927, 0
      %930 = vmatprep.subr.mxu0 0.0
      %931 = vmatpush1.msra.mxu0 0.0
      %932 = vmatprep.subr.mxu0 0.0
      %933 = vmatpush1.msra.mxu0 0.0
      %934 = vmatprep.subr.mxu0 0.0
      %935 = vmatpush1.msra.mxu0 0.0
      %936 = vmatprep.subr.mxu0 0.0
      %937 = vmatpush1.msra.mxu0 0.0
      %938 = vmatprep.subr.mxu0 0.0
      %939 = vmatpush1.msra.mxu0 0.0
      %940 = vmatprep.subr.mxu0 0.0
      %941 = vmatpush1.msra.mxu0 0.0
      %942 = vmatprep.subr.mxu0 0.0
      %943 = vmatpush1.msra.mxu0 0.0
      %944 = vmatprep.subr.mxu0 0.0
      %945 = vmatpush1.msra.mxu0 0.0
      %946 = vmatprep.subr.mxu0 0.0
      %947 = vmatpush1.msra.mxu0 0.0
      %948 = vmatprep.subr.mxu0 0.0
      %949 = vmatpush1.msra.mxu0 0.0
      %950 = vmatprep.subr.mxu0 0.0
      %951 = vmatpush1.msra.mxu0 0.0
      %952 = vmatprep.subr.mxu0 0.0
      %953 = vmatpush1.msra.mxu0 0.0
      %954 = vmatprep.subr.mxu0 0.0
      %955 = vmatpush1.msra.mxu0 0.0
      %956 = vmatprep.subr.mxu0 0.0
      %957 = vmatpush1.msra.mxu0 0.0
      %958 = vmatprep.subr.mxu0 0.0
      %959 = vmatpush1.msra.mxu0 0.0
      %960 = vmatprep.subr.mxu0 0.0
      %961 = vmatpush1.msra.mxu0 %v290
      %962 = vmatprep.subr.mxu0 0.0
      %963 = vmatpush2.msra.mxu0 0.0
      %964 = vmatprep.subr.mxu0 0.0
      %965 = vmatpush2.msra.mxu0 0.0
      %966 = vmatprep.subr.mxu0 0.0
      %967 = vmatpush2.msra.mxu0 0.0
      %968 = vmatprep.subr.mxu0 0.0
      %969 = vmatpush2.msra.mxu0 0.0
      %970 = vmatprep.subr.mxu0 0.0
      %971 = vmatpush2.msra.mxu0 0.0
      %972 = vmatprep.subr.mxu0 0.0
      %973 = vmatpush2.msra.mxu0 0.0
      %974 = vmatprep.subr.mxu0 0.0
      %975 = vmatpush2.msra.mxu0 0.0
      %976 = vmatprep.subr.mxu0 0.0
      %977 = vmatpush2.msra.mxu0 0.0
      %978 = vmatprep.subr.mxu0 0.0
      %979 = vmatpush2.msra.mxu0 0.0
      %980 = vmatprep.subr.mxu0 0.0
      %981 = vmatpush2.msra.mxu0 0.0
      %982 = vmatprep.subr.mxu0 0.0
      %983 = vmatpush2.msra.mxu0 0.0
      %984 = vmatprep.subr.mxu0 0.0
      %985 = vmatpush2.msra.mxu0 0.0
      %986 = vmatprep.subr.mxu0 0.0
      %987 = vmatpush2.msra.mxu0 0.0
      %988 = vmatprep.subr.mxu0 0.0
      %989 = vmatpush2.msra.mxu0 0.0
      %990 = vmatprep.subr.mxu0 0.0
      %991 = vmatpush2.msra.mxu0 0.0
      %992 = vmatprep.subr.mxu0 0.0
      %993 = vmatpush2.msra.mxu0 0.0
      %994 = vmatprep.mubr.f32.mxu0 0.0
      %995 = vmatmul.mubr.f32.gmra.mxu0 %v928
      %v996 = vpop.f32.mrf.mxu0
      %v997 = vadd.f32 0.0, %v996
      %v998 = vpop.f32.mrf.mxu0
      %999 = vdwg.mxu0
      %v1000 = vsel %vm304, %v918, 0
      %1002 = vmatprep.subr.mxu0 0.0
      %1003 = vmatpush1.msra.mxu0 0.0
      %1004 = vmatprep.subr.mxu0 0.0
      %1005 = vmatpush1.msra.mxu0 0.0
      %1006 = vmatprep.subr.mxu0 0.0
      %1007 = vmatpush1.msra.mxu0 0.0
      %1008 = vmatprep.subr.mxu0 0.0
      %1009 = vmatpush1.msra.mxu0 0.0
      %1010 = vmatprep.subr.mxu0 0.0
      %1011 = vmatpush1.msra.mxu0 0.0
      %1012 = vmatprep.subr.mxu0 0.0
      %1013 = vmatpush1.msra.mxu0 0.0
      %1014 = vmatprep.subr.mxu0 0.0
      %1015 = vmatpush1.msra.mxu0 0.0
      %1016 = vmatprep.subr.mxu0 0.0
      %1017 = vmatpush1.msra.mxu0 0.0
      %1018 = vmatprep.subr.mxu0 0.0
      %1019 = vmatpush1.msra.mxu0 0.0
      %1020 = vmatprep.subr.mxu0 0.0
      %1021 = vmatpush1.msra.mxu0 0.0
      %1022 = vmatprep.subr.mxu0 0.0
      %1023 = vmatpush1.msra.mxu0 0.0
      %1024 = vmatprep.subr.mxu0 0.0
      %1025 = vmatpush1.msra.mxu0 0.0
      %1026 = vmatprep.subr.mxu0 0.0
      %1027 = vmatpush1.msra.mxu0 0.0
      %1028 = vmatprep.subr.mxu0 0.0
      %1029 = vmatpush1.msra.mxu0 0.0
      %1030 = vmatprep.subr.mxu0 0.0
      %1031 = vmatpush1.msra.mxu0 0.0
      %1032 = vmatprep.subr.mxu0 0.0
      %1033 = vmatpush1.msra.mxu0 %v289
      %1034 = vmatprep.subr.mxu0 0.0
      %1035 = vmatpush2.msra.mxu0 0.0
      %1036 = vmatprep.subr.mxu0 0.0
      %1037 = vmatpush2.msra.mxu0 0.0
      %1038 = vmatprep.subr.mxu0 0.0
      %1039 = vmatpush2.msra.mxu0 0.0
      %1040 = vmatprep.subr.mxu0 0.0
      %1041 = vmatpush2.msra.mxu0 0.0
      %1042 = vmatprep.subr.mxu0 0.0
      %1043 = vmatpush2.msra.mxu0 0.0
      %1044 = vmatprep.subr.mxu0 0.0
      %1045 = vmatpush2.msra.mxu0 0.0
      %1046 = vmatprep.subr.mxu0 0.0
      %1047 = vmatpush2.msra.mxu0 0.0
      %1048 = vmatprep.subr.mxu0 0.0
      %1049 = vmatpush2.msra.mxu0 0.0
      %1050 = vmatprep.subr.mxu0 0.0
      %1051 = vmatpush2.msra.mxu0 0.0
      %1052 = vmatprep.subr.mxu0 0.0
      %1053 = vmatpush2.msra.mxu0 0.0
      %1054 = vmatprep.subr.mxu0 0.0
      %1055 = vmatpush2.msra.mxu0 0.0
      %1056 = vmatprep.subr.mxu0 0.0
      %1057 = vmatpush2.msra.mxu0 0.0
      %1058 = vmatprep.subr.mxu0 0.0
      %1059 = vmatpush2.msra.mxu0 0.0
      %1060 = vmatprep.subr.mxu0 0.0
      %1061 = vmatpush2.msra.mxu0 0.0
      %1062 = vmatprep.subr.mxu0 0.0
      %1063 = vmatpush2.msra.mxu0 0.0
      %1064 = vmatprep.subr.mxu0 0.0
      %1065 = vmatpush2.msra.mxu0 0.0
      %1066 = vmatprep.mubr.f32.mxu0 0.0
      %1067 = vmatmul.mubr.f32.gmra.mxu0 %v1000
      %v1068 = vpop.f32.mrf.mxu0
      %v1069 = vadd.f32 %v997, %v1068
      %v1070 = vpop.f32.mrf.mxu0
      %1071 = vdwg.mxu0
      %v1073 = vsel %vm304, %v921, 0
      %1075 = vmatprep.subr.mxu0 0.0
      %1076 = vmatpush1.msra.mxu0 0.0
      %1077 = vmatprep.subr.mxu0 0.0
      %1078 = vmatpush1.msra.mxu0 0.0
      %1079 = vmatprep.subr.mxu0 0.0
      %1080 = vmatpush1.msra.mxu0 0.0
      %1081 = vmatprep.subr.mxu0 0.0
      %1082 = vmatpush1.msra.mxu0 0.0
      %1083 = vmatprep.subr.mxu0 0.0
      %1084 = vmatpush1.msra.mxu0 0.0
      %1085 = vmatprep.subr.mxu0 0.0
      %1086 = vmatpush1.msra.mxu0 0.0
      %1087 = vmatprep.subr.mxu0 0.0
      %1088 = vmatpush1.msra.mxu0 0.0
      %1089 = vmatprep.subr.mxu0 0.0
      %1090 = vmatpush1.msra.mxu0 0.0
      %1091 = vmatprep.subr.mxu0 0.0
      %1092 = vmatpush1.msra.mxu0 0.0
      %1093 = vmatprep.subr.mxu0 0.0
      %1094 = vmatpush1.msra.mxu0 0.0
      %1095 = vmatprep.subr.mxu0 0.0
      %1096 = vmatpush1.msra.mxu0 0.0
      %1097 = vmatprep.subr.mxu0 0.0
      %1098 = vmatpush1.msra.mxu0 0.0
      %1099 = vmatprep.subr.mxu0 0.0
      %1100 = vmatpush1.msra.mxu0 0.0
      %1101 = vmatprep.subr.mxu0 0.0
      %1102 = vmatpush1.msra.mxu0 0.0
      %1103 = vmatprep.subr.mxu0 0.0
      %1104 = vmatpush1.msra.mxu0 0.0
      %1105 = vmatprep.subr.mxu0 0.0
      %1106 = vmatpush1.msra.mxu0 %v291
      %1107 = vmatprep.subr.mxu0 0.0
      %1108 = vmatpush2.msra.mxu0 0.0
      %1109 = vmatprep.subr.mxu0 0.0
      %1110 = vmatpush2.msra.mxu0 0.0
      %1111 = vmatprep.subr.mxu0 0.0
      %1112 = vmatpush2.msra.mxu0 0.0
      %1113 = vmatprep.subr.mxu0 0.0
      %1114 = vmatpush2.msra.mxu0 0.0
      %1115 = vmatprep.subr.mxu0 0.0
      %1116 = vmatpush2.msra.mxu0 0.0
      %1117 = vmatprep.subr.mxu0 0.0
      %1118 = vmatpush2.msra.mxu0 0.0
      %1119 = vmatprep.subr.mxu0 0.0
      %1120 = vmatpush2.msra.mxu0 0.0
      %1121 = vmatprep.subr.mxu0 0.0
      %1122 = vmatpush2.msra.mxu0 0.0
      %1123 = vmatprep.subr.mxu0 0.0
      %1124 = vmatpush2.msra.mxu0 0.0
      %1125 = vmatprep.subr.mxu0 0.0
      %1126 = vmatpush2.msra.mxu0 0.0
      %1127 = vmatprep.subr.mxu0 0.0
      %1128 = vmatpush2.msra.mxu0 0.0
      %1129 = vmatprep.subr.mxu0 0.0
      %1130 = vmatpush2.msra.mxu0 0.0
      %1131 = vmatprep.subr.mxu0 0.0
      %1132 = vmatpush2.msra.mxu0 0.0
      %1133 = vmatprep.subr.mxu0 0.0
      %1134 = vmatpush2.msra.mxu0 0.0
      %1135 = vmatprep.subr.mxu0 0.0
      %1136 = vmatpush2.msra.mxu0 0.0
      %1137 = vmatprep.subr.mxu0 0.0
      %1138 = vmatpush2.msra.mxu0 0.0
      %1139 = vmatprep.mubr.f32.mxu0 0.0
      %1140 = vmatmul.mubr.f32.gmra.mxu0 %v1073
      %v1141 = vpop.f32.mrf.mxu0
      %v1142 = vadd.f32 0.0, %v1141
      %v1143 = vpop.f32.mrf.mxu0
      %1144 = vdwg.mxu0
      %v1145 = vadd.f32 %v1069, %v1142
      %v1147 = vrot.slane %v921, 1
      %v1148 = vrot.slane %v922, 1
      %v1149 = vsel %vm300, %v1147, %v1148
      %v1150 = vsel %vm304, %v1149, 0
      %1152 = vmatprep.subr.mxu0 0.0
      %1153 = vmatpush1.msra.mxu0 0.0
      %1154 = vmatprep.subr.mxu0 0.0
      %1155 = vmatpush1.msra.mxu0 0.0
      %1156 = vmatprep.subr.mxu0 0.0
      %1157 = vmatpush1.msra.mxu0 0.0
      %1158 = vmatprep.subr.mxu0 0.0
      %1159 = vmatpush1.msra.mxu0 0.0
      %1160 = vmatprep.subr.mxu0 0.0
      %1161 = vmatpush1.msra.mxu0 0.0
      %1162 = vmatprep.subr.mxu0 0.0
      %1163 = vmatpush1.msra.mxu0 0.0
      %1164 = vmatprep.subr.mxu0 0.0
      %1165 = vmatpush1.msra.mxu0 0.0
      %1166 = vmatprep.subr.mxu0 0.0
      %1167 = vmatpush1.msra.mxu0 0.0
      %1168 = vmatprep.subr.mxu0 0.0
      %1169 = vmatpush1.msra.mxu0 0.0
      %1170 = vmatprep.subr.mxu0 0.0
      %1171 = vmatpush1.msra.mxu0 0.0
      %1172 = vmatprep.subr.mxu0 0.0
      %1173 = vmatpush1.msra.mxu0 0.0
      %1174 = vmatprep.subr.mxu0 0.0
      %1175 = vmatpush1.msra.mxu0 0.0
      %1176 = vmatprep.subr.mxu0 0.0
      %1177 = vmatpush1.msra.mxu0 0.0
      %1178 = vmatprep.subr.mxu0 0.0
      %1179 = vmatpush1.msra.mxu0 0.0
      %1180 = vmatprep.subr.mxu0 0.0
      %1181 = vmatpush1.msra.mxu0 0.0
      %1182 = vmatprep.subr.mxu0 0.0
      %1183 = vmatpush1.msra.mxu0 %v292
      %1184 = vmatprep.subr.mxu0 0.0
      %1185 = vmatpush2.msra.mxu0 0.0
      %1186 = vmatprep.subr.mxu0 0.0
      %1187 = vmatpush2.msra.mxu0 0.0
      %1188 = vmatprep.subr.mxu0 0.0
      %1189 = vmatpush2.msra.mxu0 0.0
      %1190 = vmatprep.subr.mxu0 0.0
      %1191 = vmatpush2.msra.mxu0 0.0
      %1192 = vmatprep.subr.mxu0 0.0
      %1193 = vmatpush2.msra.mxu0 0.0
      %1194 = vmatprep.subr.mxu0 0.0
      %1195 = vmatpush2.msra.mxu0 0.0
      %1196 = vmatprep.subr.mxu0 0.0
      %1197 = vmatpush2.msra.mxu0 0.0
      %1198 = vmatprep.subr.mxu0 0.0
      %1199 = vmatpush2.msra.mxu0 0.0
      %1200 = vmatprep.subr.mxu0 0.0
      %1201 = vmatpush2.msra.mxu0 0.0
      %1202 = vmatprep.subr.mxu0 0.0
      %1203 = vmatpush2.msra.mxu0 0.0
      %1204 = vmatprep.subr.mxu0 0.0
      %1205 = vmatpush2.msra.mxu0 0.0
      %1206 = vmatprep.subr.mxu0 0.0
      %1207 = vmatpush2.msra.mxu0 0.0
      %1208 = vmatprep.subr.mxu0 0.0
      %1209 = vmatpush2.msra.mxu0 0.0
      %1210 = vmatprep.subr.mxu0 0.0
      %1211 = vmatpush2.msra.mxu0 0.0
      %1212 = vmatprep.subr.mxu0 0.0
      %1213 = vmatpush2.msra.mxu0 0.0
      %1214 = vmatprep.subr.mxu0 0.0
      %1215 = vmatpush2.msra.mxu0 0.0
      %1216 = vmatprep.mubr.f32.mxu0 0.0
      %1217 = vmatmul.mubr.f32.gmra.mxu0 %v1150
      %v1218 = vpop.f32.mrf.mxu0
      %v1219 = vadd.f32 0.0, %v1218
      %v1220 = vpop.f32.mrf.mxu0
      %1221 = vdwg.mxu0
      %v1222 = vadd.f32 %v1145, %v1219
      %v1223 = vadd.f32 %v1222, %v604
      %v1224 = vmax.f32 %v1223, 0.0
      %s1225 = scalar_lea.vmem %s286, 16
      %1226 = vst [vmem:[%s1225] sm:$0xff] %v1224
      %v1227 = vld [vmem:[%s920] sm:$0xff]
      %v1228 = vld [vmem:[%s920 + $0x8] sm:$0x1]
      %s1229 = scalar_lea.vmem %s263, 64
      %v1230 = vld [vmem:[%s1229] sm:$0xff]
      %v1231 = vld [vmem:[%s1229 + $0x8] sm:$0x1]
      %v1234 = vrot.slane %v1227, 1
      %v1235 = vrot.slane %v1228, 1
      %v1236 = vsel %vm300, %v1234, %v1235
      %v1237 = vsel %vm304, %v1236, 0
      %1239 = vmatprep.subr.mxu0 0.0
      %1240 = vmatpush1.msra.mxu0 0.0
      %1241 = vmatprep.subr.mxu0 0.0
      %1242 = vmatpush1.msra.mxu0 0.0
      %1243 = vmatprep.subr.mxu0 0.0
      %1244 = vmatpush1.msra.mxu0 0.0
      %1245 = vmatprep.subr.mxu0 0.0
      %1246 = vmatpush1.msra.mxu0 0.0
      %1247 = vmatprep.subr.mxu0 0.0
      %1248 = vmatpush1.msra.mxu0 0.0
      %1249 = vmatprep.subr.mxu0 0.0
      %1250 = vmatpush1.msra.mxu0 0.0
      %1251 = vmatprep.subr.mxu0 0.0
      %1252 = vmatpush1.msra.mxu0 0.0
      %1253 = vmatprep.subr.mxu0 0.0
      %1254 = vmatpush1.msra.mxu0 0.0
      %1255 = vmatprep.subr.mxu0 0.0
      %1256 = vmatpush1.msra.mxu0 0.0
      %1257 = vmatprep.subr.mxu0 0.0
      %1258 = vmatpush1.msra.mxu0 0.0
      %1259 = vmatprep.subr.mxu0 0.0
      %1260 = vmatpush1.msra.mxu0 0.0
      %1261 = vmatprep.subr.mxu0 0.0
      %1262 = vmatpush1.msra.mxu0 0.0
      %1263 = vmatprep.subr.mxu0 0.0
      %1264 = vmatpush1.msra.mxu0 0.0
      %1265 = vmatprep.subr.mxu0 0.0
      %1266 = vmatpush1.msra.mxu0 0.0
      %1267 = vmatprep.subr.mxu0 0.0
      %1268 = vmatpush1.msra.mxu0 0.0
      %1269 = vmatprep.subr.mxu0 0.0
      %1270 = vmatpush1.msra.mxu0 %v290
      %1271 = vmatprep.subr.mxu0 0.0
      %1272 = vmatpush2.msra.mxu0 0.0
      %1273 = vmatprep.subr.mxu0 0.0
      %1274 = vmatpush2.msra.mxu0 0.0
      %1275 = vmatprep.subr.mxu0 0.0
      %1276 = vmatpush2.msra.mxu0 0.0
      %1277 = vmatprep.subr.mxu0 0.0
      %1278 = vmatpush2.msra.mxu0 0.0
      %1279 = vmatprep.subr.mxu0 0.0
      %1280 = vmatpush2.msra.mxu0 0.0
      %1281 = vmatprep.subr.mxu0 0.0
      %1282 = vmatpush2.msra.mxu0 0.0
      %1283 = vmatprep.subr.mxu0 0.0
      %1284 = vmatpush2.msra.mxu0 0.0
      %1285 = vmatprep.subr.mxu0 0.0
      %1286 = vmatpush2.msra.mxu0 0.0
      %1287 = vmatprep.subr.mxu0 0.0
      %1288 = vmatpush2.msra.mxu0 0.0
      %1289 = vmatprep.subr.mxu0 0.0
      %1290 = vmatpush2.msra.mxu0 0.0
      %1291 = vmatprep.subr.mxu0 0.0
      %1292 = vmatpush2.msra.mxu0 0.0
      %1293 = vmatprep.subr.mxu0 0.0
      %1294 = vmatpush2.msra.mxu0 0.0
      %1295 = vmatprep.subr.mxu0 0.0
      %1296 = vmatpush2.msra.mxu0 0.0
      %1297 = vmatprep.subr.mxu0 0.0
      %1298 = vmatpush2.msra.mxu0 0.0
      %1299 = vmatprep.subr.mxu0 0.0
      %1300 = vmatpush2.msra.mxu0 0.0
      %1301 = vmatprep.subr.mxu0 0.0
      %1302 = vmatpush2.msra.mxu0 0.0
      %1303 = vmatprep.mubr.f32.mxu0 0.0
      %1304 = vmatmul.mubr.f32.gmra.mxu0 %v1237
      %v1305 = vpop.f32.mrf.mxu0
      %v1306 = vadd.f32 0.0, %v1305
      %v1307 = vpop.f32.mrf.mxu0
      %1308 = vdwg.mxu0
      %v1309 = vsel %vm304, %v1227, 0
      %1311 = vmatprep.subr.mxu0 0.0
      %1312 = vmatpush1.msra.mxu0 0.0
      %1313 = vmatprep.subr.mxu0 0.0
      %1314 = vmatpush1.msra.mxu0 0.0
      %1315 = vmatprep.subr.mxu0 0.0
      %1316 = vmatpush1.msra.mxu0 0.0
      %1317 = vmatprep.subr.mxu0 0.0
      %1318 = vmatpush1.msra.mxu0 0.0
      %1319 = vmatprep.subr.mxu0 0.0
      %1320 = vmatpush1.msra.mxu0 0.0
      %1321 = vmatprep.subr.mxu0 0.0
      %1322 = vmatpush1.msra.mxu0 0.0
      %1323 = vmatprep.subr.mxu0 0.0
      %1324 = vmatpush1.msra.mxu0 0.0
      %1325 = vmatprep.subr.mxu0 0.0
      %1326 = vmatpush1.msra.mxu0 0.0
      %1327 = vmatprep.subr.mxu0 0.0
      %1328 = vmatpush1.msra.mxu0 0.0
      %1329 = vmatprep.subr.mxu0 0.0
      %1330 = vmatpush1.msra.mxu0 0.0
      %1331 = vmatprep.subr.mxu0 0.0
      %1332 = vmatpush1.msra.mxu0 0.0
      %1333 = vmatprep.subr.mxu0 0.0
      %1334 = vmatpush1.msra.mxu0 0.0
      %1335 = vmatprep.subr.mxu0 0.0
      %1336 = vmatpush1.msra.mxu0 0.0
      %1337 = vmatprep.subr.mxu0 0.0
      %1338 = vmatpush1.msra.mxu0 0.0
      %1339 = vmatprep.subr.mxu0 0.0
      %1340 = vmatpush1.msra.mxu0 0.0
      %1341 = vmatprep.subr.mxu0 0.0
      %1342 = vmatpush1.msra.mxu0 %v289
      %1343 = vmatprep.subr.mxu0 0.0
      %1344 = vmatpush2.msra.mxu0 0.0
      %1345 = vmatprep.subr.mxu0 0.0
      %1346 = vmatpush2.msra.mxu0 0.0
      %1347 = vmatprep.subr.mxu0 0.0
      %1348 = vmatpush2.msra.mxu0 0.0
      %1349 = vmatprep.subr.mxu0 0.0
      %1350 = vmatpush2.msra.mxu0 0.0
      %1351 = vmatprep.subr.mxu0 0.0
      %1352 = vmatpush2.msra.mxu0 0.0
      %1353 = vmatprep.subr.mxu0 0.0
      %1354 = vmatpush2.msra.mxu0 0.0
      %1355 = vmatprep.subr.mxu0 0.0
      %1356 = vmatpush2.msra.mxu0 0.0
      %1357 = vmatprep.subr.mxu0 0.0
      %1358 = vmatpush2.msra.mxu0 0.0
      %1359 = vmatprep.subr.mxu0 0.0
      %1360 = vmatpush2.msra.mxu0 0.0
      %1361 = vmatprep.subr.mxu0 0.0
      %1362 = vmatpush2.msra.mxu0 0.0
      %1363 = vmatprep.subr.mxu0 0.0
      %1364 = vmatpush2.msra.mxu0 0.0
      %1365 = vmatprep.subr.mxu0 0.0
      %1366 = vmatpush2.msra.mxu0 0.0
      %1367 = vmatprep.subr.mxu0 0.0
      %1368 = vmatpush2.msra.mxu0 0.0
      %1369 = vmatprep.subr.mxu0 0.0
      %1370 = vmatpush2.msra.mxu0 0.0
      %1371 = vmatprep.subr.mxu0 0.0
      %1372 = vmatpush2.msra.mxu0 0.0
      %1373 = vmatprep.subr.mxu0 0.0
      %1374 = vmatpush2.msra.mxu0 0.0
      %1375 = vmatprep.mubr.f32.mxu0 0.0
      %1376 = vmatmul.mubr.f32.gmra.mxu0 %v1309
      %v1377 = vpop.f32.mrf.mxu0
      %v1378 = vadd.f32 %v1306, %v1377
      %v1379 = vpop.f32.mrf.mxu0
      %1380 = vdwg.mxu0
      %v1382 = vsel %vm304, %v1230, 0
      %1384 = vmatprep.subr.mxu0 0.0
      %1385 = vmatpush1.msra.mxu0 0.0
      %1386 = vmatprep.subr.mxu0 0.0
      %1387 = vmatpush1.msra.mxu0 0.0
      %1388 = vmatprep.subr.mxu0 0.0
      %1389 = vmatpush1.msra.mxu0 0.0
      %1390 = vmatprep.subr.mxu0 0.0
      %1391 = vmatpush1.msra.mxu0 0.0
      %1392 = vmatprep.subr.mxu0 0.0
      %1393 = vmatpush1.msra.mxu0 0.0
      %1394 = vmatprep.subr.mxu0 0.0
      %1395 = vmatpush1.msra.mxu0 0.0
      %1396 = vmatprep.subr.mxu0 0.0
      %1397 = vmatpush1.msra.mxu0 0.0
      %1398 = vmatprep.subr.mxu0 0.0
      %1399 = vmatpush1.msra.mxu0 0.0
      %1400 = vmatprep.subr.mxu0 0.0
      %1401 = vmatpush1.msra.mxu0 0.0
      %1402 = vmatprep.subr.mxu0 0.0
      %1403 = vmatpush1.msra.mxu0 0.0
      %1404 = vmatprep.subr.mxu0 0.0
      %1405 = vmatpush1.msra.mxu0 0.0
      %1406 = vmatprep.subr.mxu0 0.0
      %1407 = vmatpush1.msra.mxu0 0.0
      %1408 = vmatprep.subr.mxu0 0.0
      %1409 = vmatpush1.msra.mxu0 0.0
      %1410 = vmatprep.subr.mxu0 0.0
      %1411 = vmatpush1.msra.mxu0 0.0
      %1412 = vmatprep.subr.mxu0 0.0
      %1413 = vmatpush1.msra.mxu0 0.0
      %1414 = vmatprep.subr.mxu0 0.0
      %1415 = vmatpush1.msra.mxu0 %v291
      %1416 = vmatprep.subr.mxu0 0.0
      %1417 = vmatpush2.msra.mxu0 0.0
      %1418 = vmatprep.subr.mxu0 0.0
      %1419 = vmatpush2.msra.mxu0 0.0
      %1420 = vmatprep.subr.mxu0 0.0
      %1421 = vmatpush2.msra.mxu0 0.0
      %1422 = vmatprep.subr.mxu0 0.0
      %1423 = vmatpush2.msra.mxu0 0.0
      %1424 = vmatprep.subr.mxu0 0.0
      %1425 = vmatpush2.msra.mxu0 0.0
      %1426 = vmatprep.subr.mxu0 0.0
      %1427 = vmatpush2.msra.mxu0 0.0
      %1428 = vmatprep.subr.mxu0 0.0
      %1429 = vmatpush2.msra.mxu0 0.0
      %1430 = vmatprep.subr.mxu0 0.0
      %1431 = vmatpush2.msra.mxu0 0.0
      %1432 = vmatprep.subr.mxu0 0.0
      %1433 = vmatpush2.msra.mxu0 0.0
      %1434 = vmatprep.subr.mxu0 0.0
      %1435 = vmatpush2.msra.mxu0 0.0
      %1436 = vmatprep.subr.mxu0 0.0
      %1437 = vmatpush2.msra.mxu0 0.0
      %1438 = vmatprep.subr.mxu0 0.0
      %1439 = vmatpush2.msra.mxu0 0.0
      %1440 = vmatprep.subr.mxu0 0.0
      %1441 = vmatpush2.msra.mxu0 0.0
      %1442 = vmatprep.subr.mxu0 0.0
      %1443 = vmatpush2.msra.mxu0 0.0
      %1444 = vmatprep.subr.mxu0 0.0
      %1445 = vmatpush2.msra.mxu0 0.0
      %1446 = vmatprep.subr.mxu0 0.0
      %1447 = vmatpush2.msra.mxu0 0.0
      %1448 = vmatprep.mubr.f32.mxu0 0.0
      %1449 = vmatmul.mubr.f32.gmra.mxu0 %v1382
      %v1450 = vpop.f32.mrf.mxu0
      %v1451 = vadd.f32 0.0, %v1450
      %v1452 = vpop.f32.mrf.mxu0
      %1453 = vdwg.mxu0
      %v1454 = vadd.f32 %v1378, %v1451
      %v1456 = vrot.slane %v1230, 1
      %v1457 = vrot.slane %v1231, 1
      %v1458 = vsel %vm300, %v1456, %v1457
      %v1459 = vsel %vm304, %v1458, 0
      %1461 = vmatprep.subr.mxu0 0.0
      %1462 = vmatpush1.msra.mxu0 0.0
      %1463 = vmatprep.subr.mxu0 0.0
      %1464 = vmatpush1.msra.mxu0 0.0
      %1465 = vmatprep.subr.mxu0 0.0
      %1466 = vmatpush1.msra.mxu0 0.0
      %1467 = vmatprep.subr.mxu0 0.0
      %1468 = vmatpush1.msra.mxu0 0.0
      %1469 = vmatprep.subr.mxu0 0.0
      %1470 = vmatpush1.msra.mxu0 0.0
      %1471 = vmatprep.subr.mxu0 0.0
      %1472 = vmatpush1.msra.mxu0 0.0
      %1473 = vmatprep.subr.mxu0 0.0
      %1474 = vmatpush1.msra.mxu0 0.0
      %1475 = vmatprep.subr.mxu0 0.0
      %1476 = vmatpush1.msra.mxu0 0.0
      %1477 = vmatprep.subr.mxu0 0.0
      %1478 = vmatpush1.msra.mxu0 0.0
      %1479 = vmatprep.subr.mxu0 0.0
      %1480 = vmatpush1.msra.mxu0 0.0
      %1481 = vmatprep.subr.mxu0 0.0
      %1482 = vmatpush1.msra.mxu0 0.0
      %1483 = vmatprep.subr.mxu0 0.0
      %1484 = vmatpush1.msra.mxu0 0.0
      %1485 = vmatprep.subr.mxu0 0.0
      %1486 = vmatpush1.msra.mxu0 0.0
      %1487 = vmatprep.subr.mxu0 0.0
      %1488 = vmatpush1.msra.mxu0 0.0
      %1489 = vmatprep.subr.mxu0 0.0
      %1490 = vmatpush1.msra.mxu0 0.0
      %1491 = vmatprep.subr.mxu0 0.0
      %1492 = vmatpush1.msra.mxu0 %v292
      %1493 = vmatprep.subr.mxu0 0.0
      %1494 = vmatpush2.msra.mxu0 0.0
      %1495 = vmatprep.subr.mxu0 0.0
      %1496 = vmatpush2.msra.mxu0 0.0
      %1497 = vmatprep.subr.mxu0 0.0
      %1498 = vmatpush2.msra.mxu0 0.0
      %1499 = vmatprep.subr.mxu0 0.0
      %1500 = vmatpush2.msra.mxu0 0.0
      %1501 = vmatprep.subr.mxu0 0.0
      %1502 = vmatpush2.msra.mxu0 0.0
      %1503 = vmatprep.subr.mxu0 0.0
      %1504 = vmatpush2.msra.mxu0 0.0
      %1505 = vmatprep.subr.mxu0 0.0
      %1506 = vmatpush2.msra.mxu0 0.0
      %1507 = vmatprep.subr.mxu0 0.0
      %1508 = vmatpush2.msra.mxu0 0.0
      %1509 = vmatprep.subr.mxu0 0.0
      %1510 = vmatpush2.msra.mxu0 0.0
      %1511 = vmatprep.subr.mxu0 0.0
      %1512 = vmatpush2.msra.mxu0 0.0
      %1513 = vmatprep.subr.mxu0 0.0
      %1514 = vmatpush2.msra.mxu0 0.0
      %1515 = vmatprep.subr.mxu0 0.0
      %1516 = vmatpush2.msra.mxu0 0.0
      %1517 = vmatprep.subr.mxu0 0.0
      %1518 = vmatpush2.msra.mxu0 0.0
      %1519 = vmatprep.subr.mxu0 0.0
      %1520 = vmatpush2.msra.mxu0 0.0
      %1521 = vmatprep.subr.mxu0 0.0
      %1522 = vmatpush2.msra.mxu0 0.0
      %1523 = vmatprep.subr.mxu0 0.0
      %1524 = vmatpush2.msra.mxu0 0.0
      %1525 = vmatprep.mubr.f32.mxu0 0.0
      %1526 = vmatmul.mubr.f32.gmra.mxu0 %v1459
      %v1527 = vpop.f32.mrf.mxu0
      %v1528 = vadd.f32 0.0, %v1527
      %v1529 = vpop.f32.mrf.mxu0
      %1530 = vdwg.mxu0
      %v1531 = vadd.f32 %v1454, %v1528
      %v1532 = vadd.f32 %v1531, %v604
      %v1533 = vmax.f32 %v1532, 0.0
      %s1534 = scalar_lea.vmem %s286, 24
      %1535 = vst [vmem:[%s1534] sm:$0xff] %v1533
      %v1536 = vld [vmem:[%s1229] sm:$0xff]
      %v1537 = vld [vmem:[%s1229 + $0x8] sm:$0x1]
      %s1538 = scalar_lea.vmem %s263, 80
      %v1539 = vld [vmem:[%s1538] sm:$0xff]
      %v1540 = vld [vmem:[%s1538 + $0x8] sm:$0x1]
      %v1543 = vrot.slane %v1536, 1
      %v1544 = vrot.slane %v1537, 1
      %v1545 = vsel %vm300, %v1543, %v1544
      %v1546 = vsel %vm304, %v1545, 0
      %1548 = vmatprep.subr.mxu0 0.0
      %1549 = vmatpush1.msra.mxu0 0.0
      %1550 = vmatprep.subr.mxu0 0.0
      %1551 = vmatpush1.msra.mxu0 0.0
      %1552 = vmatprep.subr.mxu0 0.0
      %1553 = vmatpush1.msra.mxu0 0.0
      %1554 = vmatprep.subr.mxu0 0.0
      %1555 = vmatpush1.msra.mxu0 0.0
      %1556 = vmatprep.subr.mxu0 0.0
      %1557 = vmatpush1.msra.mxu0 0.0
      %1558 = vmatprep.subr.mxu0 0.0
      %1559 = vmatpush1.msra.mxu0 0.0
      %1560 = vmatprep.subr.mxu0 0.0
      %1561 = vmatpush1.msra.mxu0 0.0
      %1562 = vmatprep.subr.mxu0 0.0
      %1563 = vmatpush1.msra.mxu0 0.0
      %1564 = vmatprep.subr.mxu0 0.0
      %1565 = vmatpush1.msra.mxu0 0.0
      %1566 = vmatprep.subr.mxu0 0.0
      %1567 = vmatpush1.msra.mxu0 0.0
      %1568 = vmatprep.subr.mxu0 0.0
      %1569 = vmatpush1.msra.mxu0 0.0
      %1570 = vmatprep.subr.mxu0 0.0
      %1571 = vmatpush1.msra.mxu0 0.0
      %1572 = vmatprep.subr.mxu0 0.0
      %1573 = vmatpush1.msra.mxu0 0.0
      %1574 = vmatprep.subr.mxu0 0.0
      %1575 = vmatpush1.msra.mxu0 0.0
      %1576 = vmatprep.subr.mxu0 0.0
      %1577 = vmatpush1.msra.mxu0 0.0
      %1578 = vmatprep.subr.mxu0 0.0
      %1579 = vmatpush1.msra.mxu0 %v290
      %1580 = vmatprep.subr.mxu0 0.0
      %1581 = vmatpush2.msra.mxu0 0.0
      %1582 = vmatprep.subr.mxu0 0.0
      %1583 = vmatpush2.msra.mxu0 0.0
      %1584 = vmatprep.subr.mxu0 0.0
      %1585 = vmatpush2.msra.mxu0 0.0
      %1586 = vmatprep.subr.mxu0 0.0
      %1587 = vmatpush2.msra.mxu0 0.0
      %1588 = vmatprep.subr.mxu0 0.0
      %1589 = vmatpush2.msra.mxu0 0.0
      %1590 = vmatprep.subr.mxu0 0.0
      %1591 = vmatpush2.msra.mxu0 0.0
      %1592 = vmatprep.subr.mxu0 0.0
      %1593 = vmatpush2.msra.mxu0 0.0
      %1594 = vmatprep.subr.mxu0 0.0
      %1595 = vmatpush2.msra.mxu0 0.0
      %1596 = vmatprep.subr.mxu0 0.0
      %1597 = vmatpush2.msra.mxu0 0.0
      %1598 = vmatprep.subr.mxu0 0.0
      %1599 = vmatpush2.msra.mxu0 0.0
      %1600 = vmatprep.subr.mxu0 0.0
      %1601 = vmatpush2.msra.mxu0 0.0
      %1602 = vmatprep.subr.mxu0 0.0
      %1603 = vmatpush2.msra.mxu0 0.0
      %1604 = vmatprep.subr.mxu0 0.0
      %1605 = vmatpush2.msra.mxu0 0.0
      %1606 = vmatprep.subr.mxu0 0.0
      %1607 = vmatpush2.msra.mxu0 0.0
      %1608 = vmatprep.subr.mxu0 0.0
      %1609 = vmatpush2.msra.mxu0 0.0
      %1610 = vmatprep.subr.mxu0 0.0
      %1611 = vmatpush2.msra.mxu0 0.0
      %1612 = vmatprep.mubr.f32.mxu0 0.0
      %1613 = vmatmul.mubr.f32.gmra.mxu0 %v1546
      %v1614 = vpop.f32.mrf.mxu0
      %v1615 = vadd.f32 0.0, %v1614
      %v1616 = vpop.f32.mrf.mxu0
      %1617 = vdwg.mxu0
      %v1618 = vsel %vm304, %v1536, 0
      %1620 = vmatprep.subr.mxu0 0.0
      %1621 = vmatpush1.msra.mxu0 0.0
      %1622 = vmatprep.subr.mxu0 0.0
      %1623 = vmatpush1.msra.mxu0 0.0
      %1624 = vmatprep.subr.mxu0 0.0
      %1625 = vmatpush1.msra.mxu0 0.0
      %1626 = vmatprep.subr.mxu0 0.0
      %1627 = vmatpush1.msra.mxu0 0.0
      %1628 = vmatprep.subr.mxu0 0.0
      %1629 = vmatpush1.msra.mxu0 0.0
      %1630 = vmatprep.subr.mxu0 0.0
      %1631 = vmatpush1.msra.mxu0 0.0
      %1632 = vmatprep.subr.mxu0 0.0
      %1633 = vmatpush1.msra.mxu0 0.0
      %1634 = vmatprep.subr.mxu0 0.0
      %1635 = vmatpush1.msra.mxu0 0.0
      %1636 = vmatprep.subr.mxu0 0.0
      %1637 = vmatpush1.msra.mxu0 0.0
      %1638 = vmatprep.subr.mxu0 0.0
      %1639 = vmatpush1.msra.mxu0 0.0
      %1640 = vmatprep.subr.mxu0 0.0
      %1641 = vmatpush1.msra.mxu0 0.0
      %1642 = vmatprep.subr.mxu0 0.0
      %1643 = vmatpush1.msra.mxu0 0.0
      %1644 = vmatprep.subr.mxu0 0.0
      %1645 = vmatpush1.msra.mxu0 0.0
      %1646 = vmatprep.subr.mxu0 0.0
      %1647 = vmatpush1.msra.mxu0 0.0
      %1648 = vmatprep.subr.mxu0 0.0
      %1649 = vmatpush1.msra.mxu0 0.0
      %1650 = vmatprep.subr.mxu0 0.0
      %1651 = vmatpush1.msra.mxu0 %v289
      %1652 = vmatprep.subr.mxu0 0.0
      %1653 = vmatpush2.msra.mxu0 0.0
      %1654 = vmatprep.subr.mxu0 0.0
      %1655 = vmatpush2.msra.mxu0 0.0
      %1656 = vmatprep.subr.mxu0 0.0
      %1657 = vmatpush2.msra.mxu0 0.0
      %1658 = vmatprep.subr.mxu0 0.0
      %1659 = vmatpush2.msra.mxu0 0.0
      %1660 = vmatprep.subr.mxu0 0.0
      %1661 = vmatpush2.msra.mxu0 0.0
      %1662 = vmatprep.subr.mxu0 0.0
      %1663 = vmatpush2.msra.mxu0 0.0
      %1664 = vmatprep.subr.mxu0 0.0
      %1665 = vmatpush2.msra.mxu0 0.0
      %1666 = vmatprep.subr.mxu0 0.0
      %1667 = vmatpush2.msra.mxu0 0.0
      %1668 = vmatprep.subr.mxu0 0.0
      %1669 = vmatpush2.msra.mxu0 0.0
      %1670 = vmatprep.subr.mxu0 0.0
      %1671 = vmatpush2.msra.mxu0 0.0
      %1672 = vmatprep.subr.mxu0 0.0
      %1673 = vmatpush2.msra.mxu0 0.0
      %1674 = vmatprep.subr.mxu0 0.0
      %1675 = vmatpush2.msra.mxu0 0.0
      %1676 = vmatprep.subr.mxu0 0.0
      %1677 = vmatpush2.msra.mxu0 0.0
      %1678 = vmatprep.subr.mxu0 0.0
      %1679 = vmatpush2.msra.mxu0 0.0
      %1680 = vmatprep.subr.mxu0 0.0
      %1681 = vmatpush2.msra.mxu0 0.0
      %1682 = vmatprep.subr.mxu0 0.0
      %1683 = vmatpush2.msra.mxu0 0.0
      %1684 = vmatprep.mubr.f32.mxu0 0.0
      %1685 = vmatmul.mubr.f32.gmra.mxu0 %v1618
      %v1686 = vpop.f32.mrf.mxu0
      %v1687 = vadd.f32 %v1615, %v1686
      %v1688 = vpop.f32.mrf.mxu0
      %1689 = vdwg.mxu0
      %v1691 = vsel %vm304, %v1539, 0
      %1693 = vmatprep.subr.mxu0 0.0
      %1694 = vmatpush1.msra.mxu0 0.0
      %1695 = vmatprep.subr.mxu0 0.0
      %1696 = vmatpush1.msra.mxu0 0.0
      %1697 = vmatprep.subr.mxu0 0.0
      %1698 = vmatpush1.msra.mxu0 0.0
      %1699 = vmatprep.subr.mxu0 0.0
      %1700 = vmatpush1.msra.mxu0 0.0
      %1701 = vmatprep.subr.mxu0 0.0
      %1702 = vmatpush1.msra.mxu0 0.0
      %1703 = vmatprep.subr.mxu0 0.0
      %1704 = vmatpush1.msra.mxu0 0.0
      %1705 = vmatprep.subr.mxu0 0.0
      %1706 = vmatpush1.msra.mxu0 0.0
      %1707 = vmatprep.subr.mxu0 0.0
      %1708 = vmatpush1.msra.mxu0 0.0
      %1709 = vmatprep.subr.mxu0 0.0
      %1710 = vmatpush1.msra.mxu0 0.0
      %1711 = vmatprep.subr.mxu0 0.0
      %1712 = vmatpush1.msra.mxu0 0.0
      %1713 = vmatprep.subr.mxu0 0.0
      %1714 = vmatpush1.msra.mxu0 0.0
      %1715 = vmatprep.subr.mxu0 0.0
      %1716 = vmatpush1.msra.mxu0 0.0
      %1717 = vmatprep.subr.mxu0 0.0
      %1718 = vmatpush1.msra.mxu0 0.0
      %1719 = vmatprep.subr.mxu0 0.0
      %1720 = vmatpush1.msra.mxu0 0.0
      %1721 = vmatprep.subr.mxu0 0.0
      %1722 = vmatpush1.msra.mxu0 0.0
      %1723 = vmatprep.subr.mxu0 0.0
      %1724 = vmatpush1.msra.mxu0 %v291
      %1725 = vmatprep.subr.mxu0 0.0
      %1726 = vmatpush2.msra.mxu0 0.0
      %1727 = vmatprep.subr.mxu0 0.0
      %1728 = vmatpush2.msra.mxu0 0.0
      %1729 = vmatprep.subr.mxu0 0.0
      %1730 = vmatpush2.msra.mxu0 0.0
      %1731 = vmatprep.subr.mxu0 0.0
      %1732 = vmatpush2.msra.mxu0 0.0
      %1733 = vmatprep.subr.mxu0 0.0
      %1734 = vmatpush2.msra.mxu0 0.0
      %1735 = vmatprep.subr.mxu0 0.0
      %1736 = vmatpush2.msra.mxu0 0.0
      %1737 = vmatprep.subr.mxu0 0.0
      %1738 = vmatpush2.msra.mxu0 0.0
      %1739 = vmatprep.subr.mxu0 0.0
      %1740 = vmatpush2.msra.mxu0 0.0
      %1741 = vmatprep.subr.mxu0 0.0
      %1742 = vmatpush2.msra.mxu0 0.0
      %1743 = vmatprep.subr.mxu0 0.0
      %1744 = vmatpush2.msra.mxu0 0.0
      %1745 = vmatprep.subr.mxu0 0.0
      %1746 = vmatpush2.msra.mxu0 0.0
      %1747 = vmatprep.subr.mxu0 0.0
      %1748 = vmatpush2.msra.mxu0 0.0
      %1749 = vmatprep.subr.mxu0 0.0
      %1750 = vmatpush2.msra.mxu0 0.0
      %1751 = vmatprep.subr.mxu0 0.0
      %1752 = vmatpush2.msra.mxu0 0.0
      %1753 = vmatprep.subr.mxu0 0.0
      %1754 = vmatpush2.msra.mxu0 0.0
      %1755 = vmatprep.subr.mxu0 0.0
      %1756 = vmatpush2.msra.mxu0 0.0
      %1757 = vmatprep.mubr.f32.mxu0 0.0
      %1758 = vmatmul.mubr.f32.gmra.mxu0 %v1691
      %v1759 = vpop.f32.mrf.mxu0
      %v1760 = vadd.f32 0.0, %v1759
      %v1761 = vpop.f32.mrf.mxu0
      %1762 = vdwg.mxu0
      %v1763 = vadd.f32 %v1687, %v1760
      %v1765 = vrot.slane %v1539, 1
      %v1766 = vrot.slane %v1540, 1
      %v1767 = vsel %vm300, %v1765, %v1766
      %v1768 = vsel %vm304, %v1767, 0
      %1770 = vmatprep.subr.mxu0 0.0
      %1771 = vmatpush1.msra.mxu0 0.0
      %1772 = vmatprep.subr.mxu0 0.0
      %1773 = vmatpush1.msra.mxu0 0.0
      %1774 = vmatprep.subr.mxu0 0.0
      %1775 = vmatpush1.msra.mxu0 0.0
      %1776 = vmatprep.subr.mxu0 0.0
      %1777 = vmatpush1.msra.mxu0 0.0
      %1778 = vmatprep.subr.mxu0 0.0
      %1779 = vmatpush1.msra.mxu0 0.0
      %1780 = vmatprep.subr.mxu0 0.0
      %1781 = vmatpush1.msra.mxu0 0.0
      %1782 = vmatprep.subr.mxu0 0.0
      %1783 = vmatpush1.msra.mxu0 0.0
      %1784 = vmatprep.subr.mxu0 0.0
      %1785 = vmatpush1.msra.mxu0 0.0
      %1786 = vmatprep.subr.mxu0 0.0
      %1787 = vmatpush1.msra.mxu0 0.0
      %1788 = vmatprep.subr.mxu0 0.0
      %1789 = vmatpush1.msra.mxu0 0.0
      %1790 = vmatprep.subr.mxu0 0.0
      %1791 = vmatpush1.msra.mxu0 0.0
      %1792 = vmatprep.subr.mxu0 0.0
      %1793 = vmatpush1.msra.mxu0 0.0
      %1794 = vmatprep.subr.mxu0 0.0
      %1795 = vmatpush1.msra.mxu0 0.0
      %1796 = vmatprep.subr.mxu0 0.0
      %1797 = vmatpush1.msra.mxu0 0.0
      %1798 = vmatprep.subr.mxu0 0.0
      %1799 = vmatpush1.msra.mxu0 0.0
      %1800 = vmatprep.subr.mxu0 0.0
      %1801 = vmatpush1.msra.mxu0 %v292
      %1802 = vmatprep.subr.mxu0 0.0
      %1803 = vmatpush2.msra.mxu0 0.0
      %1804 = vmatprep.subr.mxu0 0.0
      %1805 = vmatpush2.msra.mxu0 0.0
      %1806 = vmatprep.subr.mxu0 0.0
      %1807 = vmatpush2.msra.mxu0 0.0
      %1808 = vmatprep.subr.mxu0 0.0
      %1809 = vmatpush2.msra.mxu0 0.0
      %1810 = vmatprep.subr.mxu0 0.0
      %1811 = vmatpush2.msra.mxu0 0.0
      %1812 = vmatprep.subr.mxu0 0.0
      %1813 = vmatpush2.msra.mxu0 0.0
      %1814 = vmatprep.subr.mxu0 0.0
      %1815 = vmatpush2.msra.mxu0 0.0
      %1816 = vmatprep.subr.mxu0 0.0
      %1817 = vmatpush2.msra.mxu0 0.0
      %1818 = vmatprep.subr.mxu0 0.0
      %1819 = vmatpush2.msra.mxu0 0.0
      %1820 = vmatprep.subr.mxu0 0.0
      %1821 = vmatpush2.msra.mxu0 0.0
      %1822 = vmatprep.subr.mxu0 0.0
      %1823 = vmatpush2.msra.mxu0 0.0
      %1824 = vmatprep.subr.mxu0 0.0
      %1825 = vmatpush2.msra.mxu0 0.0
      %1826 = vmatprep.subr.mxu0 0.0
      %1827 = vmatpush2.msra.mxu0 0.0
      %1828 = vmatprep.subr.mxu0 0.0
      %1829 = vmatpush2.msra.mxu0 0.0
      %1830 = vmatprep.subr.mxu0 0.0
      %1831 = vmatpush2.msra.mxu0 0.0
      %1832 = vmatprep.subr.mxu0 0.0
      %1833 = vmatpush2.msra.mxu0 0.0
      %1834 = vmatprep.mubr.f32.mxu0 0.0
      %1835 = vmatmul.mubr.f32.gmra.mxu0 %v1768
      %v1836 = vpop.f32.mrf.mxu0
      %v1837 = vadd.f32 0.0, %v1836
      %v1838 = vpop.f32.mrf.mxu0
      %1839 = vdwg.mxu0
      %v1840 = vadd.f32 %v1763, %v1837
      %v1841 = vadd.f32 %v1840, %v604
      %v1842 = vmax.f32 %v1841, 0.0
      %s1843 = scalar_lea.vmem %s286, 32
      %1844 = vst [vmem:[%s1843] sm:$0xff] %v1842
      %v1845 = vld [vmem:[%s1538] sm:$0xff]
      %v1846 = vld [vmem:[%s1538 + $0x8] sm:$0x1]
      %s1847 = scalar_lea.vmem %s263, 96
      %v1848 = vld [vmem:[%s1847] sm:$0xff]
      %v1849 = vld [vmem:[%s1847 + $0x8] sm:$0x1]
      %v1852 = vrot.slane %v1845, 1
      %v1853 = vrot.slane %v1846, 1
      %v1854 = vsel %vm300, %v1852, %v1853
      %v1855 = vsel %vm304, %v1854, 0
      %1857 = vmatprep.subr.mxu0 0.0
      %1858 = vmatpush1.msra.mxu0 0.0
      %1859 = vmatprep.subr.mxu0 0.0
      %1860 = vmatpush1.msra.mxu0 0.0
      %1861 = vmatprep.subr.mxu0 0.0
      %1862 = vmatpush1.msra.mxu0 0.0
      %1863 = vmatprep.subr.mxu0 0.0
      %1864 = vmatpush1.msra.mxu0 0.0
      %1865 = vmatprep.subr.mxu0 0.0
      %1866 = vmatpush1.msra.mxu0 0.0
      %1867 = vmatprep.subr.mxu0 0.0
      %1868 = vmatpush1.msra.mxu0 0.0
      %1869 = vmatprep.subr.mxu0 0.0
      %1870 = vmatpush1.msra.mxu0 0.0
      %1871 = vmatprep.subr.mxu0 0.0
      %1872 = vmatpush1.msra.mxu0 0.0
      %1873 = vmatprep.subr.mxu0 0.0
      %1874 = vmatpush1.msra.mxu0 0.0
      %1875 = vmatprep.subr.mxu0 0.0
      %1876 = vmatpush1.msra.mxu0 0.0
      %1877 = vmatprep.subr.mxu0 0.0
      %1878 = vmatpush1.msra.mxu0 0.0
      %1879 = vmatprep.subr.mxu0 0.0
      %1880 = vmatpush1.msra.mxu0 0.0
      %1881 = vmatprep.subr.mxu0 0.0
      %1882 = vmatpush1.msra.mxu0 0.0
      %1883 = vmatprep.subr.mxu0 0.0
      %1884 = vmatpush1.msra.mxu0 0.0
      %1885 = vmatprep.subr.mxu0 0.0
      %1886 = vmatpush1.msra.mxu0 0.0
      %1887 = vmatprep.subr.mxu0 0.0
      %1888 = vmatpush1.msra.mxu0 %v290
      %1889 = vmatprep.subr.mxu0 0.0
      %1890 = vmatpush2.msra.mxu0 0.0
      %1891 = vmatprep.subr.mxu0 0.0
      %1892 = vmatpush2.msra.mxu0 0.0
      %1893 = vmatprep.subr.mxu0 0.0
      %1894 = vmatpush2.msra.mxu0 0.0
      %1895 = vmatprep.subr.mxu0 0.0
      %1896 = vmatpush2.msra.mxu0 0.0
      %1897 = vmatprep.subr.mxu0 0.0
      %1898 = vmatpush2.msra.mxu0 0.0
      %1899 = vmatprep.subr.mxu0 0.0
      %1900 = vmatpush2.msra.mxu0 0.0
      %1901 = vmatprep.subr.mxu0 0.0
      %1902 = vmatpush2.msra.mxu0 0.0
      %1903 = vmatprep.subr.mxu0 0.0
      %1904 = vmatpush2.msra.mxu0 0.0
      %1905 = vmatprep.subr.mxu0 0.0
      %1906 = vmatpush2.msra.mxu0 0.0
      %1907 = vmatprep.subr.mxu0 0.0
      %1908 = vmatpush2.msra.mxu0 0.0
      %1909 = vmatprep.subr.mxu0 0.0
      %1910 = vmatpush2.msra.mxu0 0.0
      %1911 = vmatprep.subr.mxu0 0.0
      %1912 = vmatpush2.msra.mxu0 0.0
      %1913 = vmatprep.subr.mxu0 0.0
      %1914 = vmatpush2.msra.mxu0 0.0
      %1915 = vmatprep.subr.mxu0 0.0
      %1916 = vmatpush2.msra.mxu0 0.0
      %1917 = vmatprep.subr.mxu0 0.0
      %1918 = vmatpush2.msra.mxu0 0.0
      %1919 = vmatprep.subr.mxu0 0.0
      %1920 = vmatpush2.msra.mxu0 0.0
      %1921 = vmatprep.mubr.f32.mxu0 0.0
      %1922 = vmatmul.mubr.f32.gmra.mxu0 %v1855
      %v1923 = vpop.f32.mrf.mxu0
      %v1924 = vadd.f32 0.0, %v1923
      %v1925 = vpop.f32.mrf.mxu0
      %1926 = vdwg.mxu0
      %v1927 = vsel %vm304, %v1845, 0
      %1929 = vmatprep.subr.mxu0 0.0
      %1930 = vmatpush1.msra.mxu0 0.0
      %1931 = vmatprep.subr.mxu0 0.0
      %1932 = vmatpush1.msra.mxu0 0.0
      %1933 = vmatprep.subr.mxu0 0.0
      %1934 = vmatpush1.msra.mxu0 0.0
      %1935 = vmatprep.subr.mxu0 0.0
      %1936 = vmatpush1.msra.mxu0 0.0
      %1937 = vmatprep.subr.mxu0 0.0
      %1938 = vmatpush1.msra.mxu0 0.0
      %1939 = vmatprep.subr.mxu0 0.0
      %1940 = vmatpush1.msra.mxu0 0.0
      %1941 = vmatprep.subr.mxu0 0.0
      %1942 = vmatpush1.msra.mxu0 0.0
      %1943 = vmatprep.subr.mxu0 0.0
      %1944 = vmatpush1.msra.mxu0 0.0
      %1945 = vmatprep.subr.mxu0 0.0
      %1946 = vmatpush1.msra.mxu0 0.0
      %1947 = vmatprep.subr.mxu0 0.0
      %1948 = vmatpush1.msra.mxu0 0.0
      %1949 = vmatprep.subr.mxu0 0.0
      %1950 = vmatpush1.msra.mxu0 0.0
      %1951 = vmatprep.subr.mxu0 0.0
      %1952 = vmatpush1.msra.mxu0 0.0
      %1953 = vmatprep.subr.mxu0 0.0
      %1954 = vmatpush1.msra.mxu0 0.0
      %1955 = vmatprep.subr.mxu0 0.0
      %1956 = vmatpush1.msra.mxu0 0.0
      %1957 = vmatprep.subr.mxu0 0.0
      %1958 = vmatpush1.msra.mxu0 0.0
      %1959 = vmatprep.subr.mxu0 0.0
      %1960 = vmatpush1.msra.mxu0 %v289
      %1961 = vmatprep.subr.mxu0 0.0
      %1962 = vmatpush2.msra.mxu0 0.0
      %1963 = vmatprep.subr.mxu0 0.0
      %1964 = vmatpush2.msra.mxu0 0.0
      %1965 = vmatprep.subr.mxu0 0.0
      %1966 = vmatpush2.msra.mxu0 0.0
      %1967 = vmatprep.subr.mxu0 0.0
      %1968 = vmatpush2.msra.mxu0 0.0
      %1969 = vmatprep.subr.mxu0 0.0
      %1970 = vmatpush2.msra.mxu0 0.0
      %1971 = vmatprep.subr.mxu0 0.0
      %1972 = vmatpush2.msra.mxu0 0.0
      %1973 = vmatprep.subr.mxu0 0.0
      %1974 = vmatpush2.msra.mxu0 0.0
      %1975 = vmatprep.subr.mxu0 0.0
      %1976 = vmatpush2.msra.mxu0 0.0
      %1977 = vmatprep.subr.mxu0 0.0
      %1978 = vmatpush2.msra.mxu0 0.0
      %1979 = vmatprep.subr.mxu0 0.0
      %1980 = vmatpush2.msra.mxu0 0.0
      %1981 = vmatprep.subr.mxu0 0.0
      %1982 = vmatpush2.msra.mxu0 0.0
      %1983 = vmatprep.subr.mxu0 0.0
      %1984 = vmatpush2.msra.mxu0 0.0
      %1985 = vmatprep.subr.mxu0 0.0
      %1986 = vmatpush2.msra.mxu0 0.0
      %1987 = vmatprep.subr.mxu0 0.0
      %1988 = vmatpush2.msra.mxu0 0.0
      %1989 = vmatprep.subr.mxu0 0.0
      %1990 = vmatpush2.msra.mxu0 0.0
      %1991 = vmatprep.subr.mxu0 0.0
      %1992 = vmatpush2.msra.mxu0 0.0
      %1993 = vmatprep.mubr.f32.mxu0 0.0
      %1994 = vmatmul.mubr.f32.gmra.mxu0 %v1927
      %v1995 = vpop.f32.mrf.mxu0
      %v1996 = vadd.f32 %v1924, %v1995
      %v1997 = vpop.f32.mrf.mxu0
      %1998 = vdwg.mxu0
      %v2000 = vsel %vm304, %v1848, 0
      %2002 = vmatprep.subr.mxu0 0.0
      %2003 = vmatpush1.msra.mxu0 0.0
      %2004 = vmatprep.subr.mxu0 0.0
      %2005 = vmatpush1.msra.mxu0 0.0
      %2006 = vmatprep.subr.mxu0 0.0
      %2007 = vmatpush1.msra.mxu0 0.0
      %2008 = vmatprep.subr.mxu0 0.0
      %2009 = vmatpush1.msra.mxu0 0.0
      %2010 = vmatprep.subr.mxu0 0.0
      %2011 = vmatpush1.msra.mxu0 0.0
      %2012 = vmatprep.subr.mxu0 0.0
      %2013 = vmatpush1.msra.mxu0 0.0
      %2014 = vmatprep.subr.mxu0 0.0
      %2015 = vmatpush1.msra.mxu0 0.0
      %2016 = vmatprep.subr.mxu0 0.0
      %2017 = vmatpush1.msra.mxu0 0.0
      %2018 = vmatprep.subr.mxu0 0.0
      %2019 = vmatpush1.msra.mxu0 0.0
      %2020 = vmatprep.subr.mxu0 0.0
      %2021 = vmatpush1.msra.mxu0 0.0
      %2022 = vmatprep.subr.mxu0 0.0
      %2023 = vmatpush1.msra.mxu0 0.0
      %2024 = vmatprep.subr.mxu0 0.0
      %2025 = vmatpush1.msra.mxu0 0.0
      %2026 = vmatprep.subr.mxu0 0.0
      %2027 = vmatpush1.msra.mxu0 0.0
      %2028 = vmatprep.subr.mxu0 0.0
      %2029 = vmatpush1.msra.mxu0 0.0
      %2030 = vmatprep.subr.mxu0 0.0
      %2031 = vmatpush1.msra.mxu0 0.0
      %2032 = vmatprep.subr.mxu0 0.0
      %2033 = vmatpush1.msra.mxu0 %v291
      %2034 = vmatprep.subr.mxu0 0.0
      %2035 = vmatpush2.msra.mxu0 0.0
      %2036 = vmatprep.subr.mxu0 0.0
      %2037 = vmatpush2.msra.mxu0 0.0
      %2038 = vmatprep.subr.mxu0 0.0
      %2039 = vmatpush2.msra.mxu0 0.0
      %2040 = vmatprep.subr.mxu0 0.0
      %2041 = vmatpush2.msra.mxu0 0.0
      %2042 = vmatprep.subr.mxu0 0.0
      %2043 = vmatpush2.msra.mxu0 0.0
      %2044 = vmatprep.subr.mxu0 0.0
      %2045 = vmatpush2.msra.mxu0 0.0
      %2046 = vmatprep.subr.mxu0 0.0
      %2047 = vmatpush2.msra.mxu0 0.0
      %2048 = vmatprep.subr.mxu0 0.0
      %2049 = vmatpush2.msra.mxu0 0.0
      %2050 = vmatprep.subr.mxu0 0.0
      %2051 = vmatpush2.msra.mxu0 0.0
      %2052 = vmatprep.subr.mxu0 0.0
      %2053 = vmatpush2.msra.mxu0 0.0
      %2054 = vmatprep.subr.mxu0 0.0
      %2055 = vmatpush2.msra.mxu0 0.0
      %2056 = vmatprep.subr.mxu0 0.0
      %2057 = vmatpush2.msra.mxu0 0.0
      %2058 = vmatprep.subr.mxu0 0.0
      %2059 = vmatpush2.msra.mxu0 0.0
      %2060 = vmatprep.subr.mxu0 0.0
      %2061 = vmatpush2.msra.mxu0 0.0
      %2062 = vmatprep.subr.mxu0 0.0
      %2063 = vmatpush2.msra.mxu0 0.0
      %2064 = vmatprep.subr.mxu0 0.0
      %2065 = vmatpush2.msra.mxu0 0.0
      %2066 = vmatprep.mubr.f32.mxu0 0.0
      %2067 = vmatmul.mubr.f32.gmra.mxu0 %v2000
      %v2068 = vpop.f32.mrf.mxu0
      %v2069 = vadd.f32 0.0, %v2068
      %v2070 = vpop.f32.mrf.mxu0
      %2071 = vdwg.mxu0
      %v2072 = vadd.f32 %v1996, %v2069
      %v2074 = vrot.slane %v1848, 1
      %v2075 = vrot.slane %v1849, 1
      %v2076 = vsel %vm300, %v2074, %v2075
      %v2077 = vsel %vm304, %v2076, 0
      %2079 = vmatprep.subr.mxu0 0.0
      %2080 = vmatpush1.msra.mxu0 0.0
      %2081 = vmatprep.subr.mxu0 0.0
      %2082 = vmatpush1.msra.mxu0 0.0
      %2083 = vmatprep.subr.mxu0 0.0
      %2084 = vmatpush1.msra.mxu0 0.0
      %2085 = vmatprep.subr.mxu0 0.0
      %2086 = vmatpush1.msra.mxu0 0.0
      %2087 = vmatprep.subr.mxu0 0.0
      %2088 = vmatpush1.msra.mxu0 0.0
      %2089 = vmatprep.subr.mxu0 0.0
      %2090 = vmatpush1.msra.mxu0 0.0
      %2091 = vmatprep.subr.mxu0 0.0
      %2092 = vmatpush1.msra.mxu0 0.0
      %2093 = vmatprep.subr.mxu0 0.0
      %2094 = vmatpush1.msra.mxu0 0.0
      %2095 = vmatprep.subr.mxu0 0.0
      %2096 = vmatpush1.msra.mxu0 0.0
      %2097 = vmatprep.subr.mxu0 0.0
      %2098 = vmatpush1.msra.mxu0 0.0
      %2099 = vmatprep.subr.mxu0 0.0
      %2100 = vmatpush1.msra.mxu0 0.0
      %2101 = vmatprep.subr.mxu0 0.0
      %2102 = vmatpush1.msra.mxu0 0.0
      %2103 = vmatprep.subr.mxu0 0.0
      %2104 = vmatpush1.msra.mxu0 0.0
      %2105 = vmatprep.subr.mxu0 0.0
      %2106 = vmatpush1.msra.mxu0 0.0
      %2107 = vmatprep.subr.mxu0 0.0
      %2108 = vmatpush1.msra.mxu0 0.0
      %2109 = vmatprep.subr.mxu0 0.0
      %2110 = vmatpush1.msra.mxu0 %v292
      %2111 = vmatprep.subr.mxu0 0.0
      %2112 = vmatpush2.msra.mxu0 0.0
      %2113 = vmatprep.subr.mxu0 0.0
      %2114 = vmatpush2.msra.mxu0 0.0
      %2115 = vmatprep.subr.mxu0 0.0
      %2116 = vmatpush2.msra.mxu0 0.0
      %2117 = vmatprep.subr.mxu0 0.0
      %2118 = vmatpush2.msra.mxu0 0.0
      %2119 = vmatprep.subr.mxu0 0.0
      %2120 = vmatpush2.msra.mxu0 0.0
      %2121 = vmatprep.subr.mxu0 0.0
      %2122 = vmatpush2.msra.mxu0 0.0
      %2123 = vmatprep.subr.mxu0 0.0
      %2124 = vmatpush2.msra.mxu0 0.0
      %2125 = vmatprep.subr.mxu0 0.0
      %2126 = vmatpush2.msra.mxu0 0.0
      %2127 = vmatprep.subr.mxu0 0.0
      %2128 = vmatpush2.msra.mxu0 0.0
      %2129 = vmatprep.subr.mxu0 0.0
      %2130 = vmatpush2.msra.mxu0 0.0
      %2131 = vmatprep.subr.mxu0 0.0
      %2132 = vmatpush2.msra.mxu0 0.0
      %2133 = vmatprep.subr.mxu0 0.0
      %2134 = vmatpush2.msra.mxu0 0.0
      %2135 = vmatprep.subr.mxu0 0.0
      %2136 = vmatpush2.msra.mxu0 0.0
      %2137 = vmatprep.subr.mxu0 0.0
      %2138 = vmatpush2.msra.mxu0 0.0
      %2139 = vmatprep.subr.mxu0 0.0
      %2140 = vmatpush2.msra.mxu0 0.0
      %2141 = vmatprep.subr.mxu0 0.0
      %2142 = vmatpush2.msra.mxu0 0.0
      %2143 = vmatprep.mubr.f32.mxu0 0.0
      %2144 = vmatmul.mubr.f32.gmra.mxu0 %v2077
      %v2145 = vpop.f32.mrf.mxu0
      %v2146 = vadd.f32 0.0, %v2145
      %v2147 = vpop.f32.mrf.mxu0
      %2148 = vdwg.mxu0
      %v2149 = vadd.f32 %v2072, %v2146
      %v2150 = vadd.f32 %v2149, %v604
      %v2151 = vmax.f32 %v2150, 0.0
      %s2152 = scalar_lea.vmem %s286, 40
      %2153 = vst [vmem:[%s2152] sm:$0xff] %v2151
      %v2154 = vld [vmem:[%s1847] sm:$0xff]
      %v2155 = vld [vmem:[%s1847 + $0x8] sm:$0x1]
      %s2156 = scalar_lea.vmem %s263, 112
      %v2157 = vld [vmem:[%s2156] sm:$0xff]
      %v2158 = vld [vmem:[%s2156 + $0x8] sm:$0x1]
      %v2161 = vrot.slane %v2154, 1
      %v2162 = vrot.slane %v2155, 1
      %v2163 = vsel %vm300, %v2161, %v2162
      %v2164 = vsel %vm304, %v2163, 0
      %2166 = vmatprep.subr.mxu0 0.0
      %2167 = vmatpush1.msra.mxu0 0.0
      %2168 = vmatprep.subr.mxu0 0.0
      %2169 = vmatpush1.msra.mxu0 0.0
      %2170 = vmatprep.subr.mxu0 0.0
      %2171 = vmatpush1.msra.mxu0 0.0
      %2172 = vmatprep.subr.mxu0 0.0
      %2173 = vmatpush1.msra.mxu0 0.0
      %2174 = vmatprep.subr.mxu0 0.0
      %2175 = vmatpush1.msra.mxu0 0.0
      %2176 = vmatprep.subr.mxu0 0.0
      %2177 = vmatpush1.msra.mxu0 0.0
      %2178 = vmatprep.subr.mxu0 0.0
      %2179 = vmatpush1.msra.mxu0 0.0
      %2180 = vmatprep.subr.mxu0 0.0
      %2181 = vmatpush1.msra.mxu0 0.0
      %2182 = vmatprep.subr.mxu0 0.0
      %2183 = vmatpush1.msra.mxu0 0.0
      %2184 = vmatprep.subr.mxu0 0.0
      %2185 = vmatpush1.msra.mxu0 0.0
      %2186 = vmatprep.subr.mxu0 0.0
      %2187 = vmatpush1.msra.mxu0 0.0
      %2188 = vmatprep.subr.mxu0 0.0
      %2189 = vmatpush1.msra.mxu0 0.0
      %2190 = vmatprep.subr.mxu0 0.0
      %2191 = vmatpush1.msra.mxu0 0.0
      %2192 = vmatprep.subr.mxu0 0.0
      %2193 = vmatpush1.msra.mxu0 0.0
      %2194 = vmatprep.subr.mxu0 0.0
      %2195 = vmatpush1.msra.mxu0 0.0
      %2196 = vmatprep.subr.mxu0 0.0
      %2197 = vmatpush1.msra.mxu0 %v290
      %2198 = vmatprep.subr.mxu0 0.0
      %2199 = vmatpush2.msra.mxu0 0.0
      %2200 = vmatprep.subr.mxu0 0.0
      %2201 = vmatpush2.msra.mxu0 0.0
      %2202 = vmatprep.subr.mxu0 0.0
      %2203 = vmatpush2.msra.mxu0 0.0
      %2204 = vmatprep.subr.mxu0 0.0
      %2205 = vmatpush2.msra.mxu0 0.0
      %2206 = vmatprep.subr.mxu0 0.0
      %2207 = vmatpush2.msra.mxu0 0.0
      %2208 = vmatprep.subr.mxu0 0.0
      %2209 = vmatpush2.msra.mxu0 0.0
      %2210 = vmatprep.subr.mxu0 0.0
      %2211 = vmatpush2.msra.mxu0 0.0
      %2212 = vmatprep.subr.mxu0 0.0
      %2213 = vmatpush2.msra.mxu0 0.0
      %2214 = vmatprep.subr.mxu0 0.0
      %2215 = vmatpush2.msra.mxu0 0.0
      %2216 = vmatprep.subr.mxu0 0.0
      %2217 = vmatpush2.msra.mxu0 0.0
      %2218 = vmatprep.subr.mxu0 0.0
      %2219 = vmatpush2.msra.mxu0 0.0
      %2220 = vmatprep.subr.mxu0 0.0
      %2221 = vmatpush2.msra.mxu0 0.0
      %2222 = vmatprep.subr.mxu0 0.0
      %2223 = vmatpush2.msra.mxu0 0.0
      %2224 = vmatprep.subr.mxu0 0.0
      %2225 = vmatpush2.msra.mxu0 0.0
      %2226 = vmatprep.subr.mxu0 0.0
      %2227 = vmatpush2.msra.mxu0 0.0
      %2228 = vmatprep.subr.mxu0 0.0
      %2229 = vmatpush2.msra.mxu0 0.0
      %2230 = vmatprep.mubr.f32.mxu0 0.0
      %2231 = vmatmul.mubr.f32.gmra.mxu0 %v2164
      %v2232 = vpop.f32.mrf.mxu0
      %v2233 = vadd.f32 0.0, %v2232
      %v2234 = vpop.f32.mrf.mxu0
      %2235 = vdwg.mxu0
      %v2236 = vsel %vm304, %v2154, 0
      %2238 = vmatprep.subr.mxu0 0.0
      %2239 = vmatpush1.msra.mxu0 0.0
      %2240 = vmatprep.subr.mxu0 0.0
      %2241 = vmatpush1.msra.mxu0 0.0
      %2242 = vmatprep.subr.mxu0 0.0
      %2243 = vmatpush1.msra.mxu0 0.0
      %2244 = vmatprep.subr.mxu0 0.0
      %2245 = vmatpush1.msra.mxu0 0.0
      %2246 = vmatprep.subr.mxu0 0.0
      %2247 = vmatpush1.msra.mxu0 0.0
      %2248 = vmatprep.subr.mxu0 0.0
      %2249 = vmatpush1.msra.mxu0 0.0
      %2250 = vmatprep.subr.mxu0 0.0
      %2251 = vmatpush1.msra.mxu0 0.0
      %2252 = vmatprep.subr.mxu0 0.0
      %2253 = vmatpush1.msra.mxu0 0.0
      %2254 = vmatprep.subr.mxu0 0.0
      %2255 = vmatpush1.msra.mxu0 0.0
      %2256 = vmatprep.subr.mxu0 0.0
      %2257 = vmatpush1.msra.mxu0 0.0
      %2258 = vmatprep.subr.mxu0 0.0
      %2259 = vmatpush1.msra.mxu0 0.0
      %2260 = vmatprep.subr.mxu0 0.0
      %2261 = vmatpush1.msra.mxu0 0.0
      %2262 = vmatprep.subr.mxu0 0.0
      %2263 = vmatpush1.msra.mxu0 0.0
      %2264 = vmatprep.subr.mxu0 0.0
      %2265 = vmatpush1.msra.mxu0 0.0
      %2266 = vmatprep.subr.mxu0 0.0
      %2267 = vmatpush1.msra.mxu0 0.0
      %2268 = vmatprep.subr.mxu0 0.0
      %2269 = vmatpush1.msra.mxu0 %v289
      %2270 = vmatprep.subr.mxu0 0.0
      %2271 = vmatpush2.msra.mxu0 0.0
      %2272 = vmatprep.subr.mxu0 0.0
      %2273 = vmatpush2.msra.mxu0 0.0
      %2274 = vmatprep.subr.mxu0 0.0
      %2275 = vmatpush2.msra.mxu0 0.0
      %2276 = vmatprep.subr.mxu0 0.0
      %2277 = vmatpush2.msra.mxu0 0.0
      %2278 = vmatprep.subr.mxu0 0.0
      %2279 = vmatpush2.msra.mxu0 0.0
      %2280 = vmatprep.subr.mxu0 0.0
      %2281 = vmatpush2.msra.mxu0 0.0
      %2282 = vmatprep.subr.mxu0 0.0
      %2283 = vmatpush2.msra.mxu0 0.0
      %2284 = vmatprep.subr.mxu0 0.0
      %2285 = vmatpush2.msra.mxu0 0.0
      %2286 = vmatprep.subr.mxu0 0.0
      %2287 = vmatpush2.msra.mxu0 0.0
      %2288 = vmatprep.subr.mxu0 0.0
      %2289 = vmatpush2.msra.mxu0 0.0
      %2290 = vmatprep.subr.mxu0 0.0
      %2291 = vmatpush2.msra.mxu0 0.0
      %2292 = vmatprep.subr.mxu0 0.0
      %2293 = vmatpush2.msra.mxu0 0.0
      %2294 = vmatprep.subr.mxu0 0.0
      %2295 = vmatpush2.msra.mxu0 0.0
      %2296 = vmatprep.subr.mxu0 0.0
      %2297 = vmatpush2.msra.mxu0 0.0
      %2298 = vmatprep.subr.mxu0 0.0
      %2299 = vmatpush2.msra.mxu0 0.0
      %2300 = vmatprep.subr.mxu0 0.0
      %2301 = vmatpush2.msra.mxu0 0.0
      %2302 = vmatprep.mubr.f32.mxu0 0.0
      %2303 = vmatmul.mubr.f32.gmra.mxu0 %v2236
      %v2304 = vpop.f32.mrf.mxu0
      %v2305 = vadd.f32 %v2233, %v2304
      %v2306 = vpop.f32.mrf.mxu0
      %2307 = vdwg.mxu0
      %v2309 = vsel %vm304, %v2157, 0
      %2311 = vmatprep.subr.mxu0 0.0
      %2312 = vmatpush1.msra.mxu0 0.0
      %2313 = vmatprep.subr.mxu0 0.0
      %2314 = vmatpush1.msra.mxu0 0.0
      %2315 = vmatprep.subr.mxu0 0.0
      %2316 = vmatpush1.msra.mxu0 0.0
      %2317 = vmatprep.subr.mxu0 0.0
      %2318 = vmatpush1.msra.mxu0 0.0
      %2319 = vmatprep.subr.mxu0 0.0
      %2320 = vmatpush1.msra.mxu0 0.0
      %2321 = vmatprep.subr.mxu0 0.0
      %2322 = vmatpush1.msra.mxu0 0.0
      %2323 = vmatprep.subr.mxu0 0.0
      %2324 = vmatpush1.msra.mxu0 0.0
      %2325 = vmatprep.subr.mxu0 0.0
      %2326 = vmatpush1.msra.mxu0 0.0
      %2327 = vmatprep.subr.mxu0 0.0
      %2328 = vmatpush1.msra.mxu0 0.0
      %2329 = vmatprep.subr.mxu0 0.0
      %2330 = vmatpush1.msra.mxu0 0.0
      %2331 = vmatprep.subr.mxu0 0.0
      %2332 = vmatpush1.msra.mxu0 0.0
      %2333 = vmatprep.subr.mxu0 0.0
      %2334 = vmatpush1.msra.mxu0 0.0
      %2335 = vmatprep.subr.mxu0 0.0
      %2336 = vmatpush1.msra.mxu0 0.0
      %2337 = vmatprep.subr.mxu0 0.0
      %2338 = vmatpush1.msra.mxu0 0.0
      %2339 = vmatprep.subr.mxu0 0.0
      %2340 = vmatpush1.msra.mxu0 0.0
      %2341 = vmatprep.subr.mxu0 0.0
      %2342 = vmatpush1.msra.mxu0 %v291
      %2343 = vmatprep.subr.mxu0 0.0
      %2344 = vmatpush2.msra.mxu0 0.0
      %2345 = vmatprep.subr.mxu0 0.0
      %2346 = vmatpush2.msra.mxu0 0.0
      %2347 = vmatprep.subr.mxu0 0.0
      %2348 = vmatpush2.msra.mxu0 0.0
      %2349 = vmatprep.subr.mxu0 0.0
      %2350 = vmatpush2.msra.mxu0 0.0
      %2351 = vmatprep.subr.mxu0 0.0
      %2352 = vmatpush2.msra.mxu0 0.0
      %2353 = vmatprep.subr.mxu0 0.0
      %2354 = vmatpush2.msra.mxu0 0.0
      %2355 = vmatprep.subr.mxu0 0.0
      %2356 = vmatpush2.msra.mxu0 0.0
      %2357 = vmatprep.subr.mxu0 0.0
      %2358 = vmatpush2.msra.mxu0 0.0
      %2359 = vmatprep.subr.mxu0 0.0
      %2360 = vmatpush2.msra.mxu0 0.0
      %2361 = vmatprep.subr.mxu0 0.0
      %2362 = vmatpush2.msra.mxu0 0.0
      %2363 = vmatprep.subr.mxu0 0.0
      %2364 = vmatpush2.msra.mxu0 0.0
      %2365 = vmatprep.subr.mxu0 0.0
      %2366 = vmatpush2.msra.mxu0 0.0
      %2367 = vmatprep.subr.mxu0 0.0
      %2368 = vmatpush2.msra.mxu0 0.0
      %2369 = vmatprep.subr.mxu0 0.0
      %2370 = vmatpush2.msra.mxu0 0.0
      %2371 = vmatprep.subr.mxu0 0.0
      %2372 = vmatpush2.msra.mxu0 0.0
      %2373 = vmatprep.subr.mxu0 0.0
      %2374 = vmatpush2.msra.mxu0 0.0
      %2375 = vmatprep.mubr.f32.mxu0 0.0
      %2376 = vmatmul.mubr.f32.gmra.mxu0 %v2309
      %v2377 = vpop.f32.mrf.mxu0
      %v2378 = vadd.f32 0.0, %v2377
      %v2379 = vpop.f32.mrf.mxu0
      %2380 = vdwg.mxu0
      %v2381 = vadd.f32 %v2305, %v2378
      %v2383 = vrot.slane %v2157, 1
      %v2384 = vrot.slane %v2158, 1
      %v2385 = vsel %vm300, %v2383, %v2384
      %v2386 = vsel %vm304, %v2385, 0
      %2388 = vmatprep.subr.mxu0 0.0
      %2389 = vmatpush1.msra.mxu0 0.0
      %2390 = vmatprep.subr.mxu0 0.0
      %2391 = vmatpush1.msra.mxu0 0.0
      %2392 = vmatprep.subr.mxu0 0.0
      %2393 = vmatpush1.msra.mxu0 0.0
      %2394 = vmatprep.subr.mxu0 0.0
      %2395 = vmatpush1.msra.mxu0 0.0
      %2396 = vmatprep.subr.mxu0 0.0
      %2397 = vmatpush1.msra.mxu0 0.0
      %2398 = vmatprep.subr.mxu0 0.0
      %2399 = vmatpush1.msra.mxu0 0.0
      %2400 = vmatprep.subr.mxu0 0.0
      %2401 = vmatpush1.msra.mxu0 0.0
      %2402 = vmatprep.subr.mxu0 0.0
      %2403 = vmatpush1.msra.mxu0 0.0
      %2404 = vmatprep.subr.mxu0 0.0
      %2405 = vmatpush1.msra.mxu0 0.0
      %2406 = vmatprep.subr.mxu0 0.0
      %2407 = vmatpush1.msra.mxu0 0.0
      %2408 = vmatprep.subr.mxu0 0.0
      %2409 = vmatpush1.msra.mxu0 0.0
      %2410 = vmatprep.subr.mxu0 0.0
      %2411 = vmatpush1.msra.mxu0 0.0
      %2412 = vmatprep.subr.mxu0 0.0
      %2413 = vmatpush1.msra.mxu0 0.0
      %2414 = vmatprep.subr.mxu0 0.0
      %2415 = vmatpush1.msra.mxu0 0.0
      %2416 = vmatprep.subr.mxu0 0.0
      %2417 = vmatpush1.msra.mxu0 0.0
      %2418 = vmatprep.subr.mxu0 0.0
      %2419 = vmatpush1.msra.mxu0 %v292
      %2420 = vmatprep.subr.mxu0 0.0
      %2421 = vmatpush2.msra.mxu0 0.0
      %2422 = vmatprep.subr.mxu0 0.0
      %2423 = vmatpush2.msra.mxu0 0.0
      %2424 = vmatprep.subr.mxu0 0.0
      %2425 = vmatpush2.msra.mxu0 0.0
      %2426 = vmatprep.subr.mxu0 0.0
      %2427 = vmatpush2.msra.mxu0 0.0
      %2428 = vmatprep.subr.mxu0 0.0
      %2429 = vmatpush2.msra.mxu0 0.0
      %2430 = vmatprep.subr.mxu0 0.0
      %2431 = vmatpush2.msra.mxu0 0.0
      %2432 = vmatprep.subr.mxu0 0.0
      %2433 = vmatpush2.msra.mxu0 0.0
      %2434 = vmatprep.subr.mxu0 0.0
      %2435 = vmatpush2.msra.mxu0 0.0
      %2436 = vmatprep.subr.mxu0 0.0
      %2437 = vmatpush2.msra.mxu0 0.0
      %2438 = vmatprep.subr.mxu0 0.0
      %2439 = vmatpush2.msra.mxu0 0.0
      %2440 = vmatprep.subr.mxu0 0.0
      %2441 = vmatpush2.msra.mxu0 0.0
      %2442 = vmatprep.subr.mxu0 0.0
      %2443 = vmatpush2.msra.mxu0 0.0
      %2444 = vmatprep.subr.mxu0 0.0
      %2445 = vmatpush2.msra.mxu0 0.0
      %2446 = vmatprep.subr.mxu0 0.0
      %2447 = vmatpush2.msra.mxu0 0.0
      %2448 = vmatprep.subr.mxu0 0.0
      %2449 = vmatpush2.msra.mxu0 0.0
      %2450 = vmatprep.subr.mxu0 0.0
      %2451 = vmatpush2.msra.mxu0 0.0
      %2452 = vmatprep.mubr.f32.mxu0 0.0
      %2453 = vmatmul.mubr.f32.gmra.mxu0 %v2386
      %v2454 = vpop.f32.mrf.mxu0
      %v2455 = vadd.f32 0.0, %v2454
      %v2456 = vpop.f32.mrf.mxu0
      %2457 = vdwg.mxu0
      %v2458 = vadd.f32 %v2381, %v2455
      %v2459 = vadd.f32 %v2458, %v604
      %v2460 = vmax.f32 %v2459, 0.0
      %s2461 = scalar_lea.vmem %s286, 48
      %2462 = vst [vmem:[%s2461] sm:$0xff] %v2460
      %v2463 = vld [vmem:[%s2156] sm:$0xff]
      %v2464 = vld [vmem:[%s2156 + $0x8] sm:$0x1]
      %v2465 = vld [vmem:[%s275] sm:$0xff]
      %v2466 = vld [vmem:[%s275 + $0x8] sm:$0x1]
      %v2469 = vrot.slane %v2463, 1
      %v2470 = vrot.slane %v2464, 1
      %v2471 = vsel %vm300, %v2469, %v2470
      %v2472 = vsel %vm304, %v2471, 0
      %2474 = vmatprep.subr.mxu0 0.0
      %2475 = vmatpush1.msra.mxu0 0.0
      %2476 = vmatprep.subr.mxu0 0.0
      %2477 = vmatpush1.msra.mxu0 0.0
      %2478 = vmatprep.subr.mxu0 0.0
      %2479 = vmatpush1.msra.mxu0 0.0
      %2480 = vmatprep.subr.mxu0 0.0
      %2481 = vmatpush1.msra.mxu0 0.0
      %2482 = vmatprep.subr.mxu0 0.0
      %2483 = vmatpush1.msra.mxu0 0.0
      %2484 = vmatprep.subr.mxu0 0.0
      %2485 = vmatpush1.msra.mxu0 0.0
      %2486 = vmatprep.subr.mxu0 0.0
      %2487 = vmatpush1.msra.mxu0 0.0
      %2488 = vmatprep.subr.mxu0 0.0
      %2489 = vmatpush1.msra.mxu0 0.0
      %2490 = vmatprep.subr.mxu0 0.0
      %2491 = vmatpush1.msra.mxu0 0.0
      %2492 = vmatprep.subr.mxu0 0.0
      %2493 = vmatpush1.msra.mxu0 0.0
      %2494 = vmatprep.subr.mxu0 0.0
      %2495 = vmatpush1.msra.mxu0 0.0
      %2496 = vmatprep.subr.mxu0 0.0
      %2497 = vmatpush1.msra.mxu0 0.0
      %2498 = vmatprep.subr.mxu0 0.0
      %2499 = vmatpush1.msra.mxu0 0.0
      %2500 = vmatprep.subr.mxu0 0.0
      %2501 = vmatpush1.msra.mxu0 0.0
      %2502 = vmatprep.subr.mxu0 0.0
      %2503 = vmatpush1.msra.mxu0 0.0
      %2504 = vmatprep.subr.mxu0 0.0
      %2505 = vmatpush1.msra.mxu0 %v290
      %2506 = vmatprep.subr.mxu0 0.0
      %2507 = vmatpush2.msra.mxu0 0.0
      %2508 = vmatprep.subr.mxu0 0.0
      %2509 = vmatpush2.msra.mxu0 0.0
      %2510 = vmatprep.subr.mxu0 0.0
      %2511 = vmatpush2.msra.mxu0 0.0
      %2512 = vmatprep.subr.mxu0 0.0
      %2513 = vmatpush2.msra.mxu0 0.0
      %2514 = vmatprep.subr.mxu0 0.0
      %2515 = vmatpush2.msra.mxu0 0.0
      %2516 = vmatprep.subr.mxu0 0.0
      %2517 = vmatpush2.msra.mxu0 0.0
      %2518 = vmatprep.subr.mxu0 0.0
      %2519 = vmatpush2.msra.mxu0 0.0
      %2520 = vmatprep.subr.mxu0 0.0
      %2521 = vmatpush2.msra.mxu0 0.0
      %2522 = vmatprep.subr.mxu0 0.0
      %2523 = vmatpush2.msra.mxu0 0.0
      %2524 = vmatprep.subr.mxu0 0.0
      %2525 = vmatpush2.msra.mxu0 0.0
      %2526 = vmatprep.subr.mxu0 0.0
      %2527 = vmatpush2.msra.mxu0 0.0
      %2528 = vmatprep.subr.mxu0 0.0
      %2529 = vmatpush2.msra.mxu0 0.0
      %2530 = vmatprep.subr.mxu0 0.0
      %2531 = vmatpush2.msra.mxu0 0.0
      %2532 = vmatprep.subr.mxu0 0.0
      %2533 = vmatpush2.msra.mxu0 0.0
      %2534 = vmatprep.subr.mxu0 0.0
      %2535 = vmatpush2.msra.mxu0 0.0
      %2536 = vmatprep.subr.mxu0 0.0
      %2537 = vmatpush2.msra.mxu0 0.0
      %2538 = vmatprep.mubr.f32.mxu0 0.0
      %2539 = vmatmul.mubr.f32.gmra.mxu0 %v2472
      %v2540 = vpop.f32.mrf.mxu0
      %v2541 = vadd.f32 0.0, %v2540
      %v2542 = vpop.f32.mrf.mxu0
      %2543 = vdwg.mxu0
      %v2544 = vsel %vm304, %v2463, 0
      %2546 = vmatprep.subr.mxu0 0.0
      %2547 = vmatpush1.msra.mxu0 0.0
      %2548 = vmatprep.subr.mxu0 0.0
      %2549 = vmatpush1.msra.mxu0 0.0
      %2550 = vmatprep.subr.mxu0 0.0
      %2551 = vmatpush1.msra.mxu0 0.0
      %2552 = vmatprep.subr.mxu0 0.0
      %2553 = vmatpush1.msra.mxu0 0.0
      %2554 = vmatprep.subr.mxu0 0.0
      %2555 = vmatpush1.msra.mxu0 0.0
      %2556 = vmatprep.subr.mxu0 0.0
      %2557 = vmatpush1.msra.mxu0 0.0
      %2558 = vmatprep.subr.mxu0 0.0
      %2559 = vmatpush1.msra.mxu0 0.0
      %2560 = vmatprep.subr.mxu0 0.0
      %2561 = vmatpush1.msra.mxu0 0.0
      %2562 = vmatprep.subr.mxu0 0.0
      %2563 = vmatpush1.msra.mxu0 0.0
      %2564 = vmatprep.subr.mxu0 0.0
      %2565 = vmatpush1.msra.mxu0 0.0
      %2566 = vmatprep.subr.mxu0 0.0
      %2567 = vmatpush1.msra.mxu0 0.0
      %2568 = vmatprep.subr.mxu0 0.0
      %2569 = vmatpush1.msra.mxu0 0.0
      %2570 = vmatprep.subr.mxu0 0.0
      %2571 = vmatpush1.msra.mxu0 0.0
      %2572 = vmatprep.subr.mxu0 0.0
      %2573 = vmatpush1.msra.mxu0 0.0
      %2574 = vmatprep.subr.mxu0 0.0
      %2575 = vmatpush1.msra.mxu0 0.0
      %2576 = vmatprep.subr.mxu0 0.0
      %2577 = vmatpush1.msra.mxu0 %v289
      %2578 = vmatprep.subr.mxu0 0.0
      %2579 = vmatpush2.msra.mxu0 0.0
      %2580 = vmatprep.subr.mxu0 0.0
      %2581 = vmatpush2.msra.mxu0 0.0
      %2582 = vmatprep.subr.mxu0 0.0
      %2583 = vmatpush2.msra.mxu0 0.0
      %2584 = vmatprep.subr.mxu0 0.0
      %2585 = vmatpush2.msra.mxu0 0.0
      %2586 = vmatprep.subr.mxu0 0.0
      %2587 = vmatpush2.msra.mxu0 0.0
      %2588 = vmatprep.subr.mxu0 0.0
      %2589 = vmatpush2.msra.mxu0 0.0
      %2590 = vmatprep.subr.mxu0 0.0
      %2591 = vmatpush2.msra.mxu0 0.0
      %2592 = vmatprep.subr.mxu0 0.0
      %2593 = vmatpush2.msra.mxu0 0.0
      %2594 = vmatprep.subr.mxu0 0.0
      %2595 = vmatpush2.msra.mxu0 0.0
      %2596 = vmatprep.subr.mxu0 0.0
      %2597 = vmatpush2.msra.mxu0 0.0
      %2598 = vmatprep.subr.mxu0 0.0
      %2599 = vmatpush2.msra.mxu0 0.0
      %2600 = vmatprep.subr.mxu0 0.0
      %2601 = vmatpush2.msra.mxu0 0.0
      %2602 = vmatprep.subr.mxu0 0.0
      %2603 = vmatpush2.msra.mxu0 0.0
      %2604 = vmatprep.subr.mxu0 0.0
      %2605 = vmatpush2.msra.mxu0 0.0
      %2606 = vmatprep.subr.mxu0 0.0
      %2607 = vmatpush2.msra.mxu0 0.0
      %2608 = vmatprep.subr.mxu0 0.0
      %2609 = vmatpush2.msra.mxu0 0.0
      %2610 = vmatprep.mubr.f32.mxu0 0.0
      %2611 = vmatmul.mubr.f32.gmra.mxu0 %v2544
      %v2612 = vpop.f32.mrf.mxu0
      %v2613 = vadd.f32 %v2541, %v2612
      %v2614 = vpop.f32.mrf.mxu0
      %2615 = vdwg.mxu0
      %v2617 = vsel %vm304, %v2465, 0
      %2619 = vmatprep.subr.mxu0 0.0
      %2620 = vmatpush1.msra.mxu0 0.0
      %2621 = vmatprep.subr.mxu0 0.0
      %2622 = vmatpush1.msra.mxu0 0.0
      %2623 = vmatprep.subr.mxu0 0.0
      %2624 = vmatpush1.msra.mxu0 0.0
      %2625 = vmatprep.subr.mxu0 0.0
      %2626 = vmatpush1.msra.mxu0 0.0
      %2627 = vmatprep.subr.mxu0 0.0
      %2628 = vmatpush1.msra.mxu0 0.0
      %2629 = vmatprep.subr.mxu0 0.0
      %2630 = vmatpush1.msra.mxu0 0.0
      %2631 = vmatprep.subr.mxu0 0.0
      %2632 = vmatpush1.msra.mxu0 0.0
      %2633 = vmatprep.subr.mxu0 0.0
      %2634 = vmatpush1.msra.mxu0 0.0
      %2635 = vmatprep.subr.mxu0 0.0
      %2636 = vmatpush1.msra.mxu0 0.0
      %2637 = vmatprep.subr.mxu0 0.0
      %2638 = vmatpush1.msra.mxu0 0.0
      %2639 = vmatprep.subr.mxu0 0.0
      %2640 = vmatpush1.msra.mxu0 0.0
      %2641 = vmatprep.subr.mxu0 0.0
      %2642 = vmatpush1.msra.mxu0 0.0
      %2643 = vmatprep.subr.mxu0 0.0
      %2644 = vmatpush1.msra.mxu0 0.0
      %2645 = vmatprep.subr.mxu0 0.0
      %2646 = vmatpush1.msra.mxu0 0.0
      %2647 = vmatprep.subr.mxu0 0.0
      %2648 = vmatpush1.msra.mxu0 0.0
      %2649 = vmatprep.subr.mxu0 0.0
      %2650 = vmatpush1.msra.mxu0 %v291
      %2651 = vmatprep.subr.mxu0 0.0
      %2652 = vmatpush2.msra.mxu0 0.0
      %2653 = vmatprep.subr.mxu0 0.0
      %2654 = vmatpush2.msra.mxu0 0.0
      %2655 = vmatprep.subr.mxu0 0.0
      %2656 = vmatpush2.msra.mxu0 0.0
      %2657 = vmatprep.subr.mxu0 0.0
      %2658 = vmatpush2.msra.mxu0 0.0
      %2659 = vmatprep.subr.mxu0 0.0
      %2660 = vmatpush2.msra.mxu0 0.0
      %2661 = vmatprep.subr.mxu0 0.0
      %2662 = vmatpush2.msra.mxu0 0.0
      %2663 = vmatprep.subr.mxu0 0.0
      %2664 = vmatpush2.msra.mxu0 0.0
      %2665 = vmatprep.subr.mxu0 0.0
      %2666 = vmatpush2.msra.mxu0 0.0
      %2667 = vmatprep.subr.mxu0 0.0
      %2668 = vmatpush2.msra.mxu0 0.0
      %2669 = vmatprep.subr.mxu0 0.0
      %2670 = vmatpush2.msra.mxu0 0.0
      %2671 = vmatprep.subr.mxu0 0.0
      %2672 = vmatpush2.msra.mxu0 0.0
      %2673 = vmatprep.subr.mxu0 0.0
      %2674 = vmatpush2.msra.mxu0 0.0
      %2675 = vmatprep.subr.mxu0 0.0
      %2676 = vmatpush2.msra.mxu0 0.0
      %2677 = vmatprep.subr.mxu0 0.0
      %2678 = vmatpush2.msra.mxu0 0.0
      %2679 = vmatprep.subr.mxu0 0.0
      %2680 = vmatpush2.msra.mxu0 0.0
      %2681 = vmatprep.subr.mxu0 0.0
      %2682 = vmatpush2.msra.mxu0 0.0
      %2683 = vmatprep.mubr.f32.mxu0 0.0
      %2684 = vmatmul.mubr.f32.gmra.mxu0 %v2617
      %v2685 = vpop.f32.mrf.mxu0
      %v2686 = vadd.f32 0.0, %v2685
      %v2687 = vpop.f32.mrf.mxu0
      %2688 = vdwg.mxu0
      %v2689 = vadd.f32 %v2613, %v2686
      %v2691 = vrot.slane %v2465, 1
      %v2692 = vrot.slane %v2466, 1
      %v2693 = vsel %vm300, %v2691, %v2692
      %v2694 = vsel %vm304, %v2693, 0
      %2696 = vmatprep.subr.mxu0 0.0
      %2697 = vmatpush1.msra.mxu0 0.0
      %2698 = vmatprep.subr.mxu0 0.0
      %2699 = vmatpush1.msra.mxu0 0.0
      %2700 = vmatprep.subr.mxu0 0.0
      %2701 = vmatpush1.msra.mxu0 0.0
      %2702 = vmatprep.subr.mxu0 0.0
      %2703 = vmatpush1.msra.mxu0 0.0
      %2704 = vmatprep.subr.mxu0 0.0
      %2705 = vmatpush1.msra.mxu0 0.0
      %2706 = vmatprep.subr.mxu0 0.0
      %2707 = vmatpush1.msra.mxu0 0.0
      %2708 = vmatprep.subr.mxu0 0.0
      %2709 = vmatpush1.msra.mxu0 0.0
      %2710 = vmatprep.subr.mxu0 0.0
      %2711 = vmatpush1.msra.mxu0 0.0
      %2712 = vmatprep.subr.mxu0 0.0
      %2713 = vmatpush1.msra.mxu0 0.0
      %2714 = vmatprep.subr.mxu0 0.0
      %2715 = vmatpush1.msra.mxu0 0.0
      %2716 = vmatprep.subr.mxu0 0.0
      %2717 = vmatpush1.msra.mxu0 0.0
      %2718 = vmatprep.subr.mxu0 0.0
      %2719 = vmatpush1.msra.mxu0 0.0
      %2720 = vmatprep.subr.mxu0 0.0
      %2721 = vmatpush1.msra.mxu0 0.0
      %2722 = vmatprep.subr.mxu0 0.0
      %2723 = vmatpush1.msra.mxu0 0.0
      %2724 = vmatprep.subr.mxu0 0.0
      %2725 = vmatpush1.msra.mxu0 0.0
      %2726 = vmatprep.subr.mxu0 0.0
      %2727 = vmatpush1.msra.mxu0 %v292
      %2728 = vmatprep.subr.mxu0 0.0
      %2729 = vmatpush2.msra.mxu0 0.0
      %2730 = vmatprep.subr.mxu0 0.0
      %2731 = vmatpush2.msra.mxu0 0.0
      %2732 = vmatprep.subr.mxu0 0.0
      %2733 = vmatpush2.msra.mxu0 0.0
      %2734 = vmatprep.subr.mxu0 0.0
      %2735 = vmatpush2.msra.mxu0 0.0
      %2736 = vmatprep.subr.mxu0 0.0
      %2737 = vmatpush2.msra.mxu0 0.0
      %2738 = vmatprep.subr.mxu0 0.0
      %2739 = vmatpush2.msra.mxu0 0.0
      %2740 = vmatprep.subr.mxu0 0.0
      %2741 = vmatpush2.msra.mxu0 0.0
      %2742 = vmatprep.subr.mxu0 0.0
      %2743 = vmatpush2.msra.mxu0 0.0
      %2744 = vmatprep.subr.mxu0 0.0
      %2745 = vmatpush2.msra.mxu0 0.0
      %2746 = vmatprep.subr.mxu0 0.0
      %2747 = vmatpush2.msra.mxu0 0.0
      %2748 = vmatprep.subr.mxu0 0.0
      %2749 = vmatpush2.msra.mxu0 0.0
      %2750 = vmatprep.subr.mxu0 0.0
      %2751 = vmatpush2.msra.mxu0 0.0
      %2752 = vmatprep.subr.mxu0 0.0
      %2753 = vmatpush2.msra.mxu0 0.0
      %2754 = vmatprep.subr.mxu0 0.0
      %2755 = vmatpush2.msra.mxu0 0.0
      %2756 = vmatprep.subr.mxu0 0.0
      %2757 = vmatpush2.msra.mxu0 0.0
      %2758 = vmatprep.subr.mxu0 0.0
      %2759 = vmatpush2.msra.mxu0 0.0
      %2760 = vmatprep.mubr.f32.mxu0 0.0
      %2761 = vmatmul.mubr.f32.gmra.mxu0 %v2694
      %v2762 = vpop.f32.mrf.mxu0
      %v2763 = vadd.f32 0.0, %v2762
      %v2764 = vpop.f32.mrf.mxu0
      %2765 = vdwg.mxu0
      %v2766 = vadd.f32 %v2689, %v2763
      %v2767 = vadd.f32 %v2766, %v604
      %v2768 = vmax.f32 %v2767, 0.0
      %s2769 = scalar_lea.vmem %s286, 56
      %2770 = vst [vmem:[%s2769] sm:$0xff] %v2768
      %s2771 = smul.u32 8, %s20
      %p2772 = scmp.lt.s32.totalorder %s19, 1
      %s2773 = scalar_select %p2772, %s19, 1
      %p2774 = scmp.lt.s32.totalorder %s2771, 7
      %s2775 = scalar_select %p2774, %s2771, 7
      %s2776 = smul.addr %s2773, 8
      %s2777 = sadd.s32 %s2775, %s2776
      %s2778 = smul.addr %s2777, 8
      %s2779 = scalar_lea.vmem %s4, %s2778
      // Predicated region
      $region37: #{_lambda_.5} parent=35 // pred_check
        %p2780 = pneg %p149
      $region38: #{_lambda_.5} parent=35 // pred_check_branch
        %2782 = sbr.rel (%p2780) target = $region40
      $region39: #{_lambda_.5} parent=35 // pred_region
        %s2783 = smul.u32 8, %s20
      $region40: #{_lambda_.5} parent=35 // pred_fallthru
        _
    $region36: #{_lambda_.5} parent=5 // pred_fallthru
      _
    %p2784 = scmp.le.s32.totalorder 2, %s10
    // Predicated region
    $region41: #{_lambda_.5} parent=5 // pred_check
      %p2785 = pneg %p2784
    $region42: #{_lambda_.5} parent=5 // pred_check_branch
      %2787 = sbr.rel (%p2785) target = $region44
    $region43: #{_lambda_.5} parent=5 // pred_region
      %s2788 = ssub.s32 %s10, 2
      // Predicated region
      $region45: #{_lambda_.5} parent=43 // pred_check
        %p2789 = pneg %p155
      $region46: #{_lambda_.5} parent=43 // pred_check_branch
        %2791 = sbr.rel (%p2789) target = $region48
      $region47: #{_lambda_.5} parent=43 // pred_region
        %s2792 = smul.u32 8, %s22
        %p2793 = scmp.lt.s32.totalorder %s21, 1
        %s2794 = scalar_select %p2793, %s21, 1
        %p2795 = scmp.lt.s32.totalorder %s2792, 7
        %s2796 = scalar_select %p2795, %s2792, 7
        %s2797 = smul.addr %s2794, 8
        %s2798 = sadd.s32 %s2796, %s2797
        %s2799 = smul.addr %s2798, 8
        %s2800 = scalar_lea.vmem %s4, %s2799
      $region48: #{_lambda_.5} parent=43 // pred_fallthru
        _
    $region44: #{_lambda_.5} parent=5 // pred_fallthru
      _
  $region6: #{_lambda_.5} parent=0 // loop_footer
    %s14 = sadd.s32 1, %s10
  $region7: #{_lambda_.5} parent=0 // loop_footer_branch
    %9 = sbr.rel target = $region3
  $region8: #{_lambda_.5} parent=0 // loop_exit
    _

</llo_original>
